<compile_context>
chip_gen: v6e
topology: v6e:2x2x1
jax: 0.10.0
libtpu: 0.0.40
codegen_flags: <defaults>
</compile_context>

<pallas_src>
import functools

import jax
import jax.numpy as jnp
import numpy as np
from jax.experimental import pallas as pl
from jax.experimental.pallas import tpu as pltpu

BN_EPS = 1e-5
_PARALLEL = pltpu.CompilerParams(dimension_semantics=("parallel",))


def _pick_batch_block(n, max_b=8):
    """Largest divisor of n that is <= max_b, preferring >=2 grid steps (v7x megacore)."""
    divisors = [b for b in range(1, min(n, max_b) + 1) if n % b == 0]
    multi = [b for b in divisors if n // b >= 2]
    return max(multi) if multi else max(divisors)


# ----------------------------- Pallas kernels ------------------------------ #

def _conv_rows(x_ref, w_ref, H, B):
    """3x3 / pad=1 conv of B images in row layout as 3 bf16 MXU matmuls.

    x_ref: [B, H+2, (W+2)*Cin] bf16 (zero-padded halo)
    w_ref: [3, (W+2)*Cin, W*Cout] bf16 block-banded weights (one per kh)
    returns y: [B*H, W*Cout] f32
    """
    Kp = x_ref.shape[-1]
    y = None
    for kh in range(3):                                   # static unroll: 3 MXU matmuls
        # Slice the narrow bf16 LHS (not the wide f32 product) and stack the B
        # images into one [B*H, Kp] operand so the MXU sees a large M.
        lhs = x_ref[:, kh:kh + H, :].reshape(B * H, Kp)
        p = jnp.dot(lhs, w_ref[kh], preferred_element_type=jnp.float32)
        y = p if y is None else y + p
    return y


def _conv_stats_kernel(x_ref, w_ref, s_ref, *, H, B):
    # Per-step BN partials (cross-tile reduction finished in JAX): sum(y) and
    # sum(y*y) over all B*H rows, kept in the lane-dense [W*Cout] layout.
    y = _conv_rows(x_ref, w_ref, H, B)                    # [B*H, WC] f32
    s1 = jnp.sum(y, axis=0, keepdims=True)
    s2 = jnp.sum(y * y, axis=0, keepdims=True)
    s_ref[0] = jnp.concatenate([s1, s2], axis=0)          # [2, WC]


def _conv_apply_kernel(x_ref, w_ref, scale_ref, shift_ref, re_ref, ce_ref, o_ref,
                       *, H, B, Cout, pad_out):
    # Recompute conv, apply folded BN affine + tanh (f32), fuse the 2x2
    # max-pool (VPU pair-maxes + one bf16 0/1 selector matmul per axis) and do
    # a single lane-dense bf16 store (optionally already halo-padded).
    BH = B * H
    Hh = H // 2
    y = _conv_rows(x_ref, w_ref, H, B)                                     # [BH, WC] f32
    act = jnp.tanh(y * scale_ref[...] + shift_ref[...])                    # [BH, WC] f32
    WC = act.shape[-1]
    # Row pairs: shifted-slice max on the VPU, then one bf16 selector matmul
    # compacts the even rows (drops the former `ro` selector).
    rmax = jnp.maximum(act[:BH - 1, :], act[1:, :]).astype(jnp.bfloat16)   # [BH-1, WC]
    rsel = jnp.dot(re_ref[...], rmax,
                   preferred_element_type=jnp.float32).astype(jnp.bfloat16)  # [BH/2, WC]
    # Column pairs: lane-shifted-slice max, then one bf16 selector matmul that
    # compacts even column groups (and, when pad_out, also places the Cout-wide
    # zero halo lanes for the next conv layer).  Drops the former `co` selector.
    cmax = jnp.maximum(rsel[:, :WC - Cout], rsel[:, Cout:])                # [BH/2, WC-Cout]
    pooled = jnp.dot(cmax, ce_ref[...], preferred_element_type=jnp.float32)
    Wo = pooled.shape[-1]
    pooled = pooled.reshape(B, Hh, Wo).astype(o_ref.dtype)
    if pad_out:
        o_ref[:, 1:Hh + 1, :] = pooled
        zrow = jnp.zeros((B, 1, Wo), o_ref.dtype)
        o_ref[:, 0:1, :] = zrow                                            # top halo row
        o_ref[:, Hh + 1:Hh + 2, :] = zrow                                  # bottom halo row
    else:
        o_ref[...] = pooled


def _mlp_kernel(x_ref, w1_ref, b1_ref, w2_ref, b2_ref, o_ref):
    # fc1 + tanh + fc2 (bf16 MXU operands, f32 accumulation / activations).
    h = jnp.dot(x_ref[...], w1_ref[...], preferred_element_type=jnp.float32) + b1_ref[...]
    h = jnp.tanh(h)
    o_ref[...] = (jnp.dot(h.astype(w2_ref.dtype), w2_ref[...],
                          preferred_element_type=jnp.float32) + b2_ref[...])


# ------------------------------ JAX glue ----------------------------------- #

def _banded_conv_weights(w_oihw, W):
    """[Cout,Cin,3,3] -> [3, (W+2)*Cin, W*Cout] block-banded matmul weights (bf16)."""
    Cout, Cin, _, _ = w_oihw.shape
    wt = jnp.transpose(w_oihw, (2, 3, 1, 0)).astype(jnp.float32)   # [kh, kw, ci, co]
    bands = []
    for kh in range(3):
        a = 0.0
        for kw in range(3):
            band = jnp.eye(W + 2, W, k=-kw, dtype=jnp.float32)     # 1 at (w+kw, w)
            a = a + band[:, None, :, None] * wt[kh, kw][None, :, None, :]
        bands.append(a.reshape((W + 2) * Cin, W * Cout))
    return jnp.stack(bands, axis=0).astype(jnp.bfloat16)


def _row_pool_selector(B, H):
    """bf16 0/1 selector [B*H/2, B*H-1]: picks even rows out of the row-pair-max stack."""
    re = np.eye(B * H, dtype=np.float32)[0::2, :B * H - 1]
    return jnp.asarray(re, dtype=jnp.bfloat16)


def _col_pool_selector(W, C, pad_out):
    """bf16 0/1 selector [(W-1)*C, Wo*C]: picks even column groups of the column-pair-max
    and (when pad_out) lands them at lane offset C inside a (W/2+2)*C halo-padded row."""
    eyec = np.eye(C, dtype=np.float32)
    ce = np.kron(np.eye(W, dtype=np.float32)[:, 0::2], eyec)[:(W - 1) * C, :]
    if pad_out:
        z = np.zeros(((W - 1) * C, C), np.float32)
        ce = np.concatenate([z, ce, z], axis=1)
    return jnp.asarray(ce, dtype=jnp.bfloat16)


def conv_bn_tanh_pool(xp, w_oihw, gamma, beta, *, H, W, pad_out):
    """conv3x3(pad=1) -> BatchNorm2d(batch stats) -> tanh -> maxpool2x2.

    xp: [N, H+2, (W+2)*Cin] bf16, zero-padded halo, lane-dense row layout.
    Returns [N, H/2(+2), (W/2(+2))*Cout] bf16 (halo-padded iff pad_out).
    """
    N = xp.shape[0]
    Kp = xp.shape[2]                            # (W+2)*Cin
    Cout = w_oihw.shape[0]
    WC = W * Cout
    B = _pick_batch_block(N)
    steps = N // B
    wb = _banded_conv_weights(w_oihw, W)        # [3, Kp, WC] bf16
    # Conv bias intentionally not applied: exactly cancelled by BN mean subtraction.

    # Pass 1: one BN partial per grid step (B images per step, batch-parallel).
    stats = pl.pallas_call(
        functools.partial(_conv_stats_kernel, H=H, B=B),
        out_shape=jax.ShapeDtypeStruct((steps, 2, WC), jnp.float32),
        grid=(steps,),
        in_specs=[pl.BlockSpec((B, H + 2, Kp), lambda i: (i, 0, 0)),
                  pl.BlockSpec((3, Kp, WC), lambda i: (0, 0, 0))],
        out_specs=pl.BlockSpec((1, 2, WC), lambda i: (i, 0, 0)),
        compiler_params=_PARALLEL,
    )(xp, wb)

    # Finalize BN on a tiny [Cout]-sized array; fold gamma/beta into per-lane
    # scale/shift matching the lane layout (lane = w*Cout + c).
    s = stats.sum(axis=0).reshape(2, W, Cout).sum(axis=1)           # [2, Cout]
    count = N * H * W
    mean = s[0] / count
    var = jnp.maximum(s[1] / count - mean * mean, 0.0)              # biased; clamp vs. f32 cancellation
    scale = gamma.astype(jnp.float32) * jax.lax.rsqrt(var + BN_EPS)
    shift = beta.astype(jnp.float32) - mean * scale
    scale_vec = jnp.tile(scale, W).reshape(1, WC)
    shift_vec = jnp.tile(shift, W).reshape(1, WC)

    # Pass 2: recompute conv, fused BN affine + tanh + 2x2 max-pool, bf16 store
    # (already in the next conv's padded halo layout when pad_out=True).
    re = _row_pool_selector(B, H)
    ce = _col_pool_selector(W, Cout, pad_out)
    Ho = H // 2 + (2 if pad_out else 0)
    Wo = ((W // 2) + (2 if pad_out else 0)) * Cout
    out = pl.pallas_call(
        functools.partial(_conv_apply_kernel, H=H, B=B, Cout=Cout, pad_out=pad_out),
        out_shape=jax.ShapeDtypeStruct((N, Ho, Wo), jnp.bfloat16),
        grid=(steps,),
        in_specs=[pl.BlockSpec((B, H + 2, Kp), lambda i: (i, 0, 0)),
                  pl.BlockSpec((3, Kp, WC), lambda i: (0, 0, 0)),
                  pl.BlockSpec((1, WC), lambda i: (0, 0)),
                  pl.BlockSpec((1, WC), lambda i: (0, 0)),
                  pl.BlockSpec(re.shape, lambda i: (0, 0)),
                  pl.BlockSpec(ce.shape, lambda i: (0, 0))],
        out_specs=pl.BlockSpec((B, Ho, Wo), lambda i: (i, 0, 0)),
        compiler_params=_PARALLEL,
    )(xp, wb, scale_vec, shift_vec, re, ce)
    return out


def mlp_head(flat, w1t, b1, w2t, b2):
    N, F = flat.shape
    H1 = w1t.shape[1]
    C = w2t.shape[1]
    TN = min(N, 256)
    return pl.pallas_call(
        _mlp_kernel,
        out_shape=jax.ShapeDtypeStruct((N, C), jnp.float32),
        grid=(pl.cdiv(N, TN),),
        in_specs=[pl.BlockSpec((TN, F), lambda i: (i, 0)),
                  pl.BlockSpec((F, H1), lambda i: (0, 0)),
                  pl.BlockSpec((1, H1), lambda i: (0, 0)),
                  pl.BlockSpec((H1, C), lambda i: (0, 0)),
                  pl.BlockSpec((1, C), lambda i: (0, 0))],
        out_specs=pl.BlockSpec((TN, C), lambda i: (i, 0)),
        compiler_params=_PARALLEL,
    )(flat, w1t, b1, w2t, b2)


def net_batchnorm_forward(x_nchw, params, n_chans1):
    N, Cin, H, W = x_nchw.shape
    C2 = n_chans1 // 2

    # NCHW -> lane-dense row layout [N, H, W*Cin]; pad the conv halo once (layer-1 input only).
    x_rows = jnp.transpose(x_nchw, (0, 2, 3, 1)).astype(jnp.float32).reshape(N, H, W * Cin)
    xp1 = jnp.pad(x_rows, ((0, 0), (1, 1), (Cin, Cin))).astype(jnp.bfloat16)

    # Layer 1 writes its pooled output directly in layer 2's zero-padded halo layout,
    # removing the inter-layer jnp.pad HBM round trip.
    xp2 = conv_bn_tanh_pool(xp1, params["conv1_w"], params["bn1_g"], params["bn1_b"],
                            H=H, W=W, pad_out=True)
    H2, W2 = H // 2, W // 2

    p2 = conv_bn_tanh_pool(xp2, params["conv2_w"], params["bn2_g"], params["bn2_b"],
                           H=H2, W=W2, pad_out=False)
    H4, W4 = H2 // 2, W2 // 2

    # PyTorch's `out.view(-1, 8*8*n_chans1//2)` flattens NCHW as (c, h, w); our row
    # layout flattens as (h, w, c).  Permute fc1's weight columns once (trace-time)
    # instead of transposing the activation.
    flat = p2.reshape(N, H4 * W4 * C2)                              # bf16, (h, w, c) order
    hh, ww, cc = np.meshgrid(np.arange(H4), np.arange(W4), np.arange(C2), indexing="ij")
    src = (cc * H4 * W4 + hh * W4 + ww).reshape(-1)                 # (h,w,c) -> torch column
    w1t = params["fc1_w"][:, src].T.astype(jnp.bfloat16)            # [F, 32]
    b1 = params["fc1_b"].reshape(1, -1).astype(jnp.float32)
    w2t = params["fc2_w"].T.astype(jnp.bfloat16)                    # [32, 2]
    b2 = params["fc2_b"].reshape(1, -1).astype(jnp.float32)

    # TODO(synk): source forward has `out = self.fc2()` (missing argument -> TypeError
    # in PyTorch); implementing the clearly intended `self.fc2(out)`.
    return mlp_head(flat, w1t, b1, w2t, b2)


# ------------------------- deterministic params ----------------------------- #

def init_params(key, n_chans1):
    c2 = n_chans1 // 2
    fc1_in = 8 * 8 * c2
    ks = jax.random.split(key, 8)

    def u(k, shape, fan_in):
        bound = 1.0 / jnp.sqrt(fan_in)
        return jax.random.uniform(k, shape, jnp.float32, -bound, bound)

    return {
        "conv1_w": u(ks[0], (n_chans1, 3, 3, 3), 3 * 9),
        "conv1_b": u(ks[1], (n_chans1,), 3 * 9),      # unused: cancelled by batch-stat BN
        "bn1_g": jnp.ones((n_chans1,), jnp.float32),
        "bn1_b": jnp.zeros((n_chans1,), jnp.float32),
        "conv2_w": u(ks[2], (c2, n_chans1, 3, 3), n_chans1 * 9),
        "conv2_b": u(ks[3], (c2,), n_chans1 * 9),     # unused: cancelled by batch-stat BN
        "bn2_g": jnp.ones((c2,), jnp.float32),
        "bn2_b": jnp.zeros((c2,), jnp.float32),
        "fc1_w": u(ks[4], (32, fc1_in), fc1_in),
        "fc1_b": u(ks[5], (32,), fc1_in),
        "fc2_w": u(ks[6], (2, 32), 32),
        "fc2_b": u(ks[7], (2,), 32),
    }


if __name__ == "__main__":
    n_chans1 = 8                       # small but shape-consistent (fc1 in = 8*8*4 = 256)
    key = jax.random.PRNGKey(0)
    k_x, k_p = jax.random.split(key)
    x = jax.random.normal(k_x, (2, 3, 32, 32), jnp.float32)   # NCHW, CIFAR-sized spatial
    params = init_params(k_p, n_chans1)

    fwd = jax.jit(functools.partial(net_batchnorm_forward, n_chans1=n_chans1))
    out = jax.block_until_ready(fwd(x, params))
    assert out.shape == (2, 2) and out.dtype == jnp.float32
    print("KERNEL_OK")
</pallas_src>

<mosaic_0001>
module attributes {stable_mosaic.version = 11 : i64} {
  func.func @_conv_stats_kernel(%arg0: i32, %arg1: memref<1x34x102xbf16, #tpu.memory_space<vmem>>, %arg2: memref<3x102x256xbf16, #tpu.memory_space<vmem>>, %arg3: memref<1x2x256xf32, #tpu.memory_space<vmem>>) attributes {dimension_semantics = [#tpu.dimension_semantics<parallel>], iteration_bounds = array<i64: 2>, scalar_prefetch = 0 : i64, scratch_operands = 0 : i64, tpu.core_type = #tpu.core_type<tc>, window_params = [{transform_indices = @transform_0, window_bounds = array<i64: 1, 34, 102>}, {pipeline_mode = #tpu.pipeline_mode<synchronous>, transform_indices = @transform_1, window_bounds = array<i64: 3, 102, 256>}, {transform_indices = @transform_2, window_bounds = array<i64: 1, 2, 256>}]} {
    %c0 = arith.constant 0 : index
    %c0_0 = arith.constant 0 : index
    %c0_1 = arith.constant 0 : index
    %0 = vector.load %arg1[%c0, %c0_0, %c0_1] : memref<1x34x102xbf16, #tpu.memory_space<vmem>>, vector<1x32x102xbf16>
    %1 = vector.shape_cast %0 : vector<1x32x102xbf16> to vector<32x102xbf16>
    %c0_2 = arith.constant 0 : index
    %c0_3 = arith.constant 0 : index
    %c0_4 = arith.constant 0 : index
    %2 = vector.load %arg2[%c0_2, %c0_3, %c0_4] : memref<3x102x256xbf16, #tpu.memory_space<vmem>>, vector<1x102x256xbf16>
    %3 = vector.shape_cast %2 : vector<1x102x256xbf16> to vector<102x256xbf16>
    %cst = arith.constant dense<0.000000e+00> : vector<32x256xf32>
    %4 = tpu.matmul %1, %3, %cst {dimension_numbers = #tpu.dot_dimension_numbers<[1], [0], [0], [1], [0, 0, 1, 1], [], []>} : vector<32x102xbf16>, vector<102x256xbf16>, vector<32x256xf32> -> vector<32x256xf32>
    %c0_5 = arith.constant 0 : index
    %c1 = arith.constant 1 : index
    %c0_6 = arith.constant 0 : index
    %5 = vector.load %arg1[%c0_5, %c1, %c0_6] : memref<1x34x102xbf16, #tpu.memory_space<vmem>>, vector<1x32x102xbf16>
    %6 = vector.shape_cast %5 : vector<1x32x102xbf16> to vector<32x102xbf16>
    %c1_7 = arith.constant 1 : index
    %c0_8 = arith.constant 0 : index
    %c0_9 = arith.constant 0 : index
    %7 = vector.load %arg2[%c1_7, %c0_8, %c0_9] : memref<3x102x256xbf16, #tpu.memory_space<vmem>>, vector<1x102x256xbf16>
    %8 = vector.shape_cast %7 : vector<1x102x256xbf16> to vector<102x256xbf16>
    %cst_10 = arith.constant dense<0.000000e+00> : vector<32x256xf32>
    %9 = tpu.matmul %6, %8, %cst_10 {dimension_numbers = #tpu.dot_dimension_numbers<[1], [0], [0], [1], [0, 0, 1, 1], [], []>} : vector<32x102xbf16>, vector<102x256xbf16>, vector<32x256xf32> -> vector<32x256xf32>
    %10 = arith.addf %4, %9 : vector<32x256xf32>
    %c0_11 = arith.constant 0 : index
    %c2 = arith.constant 2 : index
    %c0_12 = arith.constant 0 : index
    %11 = vector.load %arg1[%c0_11, %c2, %c0_12] : memref<1x34x102xbf16, #tpu.memory_space<vmem>>, vector<1x32x102xbf16>
    %12 = vector.shape_cast %11 : vector<1x32x102xbf16> to vector<32x102xbf16>
    %c2_13 = arith.constant 2 : index
    %c0_14 = arith.constant 0 : index
    %c0_15 = arith.constant 0 : index
    %13 = vector.load %arg2[%c2_13, %c0_14, %c0_15] : memref<3x102x256xbf16, #tpu.memory_space<vmem>>, vector<1x102x256xbf16>
    %14 = vector.shape_cast %13 : vector<1x102x256xbf16> to vector<102x256xbf16>
    %cst_16 = arith.constant dense<0.000000e+00> : vector<32x256xf32>
    %15 = tpu.matmul %12, %14, %cst_16 {dimension_numbers = #tpu.dot_dimension_numbers<[1], [0], [0], [1], [0, 0, 1, 1], [], []>} : vector<32x102xbf16>, vector<102x256xbf16>, vector<32x256xf32> -> vector<32x256xf32>
    %16 = arith.addf %10, %15 : vector<32x256xf32>
    %cst_17 = arith.constant dense<0.000000e+00> : vector<256xf32>
    %17 = vector.multi_reduction <add>, %16, %cst_17 [0] : vector<32x256xf32> to vector<256xf32>
    %18 = vector.shape_cast %17 : vector<256xf32> to vector<1x256xf32>
    %19 = arith.mulf %16, %16 : vector<32x256xf32>
    %cst_18 = arith.constant dense<0.000000e+00> : vector<256xf32>
    %20 = vector.multi_reduction <add>, %19, %cst_18 [0] : vector<32x256xf32> to vector<256xf32>
    %21 = vector.shape_cast %20 : vector<256xf32> to vector<1x256xf32>
    %22 = tpu.concatenate %18, %21 in 0 : vector<1x256xf32>, vector<1x256xf32> -> vector<2x256xf32>
    %c0_19 = arith.constant 0 : index
    %c0_20 = arith.constant 0 : index
    %c0_21 = arith.constant 0 : index
    %23 = vector.load %arg3[%c0_19, %c0_20, %c0_21] : memref<1x2x256xf32, #tpu.memory_space<vmem>>, vector<1x2x256xf32>
    %24 = vector.shape_cast %23 : vector<1x2x256xf32> to vector<2x256xf32>
    %25 = vector.shape_cast %22 : vector<2x256xf32> to vector<1x2x256xf32>
    tpu.vector_store %arg3[%c0_19, %c0_20, %c0_21], %25 {strides = array<i32>} : memref<1x2x256xf32, #tpu.memory_space<vmem>>, vector<1x2x256xf32>,
    return
  }
  func.func @transform_0(%arg0: i32) -> (i32, i32, i32) {
    %c0_i32 = arith.constant 0 : i32
    %c0_i32_0 = arith.constant 0 : i32
    %c0_i32_1 = arith.constant 0 : i32
    return %arg0, %c0_i32, %c0_i32_0 : i32, i32, i32
  }
  func.func @transform_1(%arg0: i32) -> (i32, i32, i32) {
    %c0_i32 = arith.constant 0 : i32
    %c0_i32_0 = arith.constant 0 : i32
    %c0_i32_1 = arith.constant 0 : i32
    %c0_i32_2 = arith.constant 0 : i32
    return %c0_i32, %c0_i32_0, %c0_i32_1 : i32, i32, i32
  }
  func.func @transform_2(%arg0: i32) -> (i32, i32, i32) {
    %c0_i32 = arith.constant 0 : i32
    %c0_i32_0 = arith.constant 0 : i32
    %c0_i32_1 = arith.constant 0 : i32
    return %arg0, %c0_i32, %c0_i32_0 : i32, i32, i32
  }
}

module attributes {stable_mosaic.version = 11 : i64} {
  func.func @_conv_apply_kernel(%arg0: i32, %arg1: memref<1x34x102xbf16, #tpu.memory_space<vmem>>, %arg2: memref<3x102x256xbf16, #tpu.memory_space<vmem>>, %arg3: memref<1x256xf32, #tpu.memory_space<vmem>>, %arg4: memref<1x256xf32, #tpu.memory_space<vmem>>, %arg5: memref<16x31xbf16, #tpu.memory_space<vmem>>, %arg6: memref<248x144xbf16, #tpu.memory_space<vmem>>, %arg7: memref<1x18x144xbf16, #tpu.memory_space<vmem>>) attributes {dimension_semantics = [#tpu.dimension_semantics<parallel>], iteration_bounds = array<i64: 2>, scalar_prefetch = 0 : i64, scratch_operands = 0 : i64, tpu.core_type = #tpu.core_type<tc>, window_params = [{transform_indices = @transform_0, window_bounds = array<i64: 1, 34, 102>}, {pipeline_mode = #tpu.pipeline_mode<synchronous>, transform_indices = @transform_1, window_bounds = array<i64: 3, 102, 256>}, {pipeline_mode = #tpu.pipeline_mode<synchronous>, transform_indices = @transform_2, window_bounds = array<i64: 1, 256>}, {pipeline_mode = #tpu.pipeline_mode<synchronous>, transform_indices = @transform_3, window_bounds = array<i64: 1, 256>}, {pipeline_mode = #tpu.pipeline_mode<synchronous>, transform_indices = @transform_4, window_bounds = array<i64: 16, 31>}, {pipeline_mode = #tpu.pipeline_mode<synchronous>, transform_indices = @transform_5, window_bounds = array<i64: 248, 144>}, {transform_indices = @transform_6, window_bounds = array<i64: 1, 18, 144>}]} {
    %c0 = arith.constant 0 : index
    %c0_0 = arith.constant 0 : index
    %c0_1 = arith.constant 0 : index
    %0 = vector.load %arg1[%c0, %c0_0, %c0_1] : memref<1x34x102xbf16, #tpu.memory_space<vmem>>, vector<1x32x102xbf16>
    %1 = vector.shape_cast %0 : vector<1x32x102xbf16> to vector<32x102xbf16>
    %c0_2 = arith.constant 0 : index
    %c0_3 = arith.constant 0 : index
    %c0_4 = arith.constant 0 : index
    %2 = vector.load %arg2[%c0_2, %c0_3, %c0_4] : memref<3x102x256xbf16, #tpu.memory_space<vmem>>, vector<1x102x256xbf16>
    %3 = vector.shape_cast %2 : vector<1x102x256xbf16> to vector<102x256xbf16>
    %cst = arith.constant dense<0.000000e+00> : vector<32x256xf32>
    %4 = tpu.matmul %1, %3, %cst {dimension_numbers = #tpu.dot_dimension_numbers<[1], [0], [0], [1], [0, 0, 1, 1], [], []>} : vector<32x102xbf16>, vector<102x256xbf16>, vector<32x256xf32> -> vector<32x256xf32>
    %c0_5 = arith.constant 0 : index
    %c1 = arith.constant 1 : index
    %c0_6 = arith.constant 0 : index
    %5 = vector.load %arg1[%c0_5, %c1, %c0_6] : memref<1x34x102xbf16, #tpu.memory_space<vmem>>, vector<1x32x102xbf16>
    %6 = vector.shape_cast %5 : vector<1x32x102xbf16> to vector<32x102xbf16>
    %c1_7 = arith.constant 1 : index
    %c0_8 = arith.constant 0 : index
    %c0_9 = arith.constant 0 : index
    %7 = vector.load %arg2[%c1_7, %c0_8, %c0_9] : memref<3x102x256xbf16, #tpu.memory_space<vmem>>, vector<1x102x256xbf16>
    %8 = vector.shape_cast %7 : vector<1x102x256xbf16> to vector<102x256xbf16>
    %cst_10 = arith.constant dense<0.000000e+00> : vector<32x256xf32>
    %9 = tpu.matmul %6, %8, %cst_10 {dimension_numbers = #tpu.dot_dimension_numbers<[1], [0], [0], [1], [0, 0, 1, 1], [], []>} : vector<32x102xbf16>, vector<102x256xbf16>, vector<32x256xf32> -> vector<32x256xf32>
    %10 = arith.addf %4, %9 : vector<32x256xf32>
    %c0_11 = arith.constant 0 : index
    %c2 = arith.constant 2 : index
    %c0_12 = arith.constant 0 : index
    %11 = vector.load %arg1[%c0_11, %c2, %c0_12] : memref<1x34x102xbf16, #tpu.memory_space<vmem>>, vector<1x32x102xbf16>
    %12 = vector.shape_cast %11 : vector<1x32x102xbf16> to vector<32x102xbf16>
    %c2_13 = arith.constant 2 : index
    %c0_14 = arith.constant 0 : index
    %c0_15 = arith.constant 0 : index
    %13 = vector.load %arg2[%c2_13, %c0_14, %c0_15] : memref<3x102x256xbf16, #tpu.memory_space<vmem>>, vector<1x102x256xbf16>
    %14 = vector.shape_cast %13 : vector<1x102x256xbf16> to vector<102x256xbf16>
    %cst_16 = arith.constant dense<0.000000e+00> : vector<32x256xf32>
    %15 = tpu.matmul %12, %14, %cst_16 {dimension_numbers = #tpu.dot_dimension_numbers<[1], [0], [0], [1], [0, 0, 1, 1], [], []>} : vector<32x102xbf16>, vector<102x256xbf16>, vector<32x256xf32> -> vector<32x256xf32>
    %16 = arith.addf %10, %15 : vector<32x256xf32>
    %c0_17 = arith.constant 0 : index
    %c0_18 = arith.constant 0 : index
    %17 = vector.load %arg3[%c0_17, %c0_18] : memref<1x256xf32, #tpu.memory_space<vmem>>, vector<1x256xf32>
    %18 = vector.broadcast %17 : vector<1x256xf32> to vector<32x256xf32>
    %19 = arith.mulf %16, %18 : vector<32x256xf32>
    %c0_19 = arith.constant 0 : index
    %c0_20 = arith.constant 0 : index
    %20 = vector.load %arg4[%c0_19, %c0_20] : memref<1x256xf32, #tpu.memory_space<vmem>>, vector<1x256xf32>
    %21 = vector.broadcast %20 : vector<1x256xf32> to vector<32x256xf32>
    %22 = arith.addf %19, %21 : vector<32x256xf32>
    %23 = math.tanh %22 : vector<32x256xf32>
    %24 = vector.extract_strided_slice %23 {offsets = [0, 0], sizes = [31, 256], strides = [1, 1]} : vector<32x256xf32> to vector<31x256xf32>
    %25 = vector.extract_strided_slice %23 {offsets = [1, 0], sizes = [31, 256], strides = [1, 1]} : vector<32x256xf32> to vector<31x256xf32>
    %26 = arith.maximumf %24, %25 : vector<31x256xf32>
    %27 = arith.truncf %26 : vector<31x256xf32> to vector<31x256xbf16>
    %c0_21 = arith.constant 0 : index
    %c0_22 = arith.constant 0 : index
    %28 = vector.load %arg5[%c0_21, %c0_22] : memref<16x31xbf16, #tpu.memory_space<vmem>>, vector<16x31xbf16>
    %cst_23 = arith.constant dense<0.000000e+00> : vector<16x256xf32>
    %29 = tpu.matmul %28, %27, %cst_23 {dimension_numbers = #tpu.dot_dimension_numbers<[1], [0], [0], [1], [0, 0, 1, 1], [], []>} : vector<16x31xbf16>, vector<31x256xbf16>, vector<16x256xf32> -> vector<16x256xf32>
    %30 = arith.truncf %29 : vector<16x256xf32> to vector<16x256xbf16>
    %31 = vector.extract_strided_slice %30 {offsets = [0, 0], sizes = [16, 248], strides = [1, 1]} : vector<16x256xbf16> to vector<16x248xbf16>
    %32 = vector.extract_strided_slice %30 {offsets = [0, 8], sizes = [16, 248], strides = [1, 1]} : vector<16x256xbf16> to vector<16x248xbf16>
    %33 = arith.maximumf %31, %32 : vector<16x248xbf16>
    %c0_24 = arith.constant 0 : index
    %c0_25 = arith.constant 0 : index
    %34 = vector.load %arg6[%c0_24, %c0_25] : memref<248x144xbf16, #tpu.memory_space<vmem>>, vector<248x144xbf16>
    %cst_26 = arith.constant dense<0.000000e+00> : vector<16x144xf32>
    %35 = tpu.matmul %33, %34, %cst_26 {dimension_numbers = #tpu.dot_dimension_numbers<[1], [0], [0], [1], [0, 0, 1, 1], [], []>} : vector<16x248xbf16>, vector<248x144xbf16>, vector<16x144xf32> -> vector<16x144xf32>
    %36 = vector.shape_cast %35 : vector<16x144xf32> to vector<1x16x144xf32>
    %37 = arith.truncf %36 : vector<1x16x144xf32> to vector<1x16x144xbf16>
    %c0_27 = arith.constant 0 : index
    %c1_28 = arith.constant 1 : index
    %c0_29 = arith.constant 0 : index
    %38 = vector.load %arg7[%c0_27, %c1_28, %c0_29] : memref<1x18x144xbf16, #tpu.memory_space<vmem>>, vector<1x16x144xbf16>
    tpu.vector_store %arg7[%c0_27, %c1_28, %c0_29], %37 {strides = array<i32>} : memref<1x18x144xbf16, #tpu.memory_space<vmem>>, vector<1x16x144xbf16>,
    %cst_30 = arith.constant 0.000000e+00 : bf16
    %39 = vector.broadcast %cst_30 : bf16 to vector<1x1x144xbf16>
    %c0_31 = arith.constant 0 : index
    %c0_32 = arith.constant 0 : index
    %c0_33 = arith.constant 0 : index
    %40 = vector.load %arg7[%c0_31, %c0_32, %c0_33] : memref<1x18x144xbf16, #tpu.memory_space<vmem>>, vector<1x1x144xbf16>
    tpu.vector_store %arg7[%c0_31, %c0_32, %c0_33], %39 {strides = array<i32>} : memref<1x18x144xbf16, #tpu.memory_space<vmem>>, vector<1x1x144xbf16>,
    %c0_34 = arith.constant 0 : index
    %c17 = arith.constant 17 : index
    %c0_35 = arith.constant 0 : index
    %41 = vector.load %arg7[%c0_34, %c17, %c0_35] : memref<1x18x144xbf16, #tpu.memory_space<vmem>>, vector<1x1x144xbf16>
    tpu.vector_store %arg7[%c0_34, %c17, %c0_35], %39 {strides = array<i32>} : memref<1x18x144xbf16, #tpu.memory_space<vmem>>, vector<1x1x144xbf16>,
    return
  }
  func.func @transform_0(%arg0: i32) -> (i32, i32, i32) {
    %c0_i32 = arith.constant 0 : i32
    %c0_i32_0 = arith.constant 0 : i32
    %c0_i32_1 = arith.constant 0 : i32
    return %arg0, %c0_i32, %c0_i32_0 : i32, i32, i32
  }
  func.func @transform_1(%arg0: i32) -> (i32, i32, i32) {
    %c0_i32 = arith.constant 0 : i32
    %c0_i32_0 = arith.constant 0 : i32
    %c0_i32_1 = arith.constant 0 : i32
    %c0_i32_2 = arith.constant 0 : i32
    return %c0_i32, %c0_i32_0, %c0_i32_1 : i32, i32, i32
  }
  func.func @transform_2(%arg0: i32) -> (i32, i32) {
    %c0_i32 = arith.constant 0 : i32
    %c0_i32_0 = arith.constant 0 : i32
    %c0_i32_1 = arith.constant 0 : i32
    return %c0_i32, %c0_i32_0 : i32, i32
  }
  func.func @transform_3(%arg0: i32) -> (i32, i32) {
    %c0_i32 = arith.constant 0 : i32
    %c0_i32_0 = arith.constant 0 : i32
    %c0_i32_1 = arith.constant 0 : i32
    return %c0_i32, %c0_i32_0 : i32, i32
  }
  func.func @transform_4(%arg0: i32) -> (i32, i32) {
    %c0_i32 = arith.constant 0 : i32
    %c0_i32_0 = arith.constant 0 : i32
    %c0_i32_1 = arith.constant 0 : i32
    return %c0_i32, %c0_i32_0 : i32, i32
  }
  func.func @transform_5(%arg0: i32) -> (i32, i32) {
    %c0_i32 = arith.constant 0 : i32
    %c0_i32_0 = arith.constant 0 : i32
    %c0_i32_1 = arith.constant 0 : i32
    return %c0_i32, %c0_i32_0 : i32, i32
  }
  func.func @transform_6(%arg0: i32) -> (i32, i32, i32) {
    %c0_i32 = arith.constant 0 : i32
    %c0_i32_0 = arith.constant 0 : i32
    %c0_i32_1 = arith.constant 0 : i32
    return %arg0, %c0_i32, %c0_i32_0 : i32, i32, i32
  }
}

module attributes {stable_mosaic.version = 11 : i64} {
  func.func @_conv_stats_kernel(%arg0: i32, %arg1: memref<1x18x144xbf16, #tpu.memory_space<vmem>>, %arg2: memref<3x144x64xbf16, #tpu.memory_space<vmem>>, %arg3: memref<1x2x64xf32, #tpu.memory_space<vmem>>) attributes {dimension_semantics = [#tpu.dimension_semantics<parallel>], iteration_bounds = array<i64: 2>, scalar_prefetch = 0 : i64, scratch_operands = 0 : i64, tpu.core_type = #tpu.core_type<tc>, window_params = [{transform_indices = @transform_0, window_bounds = array<i64: 1, 18, 144>}, {pipeline_mode = #tpu.pipeline_mode<synchronous>, transform_indices = @transform_1, window_bounds = array<i64: 3, 144, 64>}, {transform_indices = @transform_2, window_bounds = array<i64: 1, 2, 64>}]} {
    %c0 = arith.constant 0 : index
    %c0_0 = arith.constant 0 : index
    %c0_1 = arith.constant 0 : index
    %0 = vector.load %arg1[%c0, %c0_0, %c0_1] : memref<1x18x144xbf16, #tpu.memory_space<vmem>>, vector<1x16x144xbf16>
    %1 = vector.shape_cast %0 : vector<1x16x144xbf16> to vector<16x144xbf16>
    %c0_2 = arith.constant 0 : index
    %c0_3 = arith.constant 0 : index
    %c0_4 = arith.constant 0 : index
    %2 = vector.load %arg2[%c0_2, %c0_3, %c0_4] : memref<3x144x64xbf16, #tpu.memory_space<vmem>>, vector<1x144x64xbf16>
    %3 = vector.shape_cast %2 : vector<1x144x64xbf16> to vector<144x64xbf16>
    %cst = arith.constant dense<0.000000e+00> : vector<16x64xf32>
    %4 = tpu.matmul %1, %3, %cst {dimension_numbers = #tpu.dot_dimension_numbers<[1], [0], [0], [1], [0, 0, 1, 1], [], []>} : vector<16x144xbf16>, vector<144x64xbf16>, vector<16x64xf32> -> vector<16x64xf32>
    %c0_5 = arith.constant 0 : index
    %c1 = arith.constant 1 : index
    %c0_6 = arith.constant 0 : index
    %5 = vector.load %arg1[%c0_5, %c1, %c0_6] : memref<1x18x144xbf16, #tpu.memory_space<vmem>>, vector<1x16x144xbf16>
    %6 = vector.shape_cast %5 : vector<1x16x144xbf16> to vector<16x144xbf16>
    %c1_7 = arith.constant 1 : index
    %c0_8 = arith.constant 0 : index
    %c0_9 = arith.constant 0 : index
    %7 = vector.load %arg2[%c1_7, %c0_8, %c0_9] : memref<3x144x64xbf16, #tpu.memory_space<vmem>>, vector<1x144x64xbf16>
    %8 = vector.shape_cast %7 : vector<1x144x64xbf16> to vector<144x64xbf16>
    %cst_10 = arith.constant dense<0.000000e+00> : vector<16x64xf32>
    %9 = tpu.matmul %6, %8, %cst_10 {dimension_numbers = #tpu.dot_dimension_numbers<[1], [0], [0], [1], [0, 0, 1, 1], [], []>} : vector<16x144xbf16>, vector<144x64xbf16>, vector<16x64xf32> -> vector<16x64xf32>
    %10 = arith.addf %4, %9 : vector<16x64xf32>
    %c0_11 = arith.constant 0 : index
    %c2 = arith.constant 2 : index
    %c0_12 = arith.constant 0 : index
    %11 = vector.load %arg1[%c0_11, %c2, %c0_12] : memref<1x18x144xbf16, #tpu.memory_space<vmem>>, vector<1x16x144xbf16>
    %12 = vector.shape_cast %11 : vector<1x16x144xbf16> to vector<16x144xbf16>
    %c2_13 = arith.constant 2 : index
    %c0_14 = arith.constant 0 : index
    %c0_15 = arith.constant 0 : index
    %13 = vector.load %arg2[%c2_13, %c0_14, %c0_15] : memref<3x144x64xbf16, #tpu.memory_space<vmem>>, vector<1x144x64xbf16>
    %14 = vector.shape_cast %13 : vector<1x144x64xbf16> to vector<144x64xbf16>
    %cst_16 = arith.constant dense<0.000000e+00> : vector<16x64xf32>
    %15 = tpu.matmul %12, %14, %cst_16 {dimension_numbers = #tpu.dot_dimension_numbers<[1], [0], [0], [1], [0, 0, 1, 1], [], []>} : vector<16x144xbf16>, vector<144x64xbf16>, vector<16x64xf32> -> vector<16x64xf32>
    %16 = arith.addf %10, %15 : vector<16x64xf32>
    %cst_17 = arith.constant dense<0.000000e+00> : vector<64xf32>
    %17 = vector.multi_reduction <add>, %16, %cst_17 [0] : vector<16x64xf32> to vector<64xf32>
    %18 = vector.shape_cast %17 : vector<64xf32> to vector<1x64xf32>
    %19 = arith.mulf %16, %16 : vector<16x64xf32>
    %cst_18 = arith.constant dense<0.000000e+00> : vector<64xf32>
    %20 = vector.multi_reduction <add>, %19, %cst_18 [0] : vector<16x64xf32> to vector<64xf32>
    %21 = vector.shape_cast %20 : vector<64xf32> to vector<1x64xf32>
    %22 = tpu.concatenate %18, %21 in 0 : vector<1x64xf32>, vector<1x64xf32> -> vector<2x64xf32>
    %c0_19 = arith.constant 0 : index
    %c0_20 = arith.constant 0 : index
    %c0_21 = arith.constant 0 : index
    %23 = vector.load %arg3[%c0_19, %c0_20, %c0_21] : memref<1x2x64xf32, #tpu.memory_space<vmem>>, vector<1x2x64xf32>
    %24 = vector.shape_cast %23 : vector<1x2x64xf32> to vector<2x64xf32>
    %25 = vector.shape_cast %22 : vector<2x64xf32> to vector<1x2x64xf32>
    tpu.vector_store %arg3[%c0_19, %c0_20, %c0_21], %25 {strides = array<i32>} : memref<1x2x64xf32, #tpu.memory_space<vmem>>, vector<1x2x64xf32>,
    return
  }
  func.func @transform_0(%arg0: i32) -> (i32, i32, i32) {
    %c0_i32 = arith.constant 0 : i32
    %c0_i32_0 = arith.constant 0 : i32
    %c0_i32_1 = arith.constant 0 : i32
    return %arg0, %c0_i32, %c0_i32_0 : i32, i32, i32
  }
  func.func @transform_1(%arg0: i32) -> (i32, i32, i32) {
    %c0_i32 = arith.constant 0 : i32
    %c0_i32_0 = arith.constant 0 : i32
    %c0_i32_1 = arith.constant 0 : i32
    %c0_i32_2 = arith.constant 0 : i32
    return %c0_i32, %c0_i32_0, %c0_i32_1 : i32, i32, i32
  }
  func.func @transform_2(%arg0: i32) -> (i32, i32, i32) {
    %c0_i32 = arith.constant 0 : i32
    %c0_i32_0 = arith.constant 0 : i32
    %c0_i32_1 = arith.constant 0 : i32
    return %arg0, %c0_i32, %c0_i32_0 : i32, i32, i32
  }
}

module attributes {stable_mosaic.version = 11 : i64} {
  func.func @_conv_apply_kernel(%arg0: i32, %arg1: memref<1x18x144xbf16, #tpu.memory_space<vmem>>, %arg2: memref<3x144x64xbf16, #tpu.memory_space<vmem>>, %arg3: memref<1x64xf32, #tpu.memory_space<vmem>>, %arg4: memref<1x64xf32, #tpu.memory_space<vmem>>, %arg5: memref<8x15xbf16, #tpu.memory_space<vmem>>, %arg6: memref<60x32xbf16, #tpu.memory_space<vmem>>, %arg7: memref<1x8x32xbf16, #tpu.memory_space<vmem>>) attributes {dimension_semantics = [#tpu.dimension_semantics<parallel>], iteration_bounds = array<i64: 2>, scalar_prefetch = 0 : i64, scratch_operands = 0 : i64, tpu.core_type = #tpu.core_type<tc>, window_params = [{transform_indices = @transform_0, window_bounds = array<i64: 1, 18, 144>}, {pipeline_mode = #tpu.pipeline_mode<synchronous>, transform_indices = @transform_1, window_bounds = array<i64: 3, 144, 64>}, {pipeline_mode = #tpu.pipeline_mode<synchronous>, transform_indices = @transform_2, window_bounds = array<i64: 1, 64>}, {pipeline_mode = #tpu.pipeline_mode<synchronous>, transform_indices = @transform_3, window_bounds = array<i64: 1, 64>}, {pipeline_mode = #tpu.pipeline_mode<synchronous>, transform_indices = @transform_4, window_bounds = array<i64: 8, 15>}, {pipeline_mode = #tpu.pipeline_mode<synchronous>, transform_indices = @transform_5, window_bounds = array<i64: 60, 32>}, {transform_indices = @transform_6, window_bounds = array<i64: 1, 8, 32>}]} {
    %c0 = arith.constant 0 : index
    %c0_0 = arith.constant 0 : index
    %c0_1 = arith.constant 0 : index
    %0 = vector.load %arg1[%c0, %c0_0, %c0_1] : memref<1x18x144xbf16, #tpu.memory_space<vmem>>, vector<1x16x144xbf16>
    %1 = vector.shape_cast %0 : vector<1x16x144xbf16> to vector<16x144xbf16>
    %c0_2 = arith.constant 0 : index
    %c0_3 = arith.constant 0 : index
    %c0_4 = arith.constant 0 : index
    %2 = vector.load %arg2[%c0_2, %c0_3, %c0_4] : memref<3x144x64xbf16, #tpu.memory_space<vmem>>, vector<1x144x64xbf16>
    %3 = vector.shape_cast %2 : vector<1x144x64xbf16> to vector<144x64xbf16>
    %cst = arith.constant dense<0.000000e+00> : vector<16x64xf32>
    %4 = tpu.matmul %1, %3, %cst {dimension_numbers = #tpu.dot_dimension_numbers<[1], [0], [0], [1], [0, 0, 1, 1], [], []>} : vector<16x144xbf16>, vector<144x64xbf16>, vector<16x64xf32> -> vector<16x64xf32>
    %c0_5 = arith.constant 0 : index
    %c1 = arith.constant 1 : index
    %c0_6 = arith.constant 0 : index
    %5 = vector.load %arg1[%c0_5, %c1, %c0_6] : memref<1x18x144xbf16, #tpu.memory_space<vmem>>, vector<1x16x144xbf16>
    %6 = vector.shape_cast %5 : vector<1x16x144xbf16> to vector<16x144xbf16>
    %c1_7 = arith.constant 1 : index
    %c0_8 = arith.constant 0 : index
    %c0_9 = arith.constant 0 : index
    %7 = vector.load %arg2[%c1_7, %c0_8, %c0_9] : memref<3x144x64xbf16, #tpu.memory_space<vmem>>, vector<1x144x64xbf16>
    %8 = vector.shape_cast %7 : vector<1x144x64xbf16> to vector<144x64xbf16>
    %cst_10 = arith.constant dense<0.000000e+00> : vector<16x64xf32>
    %9 = tpu.matmul %6, %8, %cst_10 {dimension_numbers = #tpu.dot_dimension_numbers<[1], [0], [0], [1], [0, 0, 1, 1], [], []>} : vector<16x144xbf16>, vector<144x64xbf16>, vector<16x64xf32> -> vector<16x64xf32>
    %10 = arith.addf %4, %9 : vector<16x64xf32>
    %c0_11 = arith.constant 0 : index
    %c2 = arith.constant 2 : index
    %c0_12 = arith.constant 0 : index
    %11 = vector.load %arg1[%c0_11, %c2, %c0_12] : memref<1x18x144xbf16, #tpu.memory_space<vmem>>, vector<1x16x144xbf16>
    %12 = vector.shape_cast %11 : vector<1x16x144xbf16> to vector<16x144xbf16>
    %c2_13 = arith.constant 2 : index
    %c0_14 = arith.constant 0 : index
    %c0_15 = arith.constant 0 : index
    %13 = vector.load %arg2[%c2_13, %c0_14, %c0_15] : memref<3x144x64xbf16, #tpu.memory_space<vmem>>, vector<1x144x64xbf16>
    %14 = vector.shape_cast %13 : vector<1x144x64xbf16> to vector<144x64xbf16>
    %cst_16 = arith.constant dense<0.000000e+00> : vector<16x64xf32>
    %15 = tpu.matmul %12, %14, %cst_16 {dimension_numbers = #tpu.dot_dimension_numbers<[1], [0], [0], [1], [0, 0, 1, 1], [], []>} : vector<16x144xbf16>, vector<144x64xbf16>, vector<16x64xf32> -> vector<16x64xf32>
    %16 = arith.addf %10, %15 : vector<16x64xf32>
    %c0_17 = arith.constant 0 : index
    %c0_18 = arith.constant 0 : index
    %17 = vector.load %arg3[%c0_17, %c0_18] : memref<1x64xf32, #tpu.memory_space<vmem>>, vector<1x64xf32>
    %18 = vector.broadcast %17 : vector<1x64xf32> to vector<16x64xf32>
    %19 = arith.mulf %16, %18 : vector<16x64xf32>
    %c0_19 = arith.constant 0 : index
    %c0_20 = arith.constant 0 : index
    %20 = vector.load %arg4[%c0_19, %c0_20] : memref<1x64xf32, #tpu.memory_space<vmem>>, vector<1x64xf32>
    %21 = vector.broadcast %20 : vector<1x64xf32> to vector<16x64xf32>
    %22 = arith.addf %19, %21 : vector<16x64xf32>
    %23 = math.tanh %22 : vector<16x64xf32>
    %24 = vector.extract_strided_slice %23 {offsets = [0, 0], sizes = [15, 64], strides = [1, 1]} : vector<16x64xf32> to vector<15x64xf32>
    %25 = vector.extract_strided_slice %23 {offsets = [1, 0], sizes = [15, 64], strides = [1, 1]} : vector<16x64xf32> to vector<15x64xf32>
    %26 = arith.maximumf %24, %25 : vector<15x64xf32>
    %27 = arith.truncf %26 : vector<15x64xf32> to vector<15x64xbf16>
    %c0_21 = arith.constant 0 : index
    %c0_22 = arith.constant 0 : index
    %28 = vector.load %arg5[%c0_21, %c0_22] : memref<8x15xbf16, #tpu.memory_space<vmem>>, vector<8x15xbf16>
    %cst_23 = arith.constant dense<0.000000e+00> : vector<8x64xf32>
    %29 = tpu.matmul %28, %27, %cst_23 {dimension_numbers = #tpu.dot_dimension_numbers<[1], [0], [0], [1], [0, 0, 1, 1], [], []>} : vector<8x15xbf16>, vector<15x64xbf16>, vector<8x64xf32> -> vector<8x64xf32>
    %30 = arith.truncf %29 : vector<8x64xf32> to vector<8x64xbf16>
    %31 = vector.extract_strided_slice %30 {offsets = [0, 0], sizes = [8, 60], strides = [1, 1]} : vector<8x64xbf16> to vector<8x60xbf16>
    %32 = vector.extract_strided_slice %30 {offsets = [0, 4], sizes = [8, 60], strides = [1, 1]} : vector<8x64xbf16> to vector<8x60xbf16>
    %33 = arith.maximumf %31, %32 : vector<8x60xbf16>
    %c0_24 = arith.constant 0 : index
    %c0_25 = arith.constant 0 : index
    %34 = vector.load %arg6[%c0_24, %c0_25] : memref<60x32xbf16, #tpu.memory_space<vmem>>, vector<60x32xbf16>
    %cst_26 = arith.constant dense<0.000000e+00> : vector<8x32xf32>
    %35 = tpu.matmul %33, %34, %cst_26 {dimension_numbers = #tpu.dot_dimension_numbers<[1], [0], [0], [1], [0, 0, 1, 1], [], []>} : vector<8x60xbf16>, vector<60x32xbf16>, vector<8x32xf32> -> vector<8x32xf32>
    %36 = vector.shape_cast %35 : vector<8x32xf32> to vector<1x8x32xf32>
    %37 = arith.truncf %36 : vector<1x8x32xf32> to vector<1x8x32xbf16>
    %c0_27 = arith.constant 0 : index
    %c0_28 = arith.constant 0 : index
    %c0_29 = arith.constant 0 : index
    %38 = vector.load %arg7[%c0_27, %c0_28, %c0_29] : memref<1x8x32xbf16, #tpu.memory_space<vmem>>, vector<1x8x32xbf16>
    tpu.vector_store %arg7[%c0_27, %c0_28, %c0_29], %37 {strides = array<i32>} : memref<1x8x32xbf16, #tpu.memory_space<vmem>>, vector<1x8x32xbf16>,
    return
  }
  func.func @transform_0(%arg0: i32) -> (i32, i32, i32) {
    %c0_i32 = arith.constant 0 : i32
    %c0_i32_0 = arith.constant 0 : i32
    %c0_i32_1 = arith.constant 0 : i32
    return %arg0, %c0_i32, %c0_i32_0 : i32, i32, i32
  }
  func.func @transform_1(%arg0: i32) -> (i32, i32, i32) {
    %c0_i32 = arith.constant 0 : i32
    %c0_i32_0 = arith.constant 0 : i32
    %c0_i32_1 = arith.constant 0 : i32
    %c0_i32_2 = arith.constant 0 : i32
    return %c0_i32, %c0_i32_0, %c0_i32_1 : i32, i32, i32
  }
  func.func @transform_2(%arg0: i32) -> (i32, i32) {
    %c0_i32 = arith.constant 0 : i32
    %c0_i32_0 = arith.constant 0 : i32
    %c0_i32_1 = arith.constant 0 : i32
    return %c0_i32, %c0_i32_0 : i32, i32
  }
  func.func @transform_3(%arg0: i32) -> (i32, i32) {
    %c0_i32 = arith.constant 0 : i32
    %c0_i32_0 = arith.constant 0 : i32
    %c0_i32_1 = arith.constant 0 : i32
    return %c0_i32, %c0_i32_0 : i32, i32
  }
  func.func @transform_4(%arg0: i32) -> (i32, i32) {
    %c0_i32 = arith.constant 0 : i32
    %c0_i32_0 = arith.constant 0 : i32
    %c0_i32_1 = arith.constant 0 : i32
    return %c0_i32, %c0_i32_0 : i32, i32
  }
  func.func @transform_5(%arg0: i32) -> (i32, i32) {
    %c0_i32 = arith.constant 0 : i32
    %c0_i32_0 = arith.constant 0 : i32
    %c0_i32_1 = arith.constant 0 : i32
    return %c0_i32, %c0_i32_0 : i32, i32
  }
  func.func @transform_6(%arg0: i32) -> (i32, i32, i32) {
    %c0_i32 = arith.constant 0 : i32
    %c0_i32_0 = arith.constant 0 : i32
    %c0_i32_1 = arith.constant 0 : i32
    return %arg0, %c0_i32, %c0_i32_0 : i32, i32, i32
  }
}

module attributes {stable_mosaic.version = 11 : i64} {
  func.func @_mlp_kernel(%arg0: i32, %arg1: memref<2x256xbf16, #tpu.memory_space<vmem>>, %arg2: memref<256x32xbf16, #tpu.memory_space<vmem>>, %arg3: memref<1x32xf32, #tpu.memory_space<vmem>>, %arg4: memref<32x2xbf16, #tpu.memory_space<vmem>>, %arg5: memref<1x2xf32, #tpu.memory_space<vmem>>, %arg6: memref<2x2xf32, #tpu.memory_space<vmem>>) attributes {dimension_semantics = [#tpu.dimension_semantics<parallel>], iteration_bounds = array<i64: 1>, scalar_prefetch = 0 : i64, scratch_operands = 0 : i64, tpu.core_type = #tpu.core_type<tc>, window_params = [{transform_indices = @transform_0, window_bounds = array<i64: 2, 256>}, {pipeline_mode = #tpu.pipeline_mode<synchronous>, transform_indices = @transform_1, window_bounds = array<i64: 256, 32>}, {pipeline_mode = #tpu.pipeline_mode<synchronous>, transform_indices = @transform_2, window_bounds = array<i64: 1, 32>}, {pipeline_mode = #tpu.pipeline_mode<synchronous>, transform_indices = @transform_3, window_bounds = array<i64: 32, 2>}, {pipeline_mode = #tpu.pipeline_mode<synchronous>, transform_indices = @transform_4, window_bounds = array<i64: 1, 2>}, {transform_indices = @transform_5, window_bounds = array<i64: 2, 2>}]} {
    %c0 = arith.constant 0 : index
    %c0_0 = arith.constant 0 : index
    %0 = vector.load %arg1[%c0, %c0_0] : memref<2x256xbf16, #tpu.memory_space<vmem>>, vector<2x256xbf16>
    %c0_1 = arith.constant 0 : index
    %c0_2 = arith.constant 0 : index
    %1 = vector.load %arg2[%c0_1, %c0_2] : memref<256x32xbf16, #tpu.memory_space<vmem>>, vector<256x32xbf16>
    %cst = arith.constant dense<0.000000e+00> : vector<2x32xf32>
    %2 = tpu.matmul %0, %1, %cst {dimension_numbers = #tpu.dot_dimension_numbers<[1], [0], [0], [1], [0, 0, 1, 1], [], []>} : vector<2x256xbf16>, vector<256x32xbf16>, vector<2x32xf32> -> vector<2x32xf32>
    %c0_3 = arith.constant 0 : index
    %c0_4 = arith.constant 0 : index
    %3 = vector.load %arg3[%c0_3, %c0_4] : memref<1x32xf32, #tpu.memory_space<vmem>>, vector<1x32xf32>
    %4 = vector.broadcast %3 : vector<1x32xf32> to vector<2x32xf32>
    %5 = arith.addf %2, %4 : vector<2x32xf32>
    %6 = math.tanh %5 : vector<2x32xf32>
    %7 = arith.truncf %6 : vector<2x32xf32> to vector<2x32xbf16>
    %c0_5 = arith.constant 0 : index
    %c0_6 = arith.constant 0 : index
    %8 = vector.load %arg4[%c0_5, %c0_6] : memref<32x2xbf16, #tpu.memory_space<vmem>>, vector<32x2xbf16>
    %cst_7 = arith.constant dense<0.000000e+00> : vector<2x2xf32>
    %9 = tpu.matmul %7, %8, %cst_7 {dimension_numbers = #tpu.dot_dimension_numbers<[1], [0], [0], [1], [0, 0, 1, 1], [], []>} : vector<2x32xbf16>, vector<32x2xbf16>, vector<2x2xf32> -> vector<2x2xf32>
    %c0_8 = arith.constant 0 : index
    %c0_9 = arith.constant 0 : index
    %10 = vector.load %arg5[%c0_8, %c0_9] : memref<1x2xf32, #tpu.memory_space<vmem>>, vector<1x2xf32>
    %11 = vector.broadcast %10 : vector<1x2xf32> to vector<2x2xf32>
    %12 = arith.addf %9, %11 : vector<2x2xf32>
    %c0_10 = arith.constant 0 : index
    %c0_11 = arith.constant 0 : index
    %13 = vector.load %arg6[%c0_10, %c0_11] : memref<2x2xf32, #tpu.memory_space<vmem>>, vector<2x2xf32>
    tpu.vector_store %arg6[%c0_10, %c0_11], %12 {strides = array<i32>} : memref<2x2xf32, #tpu.memory_space<vmem>>, vector<2x2xf32>,
    return
  }
  func.func @transform_0(%arg0: i32) -> (i32, i32) {
    %c0_i32 = arith.constant 0 : i32
    %c0_i32_0 = arith.constant 0 : i32
    return %arg0, %c0_i32 : i32, i32
  }
  func.func @transform_1(%arg0: i32) -> (i32, i32) {
    %c0_i32 = arith.constant 0 : i32
    %c0_i32_0 = arith.constant 0 : i32
    %c0_i32_1 = arith.constant 0 : i32
    return %c0_i32, %c0_i32_0 : i32, i32
  }
  func.func @transform_2(%arg0: i32) -> (i32, i32) {
    %c0_i32 = arith.constant 0 : i32
    %c0_i32_0 = arith.constant 0 : i32
    %c0_i32_1 = arith.constant 0 : i32
    return %c0_i32, %c0_i32_0 : i32, i32
  }
  func.func @transform_3(%arg0: i32) -> (i32, i32) {
    %c0_i32 = arith.constant 0 : i32
    %c0_i32_0 = arith.constant 0 : i32
    %c0_i32_1 = arith.constant 0 : i32
    return %c0_i32, %c0_i32_0 : i32, i32
  }
  func.func @transform_4(%arg0: i32) -> (i32, i32) {
    %c0_i32 = arith.constant 0 : i32
    %c0_i32_0 = arith.constant 0 : i32
    %c0_i32_1 = arith.constant 0 : i32
    return %c0_i32, %c0_i32_0 : i32, i32
  }
  func.func @transform_5(%arg0: i32) -> (i32, i32) {
    %c0_i32 = arith.constant 0 : i32
    %c0_i32_0 = arith.constant 0 : i32
    return %arg0, %c0_i32 : i32, i32
  }
}

</mosaic_0001>

<llo_original>
// kernel: tile.23
$region0: #{tile.23}
  #allocation0 [shape = 's32[1]{0}', space=sflag, size = 0x4, scoped, tag = 'scoped memory for tile.23']
  %s0 = inlined_call_operand.vmem [shape: f32[8], index: 0, kind: input, shape index: {}]
  %s1 = inlined_call_operand.vmem [shape: f32[32,8], index: 1, kind: output, shape index: {}]
  // Predicated region
  $region2: #{tile.23} parent=0 // pred_check
    _
  $region3: #{tile.23} parent=0 // pred_check_branch
    %3 = sbr.rel (0) target = $region5
  $region4: #{tile.23} parent=0 // pred_region
    _
  $region5: #{tile.23} parent=0 // pred_fallthru
    _
  %v4 = vld [vmem:[%s0] ss:$0 sm:$0xff]
  %5 = vst [vmem:[%s1] sm:$0xff] %v4
  %s6 = scalar_lea.vmem %s1, 8
  %7 = vst [vmem:[%s6] sm:$0xff] %v4
  %s8 = scalar_lea.vmem %s1, 16
  %9 = vst [vmem:[%s8] sm:$0xff] %v4
  %s10 = scalar_lea.vmem %s1, 24
  %11 = vst [vmem:[%s10] sm:$0xff] %v4

// kernel: tile.24
$region0: #{tile.24}
  %s0 = inlined_call_operand.vmem [shape: f32[32,8], index: 0, kind: input, shape index: {}]
  %s1 = inlined_call_operand.vmem [shape: f32[1,256], index: 1, kind: output, shape index: {}]
  $region1: #{tile.24} parent=0
    #allocation0 [shape = 'u8[8192]{0}', space=vmem, size = 0x2000, scoped, tag = 'scoped mem for output reshape']
    %s2 = smov 3
    %v3 = vld [vmem:[%s0] ss:$16 sm:%s2]
    %vm4 = vcmask 64512
    %5 = vst.msk [vmem:[#allocation0] ss:$8 sm:$0x3] %vm4, %v3
    %s6 = scalar_lea.vmem %s0, 15
    %s7 = smov 3
    %v8 = vld [vmem:[%s6] ss:$16 sm:%s7]
    %9 = vrot.lane.b32.xlu0 %v8, 120
    %v10 = vpop.permute.xlu0 %9
    %vm11 = vcmask 1048512
    %12 = vst.msk [vmem:[#allocation0] ss:$8 sm:$0x3] %vm11, %v10
    %s13 = scalar_lea.vmem %s0, 14
    %s14 = smov 3
    %v15 = vld [vmem:[%s13] ss:$16 sm:%s14]
    %16 = vrot.lane.b32.xlu0 %v15, 112
    %v17 = vpop.permute.xlu0 %16
    %vm18 = vcmask 982912
    %19 = vst.msk [vmem:[#allocation0] ss:$8 sm:$0x3] %vm18, %v17
    %s20 = scalar_lea.vmem %s0, 13
    %s21 = smov 3
    %v22 = vld [vmem:[%s20] ss:$16 sm:%s21]
    %23 = vrot.lane.b32.xlu0 %v22, 104
    %v24 = vpop.permute.xlu0 %23
    %vm25 = vcmask 917312
    %26 = vst.msk [vmem:[#allocation0] ss:$8 sm:$0x3] %vm25, %v24
    %s27 = scalar_lea.vmem %s0, 12
    %s28 = smov 3
    %v29 = vld [vmem:[%s27] ss:$16 sm:%s28]
    %30 = vrot.lane.b32.xlu0 %v29, 96
    %v31 = vpop.permute.xlu0 %30
    %vm32 = vcmask 851712
    %33 = vst.msk [vmem:[#allocation0] ss:$8 sm:$0x3] %vm32, %v31
    %s34 = scalar_lea.vmem %s0, 11
    %s35 = smov 3
    %v36 = vld [vmem:[%s34] ss:$16 sm:%s35]
    %37 = vrot.lane.b32.xlu0 %v36, 88
    %v38 = vpop.permute.xlu0 %37
    %vm39 = vcmask 786112
    %40 = vst.msk [vmem:[#allocation0] ss:$8 sm:$0x3] %vm39, %v38
    %s41 = scalar_lea.vmem %s0, 10
    %s42 = smov 3
    %v43 = vld [vmem:[%s41] ss:$16 sm:%s42]
    %44 = vrot.lane.b32.xlu0 %v43, 80
    %v45 = vpop.permute.xlu0 %44
    %vm46 = vcmask 720512
    %47 = vst.msk [vmem:[#allocation0] ss:$8 sm:$0x3] %vm46, %v45
    %s48 = scalar_lea.vmem %s0, 9
    %s49 = smov 3
    %v50 = vld [vmem:[%s48] ss:$16 sm:%s49]
    %51 = vrot.lane.b32.xlu0 %v50, 72
    %v52 = vpop.permute.xlu0 %51
    %vm53 = vcmask 654912
    %54 = vst.msk [vmem:[#allocation0] ss:$8 sm:$0x3] %vm53, %v52
    %s55 = scalar_lea.vmem %s0, 8
    %s56 = smov 3
    %v57 = vld [vmem:[%s55] ss:$16 sm:%s56]
    %58 = vrot.lane.b32.xlu0 %v57, 64
    %v59 = vpop.permute.xlu0 %58
    %vm60 = vcmask 589312
    %61 = vst.msk [vmem:[#allocation0] ss:$8 sm:$0x3] %vm60, %v59
    %s62 = scalar_lea.vmem %s0, 7
    %s63 = smov 3
    %v64 = vld [vmem:[%s62] ss:$16 sm:%s63]
    %65 = vrot.lane.b32.xlu0 %v64, 56
    %v66 = vpop.permute.xlu0 %65
    %vm67 = vcmask 523712
    %68 = vst.msk [vmem:[#allocation0] ss:$8 sm:$0x3] %vm67, %v66
    %s69 = scalar_lea.vmem %s0, 6
    %s70 = smov 3
    %v71 = vld [vmem:[%s69] ss:$16 sm:%s70]
    %72 = vrot.lane.b32.xlu0 %v71, 48
    %v73 = vpop.permute.xlu0 %72
    %vm74 = vcmask 458112
    %75 = vst.msk [vmem:[#allocation0] ss:$8 sm:$0x3] %vm74, %v73
    %s76 = scalar_lea.vmem %s0, 5
    %s77 = smov 3
    %v78 = vld [vmem:[%s76] ss:$16 sm:%s77]
    %79 = vrot.lane.b32.xlu0 %v78, 40
    %v80 = vpop.permute.xlu0 %79
    %vm81 = vcmask 392512
    %82 = vst.msk [vmem:[#allocation0] ss:$8 sm:$0x3] %vm81, %v80
    %s83 = scalar_lea.vmem %s0, 4
    %s84 = smov 3
    %v85 = vld [vmem:[%s83] ss:$16 sm:%s84]
    %86 = vrot.lane.b32.xlu0 %v85, 32
    %v87 = vpop.permute.xlu0 %86
    %vm88 = vcmask 326912
    %89 = vst.msk [vmem:[#allocation0] ss:$8 sm:$0x3] %vm88, %v87
    %s90 = scalar_lea.vmem %s0, 3
    %s91 = smov 3
    %v92 = vld [vmem:[%s90] ss:$16 sm:%s91]
    %93 = vrot.lane.b32.xlu0 %v92, 24
    %v94 = vpop.permute.xlu0 %93
    %vm95 = vcmask 261312
    %96 = vst.msk [vmem:[#allocation0] ss:$8 sm:$0x3] %vm95, %v94
    %s97 = scalar_lea.vmem %s0, 2
    %s98 = smov 3
    %v99 = vld [vmem:[%s97] ss:$16 sm:%s98]
    %100 = vrot.lane.b32.xlu0 %v99, 16
    %v101 = vpop.permute.xlu0 %100
    %vm102 = vcmask 195712
    %103 = vst.msk [vmem:[#allocation0] ss:$8 sm:$0x3] %vm102, %v101
    %s104 = scalar_lea.vmem %s0, 1
    %s105 = smov 3
    %v106 = vld [vmem:[%s104] ss:$16 sm:%s105]
    %107 = vrot.lane.b32.xlu0 %v106, 8
    %v108 = vpop.permute.xlu0 %107
    %vm109 = vcmask 130112
    %110 = vst.msk [vmem:[#allocation0] ss:$8 sm:$0x3] %vm109, %v108
    %s112 = sshll.u32 1, 1
    %s113 = ssub.s32 %s112, 1
    %v115 = vld [vmem:[#allocation0] sm:%s113]
    %s116 = sshll.u32 1, 1
    %s117 = ssub.s32 %s116, 1
    %118 = vst [vmem:[%s1] sm:%s117] %v115
    %s119 = scalar_lea.vmem [#allocation0], 8
    %v120 = vld [vmem:[%s119] sm:%s113]
    %s121 = sshll.u32 1, 1
    %s122 = ssub.s32 %s121, 1
    %s123 = scalar_lea.vmem %s1, 1
    %124 = vst [vmem:[%s123] sm:%s122] %v120

// kernel: net_batchnorm_forward.5
$region0: #{net_batchnorm_forward.5}
  #allocation0 [shape = 'u32[]', space=smem, size = 0x4, offset = 0x4, fixed_abs, tag = 'smem constant byte address 0x4 - core index']
  #allocation1 [shape = 'u32[144,128]{1,0:T(1,128)}', space=vmem, size = 0x12000, scoped, tag = 'internal scratch']
  %s0 = inlined_call_operand.vmem [shape: bf16[2,34,102], index: 0, kind: input, shape index: {}]
  %s1 = inlined_call_operand.vmem [shape: bf16[3,102,256], index: 1, kind: input, shape index: {}]
  %s2 = inlined_call_operand.vmem [shape: f32[2,2,256], index: 2, kind: output, shape index: {}]
  %s3 = sld [smem:[#allocation0]]
  $region41: #{net_batchnorm_forward.5} parent=0
    _
  %s5 = ssub.s32 1, %s3
  %s6 = scalar_select 0, %s5, %s3
  loop: start=0, step=1, limit=4
  $region2: #{net_batchnorm_forward.5} parent=0 // loop_pre_header
    _
  $region3: #{net_batchnorm_forward.5} parent=0 // loop_header
    %s8 = sphi 0, %s12
    %p9 = scmp.ge.s32.totalorder %s8, 4
    %s18 = sphi 0, %s20
    %s21 = sphi 0, %s18
    %s22 = sphi 0, %s21
    %s38 = sphi 0, %s22
    %s42 = sphi 0, %s42
    %s44 = sphi 0, %s42
    %s45 = sphi 0, %s44
    %s59 = sphi 0, %s45
    %s65 = sphi 0, %s67
    %s68 = sphi 0, %s65
    %s69 = sphi 0, %s68
    %s85 = sphi 0, %s69
  $region4: #{net_batchnorm_forward.5} parent=0 // loop_header_branch
    %11 = sbr.rel (%p9) target = $region8
  $region5: #{net_batchnorm_forward.5} parent=0 // loop_body
    %s13 = ssub.s32 %s8, 1
    %s14 = ssub.s32 %s8, 2
    %s15 = sadd.s32 %s8, 1
    %s16 = ssub.s32 %s8, %s15
    %p17 = scmp.eq.s32.totalorder %s16, 0
    %s19 = sadd.s32 %s18, 1
    %s20 = scalar_select %p17, %s18, %s19
    %p23 = pneg %p17
    %p24 = scmp.eq.s32.totalorder %s8, 1
    %p25 = por %p23, %p24
    %p26 = scmp.ne.s32.totalorder %s18, %s21
    %p27 = scmp.eq.s32.totalorder %s8, 0
    %p28 = por %p26, %p27
    %p29 = scmp.ne.s32.totalorder %s18, %s21
    %p30 = scmp.eq.s32.totalorder %s13, 1
    %p31 = por %p29, %p30
    %p32 = scmp.ne.s32.totalorder %s21, %s22
    %p33 = scmp.eq.s32.totalorder %s13, 0
    %p34 = por %p32, %p33
    %p35 = scmp.ne.s32.totalorder %s21, %s22
    %p36 = scmp.eq.s32.totalorder %s14, 1
    %p37 = por %p35, %p36
    %p39 = scmp.ne.s32.totalorder %s22, %s38
    %p40 = scmp.eq.s32.totalorder %s14, 0
    %p41 = por %p39, %p40
    %s43 = sadd.s32 %s42, 1
    %p46 = scmp.eq.s32.totalorder %s8, 1
    %p47 = scmp.ne.s32.totalorder %s42, %s44
    %p48 = scmp.eq.s32.totalorder %s8, 0
    %p49 = por %p47, %p48
    %p50 = scmp.ne.s32.totalorder %s42, %s44
    %p51 = scmp.eq.s32.totalorder %s13, 1
    %p52 = por %p50, %p51
    %p53 = scmp.ne.s32.totalorder %s44, %s45
    %p54 = scmp.eq.s32.totalorder %s13, 0
    %p55 = por %p53, %p54
    %p56 = scmp.ne.s32.totalorder %s44, %s45
    %p57 = scmp.eq.s32.totalorder %s14, 1
    %p58 = por %p56, %p57
    %p60 = scmp.ne.s32.totalorder %s45, %s59
    %p61 = scmp.eq.s32.totalorder %s14, 0
    %p62 = por %p60, %p61
    %s63 = ssub.s32 %s8, %s15
    %p64 = scmp.eq.s32.totalorder %s63, 0
    %s66 = sadd.s32 %s65, 1
    %s67 = scalar_select %p64, %s65, %s66
    %p70 = pneg %p64
    %p71 = scmp.eq.s32.totalorder %s8, 1
    %p72 = por %p70, %p71
    %p73 = scmp.ne.s32.totalorder %s65, %s68
    %p74 = scmp.eq.s32.totalorder %s8, 0
    %p75 = por %p73, %p74
    %p76 = scmp.ne.s32.totalorder %s65, %s68
    %p77 = scmp.eq.s32.totalorder %s13, 1
    %p78 = por %p76, %p77
    %p79 = scmp.ne.s32.totalorder %s68, %s69
    %p80 = scmp.eq.s32.totalorder %s13, 0
    %p81 = por %p79, %p80
    %p82 = scmp.ne.s32.totalorder %s68, %s69
    %p83 = scmp.eq.s32.totalorder %s14, 1
    %p84 = por %p82, %p83
    %p86 = scmp.ne.s32.totalorder %s69, %s85
    %p87 = scmp.eq.s32.totalorder %s14, 0
    %p88 = por %p86, %p87
    %p89 = scmp.le.s32.totalorder 1, %s8
    %p90 = scmp.lt.s32.totalorder %s8, 3
    %p91 = pnand %p89, %p90
    %p92 = pneg %p91
    // Predicated region
    $region9: #{net_batchnorm_forward.5} parent=5 // pred_check
      _
    $region10: #{net_batchnorm_forward.5} parent=5 // pred_check_branch
      %94 = sbr.rel (%p91) target = $region12
    $region11: #{net_batchnorm_forward.5} parent=5 // pred_region
      %s95 = ssub.s32 %s8, 1
      // Predicated region
      $region13: #{net_batchnorm_forward.5} parent=11 // pred_check
        %p96 = pneg %p55
      $region14: #{net_batchnorm_forward.5} parent=11 // pred_check_branch
        %98 = sbr.rel (%p96) target = $region16
      $region15: #{net_batchnorm_forward.5} parent=11 // pred_region
        _
      $region16: #{net_batchnorm_forward.5} parent=11 // pred_fallthru
        _
    $region12: #{net_batchnorm_forward.5} parent=5 // pred_fallthru
      _
    %p99 = scmp.lt.s32.totalorder %s8, 2
    // Predicated region
    $region17: #{net_batchnorm_forward.5} parent=5 // pred_check
      %p100 = pneg %p99
    $region18: #{net_batchnorm_forward.5} parent=5 // pred_check_branch
      %102 = sbr.rel (%p100) target = $region20
    $region19: #{net_batchnorm_forward.5} parent=5 // pred_region
      // Predicated region
      $region21: #{net_batchnorm_forward.5} parent=19 // pred_check
        %p103 = pneg %p28
      $region22: #{net_batchnorm_forward.5} parent=19 // pred_check_branch
        %105 = sbr.rel (%p103) target = $region24
      $region23: #{net_batchnorm_forward.5} parent=19 // pred_region
        %p106 = scmp.lt.s32.totalorder %s8, 1
        %s107 = scalar_select %p106, %s8, 1
        %s108 = smul.addr %s107, 5
        %s109 = smul.addr %s108, 4
        %s110 = scalar_lea.vmem %s0, %s109
      $region24: #{net_batchnorm_forward.5} parent=19 // pred_fallthru
        _
    $region20: #{net_batchnorm_forward.5} parent=5 // pred_fallthru
      _
    %p111 = scmp.le.s32.totalorder 1, %s8
    %p112 = scmp.lt.s32.totalorder %s8, 3
    %p113 = pnand %p111, %p112
    %p114 = pneg %p113
    // Predicated region
    $region25: #{net_batchnorm_forward.5} parent=5 // pred_check
      _
    $region26: #{net_batchnorm_forward.5} parent=5 // pred_check_branch
      %116 = sbr.rel (%p113) target = $region28
    $region27: #{net_batchnorm_forward.5} parent=5 // pred_region
      %s117 = ssub.s32 %s8, 1
      %p118 = scmp.lt.s32.totalorder %s13, 1
      %s119 = scalar_select %p118, %s13, 1
      %s120 = smul.addr %s119, 5
      %s121 = smul.addr %s120, 4
      %s122 = scalar_lea.vmem %s0, %s121
      %p123 = pneg %p34
      %p124 = pneg %p31
      %p125 = pneg %p55
      %p126 = pneg %p52
      %p127 = pneg %p81
      %p128 = pneg %p78
      %p129 = scmp.lt.s32.totalorder %s13, 1
      %s130 = scalar_select %p129, %s13, 1
      %s131 = smul.addr %s130, 2
      %s132 = smul.addr %s131, 2
      %s133 = scalar_lea.vmem %s2, %s132
      %p134 = scmp.lt.s32.totalorder %s13, 1
      %s135 = scalar_select %p134, %s13, 1
      %s136 = smul.addr %s135, 5
      %s137 = smul.addr %s136, 4
      %s138 = scalar_lea.vmem %s0, %s137
      %p139 = scmp.lt.s32.totalorder %s13, 1
      %s140 = scalar_select %p139, %s13, 1
      %s141 = smul.addr %s140, 2
      %s142 = smul.addr %s141, 2
      %s143 = scalar_lea.vmem %s2, %s142
      %v145 = vld [vmem:[%s138] sm:$0xf]
      %v146 = vld [vmem:[%s138 + $0x4] sm:$0xf]
      %v147 = vld [vmem:[%s138 + $0x8] sm:$0xf]
      %v148 = vld [vmem:[%s138 + $0xc] sm:$0xf]
      %v149 = vld [vmem:[%s1] sm:$0xff]
      %v150 = vld [vmem:[%s1 + $0x8] sm:$0xff]
      %v151 = vld [vmem:[%s1 + $0x10] sm:$0xff]
      %v152 = vld [vmem:[%s1 + $0x18] sm:$0xff]
      %v153 = vld [vmem:[%s1 + $0x20] sm:$0xff]
      %v154 = vld [vmem:[%s1 + $0x28] sm:$0xff]
      %v155 = vld [vmem:[%s1 + $0x30] sm:$0xff]
      %v156 = vld [vmem:[%s1 + $0x38] sm:$0xff]
      %v157 = vld [vmem:[%s1 + $0x40] sm:$0xff]
      %v158 = vld [vmem:[%s1 + $0x48] sm:$0xff]
      %v159 = vld [vmem:[%s1 + $0x50] sm:$0xff]
      %v160 = vld [vmem:[%s1 + $0x58] sm:$0xff]
      %v161 = vld [vmem:[%s1 + $0x60] sm:$0x77]
      %v162 = vld [vmem:[%s138 + $0x10] sm:$0x1]
      %s163 = scalar_lea.vmem %s1, 104
      %v164 = vld [vmem:[%s163] sm:$0xff]
      %v165 = vld [vmem:[%s163 + $0x8] sm:$0xff]
      %v166 = vld [vmem:[%s163 + $0x10] sm:$0xff]
      %v167 = vld [vmem:[%s163 + $0x18] sm:$0xff]
      %v168 = vld [vmem:[%s163 + $0x20] sm:$0xff]
      %v169 = vld [vmem:[%s163 + $0x28] sm:$0xff]
      %v170 = vld [vmem:[%s163 + $0x30] sm:$0xff]
      %v171 = vld [vmem:[%s163 + $0x38] sm:$0xff]
      %v172 = vld [vmem:[%s163 + $0x40] sm:$0xff]
      %v173 = vld [vmem:[%s163 + $0x48] sm:$0xff]
      %v174 = vld [vmem:[%s163 + $0x50] sm:$0xff]
      %v175 = vld [vmem:[%s163 + $0x58] sm:$0xff]
      %v176 = vld [vmem:[%s163 + $0x60] sm:$0x77]
      %v182 = vunpack.c.l.b16 %v145
      %v183 = vunpack.c.l.b16 %v146
      %v184 = vunpack.c.l.b16 %v147
      %v185 = vunpack.c.l.b16 %v148
      %v186 = vunpack.c.l.b16 %v162
      %v187 = vpack.c.b16 %v183, %v182
      %v188 = vpack.c.b16 %v185, %v184
      %v189 = vpack.c.b16 %v186, %v186
      %vm190 = vsmask.f32 7424
      %v192 = vshrl.u32 %v187, 16
      %v194 = vshll.u32 %v187, 16
      %v196 = vrot.slane %v194, 1
      %v197 = vor.u32 %v192, %v196
      %v199 = vshll.u32 %v188, 16
      %v201 = vrot.slane %v199, 1
      %v202 = vsel %vm190, %v197, %v201
      %v203 = vshrl.u32 %v188, 16
      %v205 = vor.u32 %v203, %v201
      %v207 = vshll.u32 %v189, 16
      %v209 = vrot.slane %v207, 1
      %v210 = vsel %vm190, %v205, %v209
      %v224 = vunpack.c.l.b16 %v164
      %v225 = vunpack.c.h.b16 %v164
      %v226 = vunpack.c.l.b16 %v165
      %v227 = vunpack.c.h.b16 %v165
      %v228 = vunpack.c.l.b16 %v166
      %v229 = vunpack.c.h.b16 %v166
      %v230 = vunpack.c.l.b16 %v167
      %v231 = vunpack.c.h.b16 %v167
      %v232 = vunpack.c.l.b16 %v168
      %v233 = vunpack.c.h.b16 %v168
      %v234 = vunpack.c.l.b16 %v169
      %v235 = vunpack.c.h.b16 %v169
      %v236 = vunpack.c.l.b16 %v170
      %v237 = vunpack.c.h.b16 %v170
      %v238 = vunpack.c.l.b16 %v171
      %v239 = vunpack.c.h.b16 %v171
      %v240 = vunpack.c.l.b16 %v172
      %v241 = vunpack.c.h.b16 %v172
      %v242 = vunpack.c.l.b16 %v173
      %v243 = vunpack.c.h.b16 %v173
      %v244 = vunpack.c.l.b16 %v174
      %v245 = vunpack.c.h.b16 %v174
      %v246 = vunpack.c.l.b16 %v175
      %v247 = vunpack.c.h.b16 %v175
      %v248 = vunpack.c.l.b16 %v176
      %v249 = vunpack.c.h.b16 %v176
      %v250 = vpack.c.b16 %v226, %v224
      %v251 = vpack.c.b16 %v227, %v225
      %v252 = vpack.c.b16 %v230, %v228
      %v253 = vpack.c.b16 %v231, %v229
      %v254 = vpack.c.b16 %v234, %v232
      %v255 = vpack.c.b16 %v235, %v233
      %v256 = vpack.c.b16 %v238, %v236
      %v257 = vpack.c.b16 %v239, %v237
      %v258 = vpack.c.b16 %v242, %v240
      %v259 = vpack.c.b16 %v243, %v241
      %v260 = vpack.c.b16 %v246, %v244
      %v261 = vpack.c.b16 %v247, %v245
      %v262 = vpack.c.b16 %v248, %v248
      %v263 = vpack.c.b16 %v249, %v249
      %vm276 = vcmask 834560
      %v278 = vsel %vm276, %v202, 0
      %v281 = vsel %vm276, %v210, 0
      %vm283 = vcmask 1042432
      %v285 = vsel %vm283, %v262, 0
      %v288 = vsel %vm283, %v263, 0
      %290 = vmatprep.subr.bf16.mxu0 0
      %291 = vmatpush1.bf16.msra.mxu0 0
      %292 = vmatprep.subr.bf16.mxu0 %v288
      %293 = vmatpush1.bf16.msra.mxu0 %v285
      %294 = vmatprep.subr.bf16.mxu0 %v261
      %295 = vmatpush1.bf16.msra.mxu0 %v260
      %296 = vmatprep.subr.bf16.mxu0 %v259
      %297 = vmatpush1.bf16.msra.mxu0 %v258
      %298 = vmatprep.subr.bf16.mxu0 %v257
      %299 = vmatpush1.bf16.msra.mxu0 %v256
      %300 = vmatprep.subr.bf16.mxu0 %v255
      %301 = vmatpush1.bf16.msra.mxu0 %v254
      %302 = vmatprep.subr.bf16.mxu0 %v253
      %303 = vmatpush1.bf16.msra.mxu0 %v252
      %304 = vmatprep.subr.bf16.mxu0 %v251
      %305 = vmatpush1.bf16.msra.mxu0 %v250
      %306 = vmatprep.subr.bf16.mxu0 0
      %307 = vmatpush2.bf16.msra.mxu0 0
      %308 = vmatprep.subr.bf16.mxu0 0
      %309 = vmatpush2.bf16.msra.mxu0 0
      %310 = vmatprep.subr.bf16.mxu0 0
      %311 = vmatpush2.bf16.msra.mxu0 0
      %312 = vmatprep.subr.bf16.mxu0 0
      %313 = vmatpush2.bf16.msra.mxu0 0
      %314 = vmatprep.subr.bf16.mxu0 0
      %315 = vmatpush2.bf16.msra.mxu0 0
      %316 = vmatprep.subr.bf16.mxu0 0
      %317 = vmatpush2.bf16.msra.mxu0 0
      %318 = vmatprep.subr.bf16.mxu0 0
      %319 = vmatpush2.bf16.msra.mxu0 0
      %320 = vmatprep.subr.bf16.mxu0 0
      %321 = vmatpush2.bf16.msra.mxu0 0
      %322 = vmatprep.mubr.bf16.mxu0 0
      %323 = vmatmul.mubr.bf16.gmra.mxu0 %v278
      %v324 = vpop.f32.mrf.mxu0
      %v325 = vadd.f32 0.0, %v324
      %v326 = vpop.f32.mrf.mxu0
      %v327 = vadd.f32 0.0, %v326
      %v328 = vpop.f32.mrf.mxu0
      %v329 = vadd.f32 0.0, %v328
      %v330 = vpop.f32.mrf.mxu0
      %v331 = vadd.f32 0.0, %v330
      %332 = vmatprep.mubr.bf16.mxu0 0
      %333 = vmatmul.mubr.bf16.gmra.mxu0 %v281
      %v334 = vpop.f32.mrf.mxu0
      %v335 = vadd.f32 0.0, %v334
      %v336 = vpop.f32.mrf.mxu0
      %v337 = vadd.f32 0.0, %v336
      %v338 = vpop.f32.mrf.mxu0
      %v339 = vadd.f32 0.0, %v338
      %v340 = vpop.f32.mrf.mxu0
      %v341 = vadd.f32 0.0, %v340
      %342 = vdwg.mxu0
      %v356 = vunpack.c.l.b16 %v149
      %v357 = vunpack.c.h.b16 %v149
      %v358 = vunpack.c.l.b16 %v150
      %v359 = vunpack.c.h.b16 %v150
      %v360 = vunpack.c.l.b16 %v151
      %v361 = vunpack.c.h.b16 %v151
      %v362 = vunpack.c.l.b16 %v152
      %v363 = vunpack.c.h.b16 %v152
      %v364 = vunpack.c.l.b16 %v153
      %v365 = vunpack.c.h.b16 %v153
      %v366 = vunpack.c.l.b16 %v154
      %v367 = vunpack.c.h.b16 %v154
      %v368 = vunpack.c.l.b16 %v155
      %v369 = vunpack.c.h.b16 %v155
      %v370 = vunpack.c.l.b16 %v156
      %v371 = vunpack.c.h.b16 %v156
      %v372 = vunpack.c.l.b16 %v157
      %v373 = vunpack.c.h.b16 %v157
      %v374 = vunpack.c.l.b16 %v158
      %v375 = vunpack.c.h.b16 %v158
      %v376 = vunpack.c.l.b16 %v159
      %v377 = vunpack.c.h.b16 %v159
      %v378 = vunpack.c.l.b16 %v160
      %v379 = vunpack.c.h.b16 %v160
      %v380 = vunpack.c.l.b16 %v161
      %v381 = vunpack.c.h.b16 %v161
      %v382 = vpack.c.b16 %v358, %v356
      %v383 = vpack.c.b16 %v359, %v357
      %v384 = vpack.c.b16 %v362, %v360
      %v385 = vpack.c.b16 %v363, %v361
      %v386 = vpack.c.b16 %v366, %v364
      %v387 = vpack.c.b16 %v367, %v365
      %v388 = vpack.c.b16 %v370, %v368
      %v389 = vpack.c.b16 %v371, %v369
      %v390 = vpack.c.b16 %v374, %v372
      %v391 = vpack.c.b16 %v375, %v373
      %v392 = vpack.c.b16 %v378, %v376
      %v393 = vpack.c.b16 %v379, %v377
      %v394 = vpack.c.b16 %v380, %v380
      %v395 = vpack.c.b16 %v381, %v381
      %v408 = vsel %vm276, %v187, 0
      %v410 = vsel %vm276, %v188, 0
      %v413 = vsel %vm283, %v394, 0
      %v416 = vsel %vm283, %v395, 0
      %418 = vmatprep.subr.bf16.mxu0 0
      %419 = vmatpush1.bf16.msra.mxu0 0
      %420 = vmatprep.subr.bf16.mxu0 %v416
      %421 = vmatpush1.bf16.msra.mxu0 %v413
      %422 = vmatprep.subr.bf16.mxu0 %v393
      %423 = vmatpush1.bf16.msra.mxu0 %v392
      %424 = vmatprep.subr.bf16.mxu0 %v391
      %425 = vmatpush1.bf16.msra.mxu0 %v390
      %426 = vmatprep.subr.bf16.mxu0 %v389
      %427 = vmatpush1.bf16.msra.mxu0 %v388
      %428 = vmatprep.subr.bf16.mxu0 %v387
      %429 = vmatpush1.bf16.msra.mxu0 %v386
      %430 = vmatprep.subr.bf16.mxu0 %v385
      %431 = vmatpush1.bf16.msra.mxu0 %v384
      %432 = vmatprep.subr.bf16.mxu0 %v383
      %433 = vmatpush1.bf16.msra.mxu0 %v382
      %434 = vmatprep.subr.bf16.mxu0 0
      %435 = vmatpush2.bf16.msra.mxu0 0
      %436 = vmatprep.subr.bf16.mxu0 0
      %437 = vmatpush2.bf16.msra.mxu0 0
      %438 = vmatprep.subr.bf16.mxu0 0
      %439 = vmatpush2.bf16.msra.mxu0 0
      %440 = vmatprep.subr.bf16.mxu0 0
      %441 = vmatpush2.bf16.msra.mxu0 0
      %442 = vmatprep.subr.bf16.mxu0 0
      %443 = vmatpush2.bf16.msra.mxu0 0
      %444 = vmatprep.subr.bf16.mxu0 0
      %445 = vmatpush2.bf16.msra.mxu0 0
      %446 = vmatprep.subr.bf16.mxu0 0
      %447 = vmatpush2.bf16.msra.mxu0 0
      %448 = vmatprep.subr.bf16.mxu0 0
      %449 = vmatpush2.bf16.msra.mxu0 0
      %450 = vmatprep.mubr.bf16.mxu0 0
      %451 = vmatmul.mubr.bf16.gmra.mxu0 %v408
      %v452 = vpop.f32.mrf.mxu0
      %v453 = vadd.f32 %v325, %v452
      %v454 = vpop.f32.mrf.mxu0
      %v455 = vadd.f32 %v327, %v454
      %v456 = vpop.f32.mrf.mxu0
      %v457 = vadd.f32 %v329, %v456
      %v458 = vpop.f32.mrf.mxu0
      %v459 = vadd.f32 %v331, %v458
      %460 = vmatprep.mubr.bf16.mxu0 0
      %461 = vmatmul.mubr.bf16.gmra.mxu0 %v410
      %v462 = vpop.f32.mrf.mxu0
      %v463 = vadd.f32 %v335, %v462
      %v464 = vpop.f32.mrf.mxu0
      %v465 = vadd.f32 %v337, %v464
      %v466 = vpop.f32.mrf.mxu0
      %v467 = vadd.f32 %v339, %v466
      %v468 = vpop.f32.mrf.mxu0
      %v469 = vadd.f32 %v341, %v468
      %470 = vdwg.mxu0
      %v471 = vld [vmem:[%s138] sm:$0xe]
      %s472 = scalar_lea.vmem %s1, 208
      %v473 = vld [vmem:[%s472] sm:$0xff]
      %v474 = vld [vmem:[%s472 + $0x8] sm:$0xff]
      %v475 = vld [vmem:[%s472 + $0x10] sm:$0xff]
      %v476 = vld [vmem:[%s472 + $0x18] sm:$0xff]
      %v477 = vld [vmem:[%s472 + $0x20] sm:$0xff]
      %v478 = vld [vmem:[%s472 + $0x28] sm:$0xff]
      %v479 = vld [vmem:[%s472 + $0x30] sm:$0xff]
      %v480 = vld [vmem:[%s472 + $0x38] sm:$0xff]
      %v481 = vld [vmem:[%s472 + $0x40] sm:$0xff]
      %v482 = vld [vmem:[%s472 + $0x48] sm:$0xff]
      %v483 = vld [vmem:[%s472 + $0x50] sm:$0xff]
      %v484 = vld [vmem:[%s472 + $0x58] sm:$0xff]
      %v485 = vld [vmem:[%s472 + $0x60] sm:$0x77]
      %v487 = vunpack.c.l.b16 %v471
      %v488 = vpack.c.b16 %v183, %v487
      %vm489 = vcmask 1046528
      %v490 = vrot.slane %v488, 1
      %v491 = vrot.slane %v188, 1
      %v492 = vsel %vm489, %v490, %v491
      %v493 = vrot.slane %v189, 1
      %v494 = vsel %vm489, %v491, %v493
      %v508 = vunpack.c.l.b16 %v473
      %v509 = vunpack.c.h.b16 %v473
      %v510 = vunpack.c.l.b16 %v474
      %v511 = vunpack.c.h.b16 %v474
      %v512 = vunpack.c.l.b16 %v475
      %v513 = vunpack.c.h.b16 %v475
      %v514 = vunpack.c.l.b16 %v476
      %v515 = vunpack.c.h.b16 %v476
      %v516 = vunpack.c.l.b16 %v477
      %v517 = vunpack.c.h.b16 %v477
      %v518 = vunpack.c.l.b16 %v478
      %v519 = vunpack.c.h.b16 %v478
      %v520 = vunpack.c.l.b16 %v479
      %v521 = vunpack.c.h.b16 %v479
      %v522 = vunpack.c.l.b16 %v480
      %v523 = vunpack.c.h.b16 %v480
      %v524 = vunpack.c.l.b16 %v481
      %v525 = vunpack.c.h.b16 %v481
      %v526 = vunpack.c.l.b16 %v482
      %v527 = vunpack.c.h.b16 %v482
      %v528 = vunpack.c.l.b16 %v483
      %v529 = vunpack.c.h.b16 %v483
      %v530 = vunpack.c.l.b16 %v484
      %v531 = vunpack.c.h.b16 %v484
      %v532 = vunpack.c.l.b16 %v485
      %v533 = vunpack.c.h.b16 %v485
      %v534 = vpack.c.b16 %v510, %v508
      %v535 = vpack.c.b16 %v511, %v509
      %v536 = vpack.c.b16 %v514, %v512
      %v537 = vpack.c.b16 %v515, %v513
      %v538 = vpack.c.b16 %v518, %v516
      %v539 = vpack.c.b16 %v519, %v517
      %v540 = vpack.c.b16 %v522, %v520
      %v541 = vpack.c.b16 %v523, %v521
      %v542 = vpack.c.b16 %v526, %v524
      %v543 = vpack.c.b16 %v527, %v525
      %v544 = vpack.c.b16 %v530, %v528
      %v545 = vpack.c.b16 %v531, %v529
      %v546 = vpack.c.b16 %v532, %v532
      %v547 = vpack.c.b16 %v533, %v533
      %v561 = vsel %vm276, %v492, 0
      %v564 = vsel %vm276, %v494, 0
      %v567 = vsel %vm283, %v546, 0
      %v570 = vsel %vm283, %v547, 0
      %572 = vmatprep.subr.bf16.mxu0 0
      %573 = vmatpush1.bf16.msra.mxu0 0
      %574 = vmatprep.subr.bf16.mxu0 %v570
      %575 = vmatpush1.bf16.msra.mxu0 %v567
      %576 = vmatprep.subr.bf16.mxu0 %v545
      %577 = vmatpush1.bf16.msra.mxu0 %v544
      %578 = vmatprep.subr.bf16.mxu0 %v543
      %579 = vmatpush1.bf16.msra.mxu0 %v542
      %580 = vmatprep.subr.bf16.mxu0 %v541
      %581 = vmatpush1.bf16.msra.mxu0 %v540
      %582 = vmatprep.subr.bf16.mxu0 %v539
      %583 = vmatpush1.bf16.msra.mxu0 %v538
      %584 = vmatprep.subr.bf16.mxu0 %v537
      %585 = vmatpush1.bf16.msra.mxu0 %v536
      %586 = vmatprep.subr.bf16.mxu0 %v535
      %587 = vmatpush1.bf16.msra.mxu0 %v534
      %588 = vmatprep.subr.bf16.mxu0 0
      %589 = vmatpush2.bf16.msra.mxu0 0
      %590 = vmatprep.subr.bf16.mxu0 0
      %591 = vmatpush2.bf16.msra.mxu0 0
      %592 = vmatprep.subr.bf16.mxu0 0
      %593 = vmatpush2.bf16.msra.mxu0 0
      %594 = vmatprep.subr.bf16.mxu0 0
      %595 = vmatpush2.bf16.msra.mxu0 0
      %596 = vmatprep.subr.bf16.mxu0 0
      %597 = vmatpush2.bf16.msra.mxu0 0
      %598 = vmatprep.subr.bf16.mxu0 0
      %599 = vmatpush2.bf16.msra.mxu0 0
      %600 = vmatprep.subr.bf16.mxu0 0
      %601 = vmatpush2.bf16.msra.mxu0 0
      %602 = vmatprep.subr.bf16.mxu0 0
      %603 = vmatpush2.bf16.msra.mxu0 0
      %604 = vmatprep.mubr.bf16.mxu0 0
      %605 = vmatmul.mubr.bf16.gmra.mxu0 %v561
      %v606 = vpop.f32.mrf.mxu0
      %v607 = vadd.f32 0.0, %v606
      %v608 = vpop.f32.mrf.mxu0
      %v609 = vadd.f32 0.0, %v608
      %v610 = vpop.f32.mrf.mxu0
      %v611 = vadd.f32 0.0, %v610
      %v612 = vpop.f32.mrf.mxu0
      %v613 = vadd.f32 0.0, %v612
      %614 = vmatprep.mubr.bf16.mxu0 0
      %615 = vmatmul.mubr.bf16.gmra.mxu0 %v564
      %v616 = vpop.f32.mrf.mxu0
      %v617 = vadd.f32 0.0, %v616
      %v618 = vpop.f32.mrf.mxu0
      %v619 = vadd.f32 0.0, %v618
      %v620 = vpop.f32.mrf.mxu0
      %v621 = vadd.f32 0.0, %v620
      %v622 = vpop.f32.mrf.mxu0
      %v623 = vadd.f32 0.0, %v622
      %624 = vdwg.mxu0
      %v625 = vadd.f32 %v453, %v607
      %v626 = vadd.f32 %v455, %v609
      %v627 = vadd.f32 %v457, %v611
      %v628 = vadd.f32 %v459, %v613
      %v629 = vadd.f32 %v463, %v617
      %v630 = vadd.f32 %v465, %v619
      %v631 = vadd.f32 %v467, %v621
      %v632 = vadd.f32 %v469, %v623
      %v633 = vadd.f32 %v625, %v627
      %v634 = vadd.f32 %v633, %v629
      %v635 = vadd.f32 %v634, %v631
      %v636 = vrot.slane %v635, 4
      %v637 = vadd.f32 %v635, %v636
      %v638 = vrot.slane %v637, 2
      %v639 = vadd.f32 %v637, %v638
      %v640 = vrot.slane %v639, 1
      %v641 = vadd.f32 %v639, %v640
      %v642 = vadd.f32 %v626, %v628
      %v643 = vadd.f32 %v642, %v630
      %v644 = vadd.f32 %v643, %v632
      %v645 = vrot.slane %v644, 4
      %v646 = vadd.f32 %v644, %v645
      %v647 = vrot.slane %v646, 2
      %v648 = vadd.f32 %v646, %v647
      %v649 = vrot.slane %v648, 1
      %v650 = vadd.f32 %v648, %v649
      %v651 = vmul.f32 %v625, %v625
      %v652 = vmul.f32 %v626, %v626
      %v653 = vmul.f32 %v627, %v627
      %v654 = vmul.f32 %v628, %v628
      %v655 = vmul.f32 %v629, %v629
      %v656 = vmul.f32 %v630, %v630
      %v657 = vmul.f32 %v631, %v631
      %v658 = vmul.f32 %v632, %v632
      %v659 = vadd.f32 %v651, %v653
      %v660 = vadd.f32 %v659, %v655
      %v661 = vadd.f32 %v660, %v657
      %v662 = vrot.slane %v661, 4
      %v663 = vadd.f32 %v661, %v662
      %v664 = vrot.slane %v663, 2
      %v665 = vadd.f32 %v663, %v664
      %v666 = vrot.slane %v665, 1
      %v667 = vadd.f32 %v665, %v666
      %v668 = vadd.f32 %v652, %v654
      %v669 = vadd.f32 %v668, %v656
      %v670 = vadd.f32 %v669, %v658
      %v671 = vrot.slane %v670, 4
      %v672 = vadd.f32 %v670, %v671
      %v673 = vrot.slane %v672, 2
      %v674 = vadd.f32 %v672, %v673
      %v675 = vrot.slane %v674, 1
      %v676 = vadd.f32 %v674, %v675
      %vm677 = vcmask 1040384
      %v678 = vsel %vm677, %v641, %v667
      %v679 = vsel %vm677, %v650, %v676
      %v682 = vcombine.low %v678, %v679
      %v684 = vunpack.c.l.s4 1983009808
      %v685 = vunpack.c.0.s8 %v684
      %v686 = vlaneseq
      %v687 = vshrl.u32 %v686, 7
      %v688 = vsub.s32 %v685, %v687
      %v689 = vrot.slane %v682, %v688
      %691 = vst [vmem:[%s143] sm:$0xf] %v689
      %p692 = scmp.lt.s32.totalorder %s13, 1
      %s693 = scalar_select %p692, %s13, 1
      %s694 = smul.addr %s693, 2
      %s695 = smul.addr %s694, 2
      %s696 = scalar_lea.vmem %s2, %s695
      // Predicated region
      $region29: #{net_batchnorm_forward.5} parent=27 // pred_check
        %p697 = pneg %p78
      $region30: #{net_batchnorm_forward.5} parent=27 // pred_check_branch
        %699 = sbr.rel (%p697) target = $region32
      $region31: #{net_batchnorm_forward.5} parent=27 // pred_region
        _
      $region32: #{net_batchnorm_forward.5} parent=27 // pred_fallthru
        _
    $region28: #{net_batchnorm_forward.5} parent=5 // pred_fallthru
      _
    %p700 = scmp.le.s32.totalorder 2, %s8
    // Predicated region
    $region33: #{net_batchnorm_forward.5} parent=5 // pred_check
      %p701 = pneg %p700
    $region34: #{net_batchnorm_forward.5} parent=5 // pred_check_branch
      %703 = sbr.rel (%p701) target = $region36
    $region35: #{net_batchnorm_forward.5} parent=5 // pred_region
      %s704 = ssub.s32 %s8, 2
      // Predicated region
      $region37: #{net_batchnorm_forward.5} parent=35 // pred_check
        %p705 = pneg %p84
      $region38: #{net_batchnorm_forward.5} parent=35 // pred_check_branch
        %707 = sbr.rel (%p705) target = $region40
      $region39: #{net_batchnorm_forward.5} parent=35 // pred_region
        %p708 = scmp.lt.s32.totalorder %s14, 1
        %s709 = scalar_select %p708, %s14, 1
        %s710 = smul.addr %s709, 2
        %s711 = smul.addr %s710, 2
        %s712 = scalar_lea.vmem %s2, %s711
      $region40: #{net_batchnorm_forward.5} parent=35 // pred_fallthru
        _
    $region36: #{net_batchnorm_forward.5} parent=5 // pred_fallthru
      _
  $region6: #{net_batchnorm_forward.5} parent=0 // loop_footer
    %s12 = sadd.s32 1, %s8
  $region7: #{net_batchnorm_forward.5} parent=0 // loop_footer_branch
    %7 = sbr.rel target = $region3
  $region8: #{net_batchnorm_forward.5} parent=0 // loop_exit
    _

// kernel: net_batchnorm_forward.6
$region0: #{net_batchnorm_forward.6}
  #allocation0 [shape = 'u32[]', space=smem, size = 0x4, offset = 0x4, fixed_abs, tag = 'smem constant byte address 0x4 - core index']
  #allocation1 [shape = 'u32[144,128]{1,0:T(1,128)}', space=vmem, size = 0x12000, scoped, tag = 'internal scratch']
  %s0 = inlined_call_operand.vmem [shape: bf16[2,34,102], index: 0, kind: input, shape index: {}]
  %s1 = inlined_call_operand.vmem [shape: bf16[3,102,256], index: 1, kind: input, shape index: {}]
  %s2 = inlined_call_operand.vmem [shape: f32[1,256], index: 2, kind: input, shape index: {}]
  %s3 = inlined_call_operand.vmem [shape: f32[1,256], index: 3, kind: input, shape index: {}]
  %s4 = inlined_call_operand.vmem [shape: bf16[16,31], index: 4, kind: input, shape index: {}]
  %s5 = inlined_call_operand.vmem [shape: bf16[248,144], index: 5, kind: input, shape index: {}]
  %s6 = inlined_call_operand.vmem [shape: bf16[2,18,144], index: 6, kind: output, shape index: {}]
  %s7 = sld [smem:[#allocation0]]
  $region57: #{net_batchnorm_forward.6} parent=0
    _
  %s9 = ssub.s32 1, %s7
  %s10 = scalar_select 0, %s9, %s7
  loop: start=0, step=1, limit=4
  $region2: #{net_batchnorm_forward.6} parent=0 // loop_pre_header
    _
  $region3: #{net_batchnorm_forward.6} parent=0 // loop_header
    %s12 = sphi 0, %s16
    %p13 = scmp.ge.s32.totalorder %s12, 4
    %s22 = sphi 0, %s24
    %s25 = sphi 0, %s22
    %s26 = sphi 0, %s25
    %s42 = sphi 0, %s26
    %s46 = sphi 0, %s46
    %s48 = sphi 0, %s46
    %s49 = sphi 0, %s48
    %s63 = sphi 0, %s49
    %s67 = sphi 0, %s67
    %s69 = sphi 0, %s67
    %s70 = sphi 0, %s69
    %s84 = sphi 0, %s70
    %s88 = sphi 0, %s88
    %s90 = sphi 0, %s88
    %s91 = sphi 0, %s90
    %s105 = sphi 0, %s91
    %s109 = sphi 0, %s109
    %s111 = sphi 0, %s109
    %s112 = sphi 0, %s111
    %s126 = sphi 0, %s112
    %s130 = sphi 0, %s130
    %s132 = sphi 0, %s130
    %s133 = sphi 0, %s132
    %s147 = sphi 0, %s133
    %s153 = sphi 0, %s155
    %s156 = sphi 0, %s153
    %s157 = sphi 0, %s156
    %s173 = sphi 0, %s157
  $region4: #{net_batchnorm_forward.6} parent=0 // loop_header_branch
    %15 = sbr.rel (%p13) target = $region8
  $region5: #{net_batchnorm_forward.6} parent=0 // loop_body
    %s17 = ssub.s32 %s12, 1
    %s18 = ssub.s32 %s12, 2
    %s19 = sadd.s32 %s12, 1
    %s20 = ssub.s32 %s12, %s19
    %p21 = scmp.eq.s32.totalorder %s20, 0
    %s23 = sadd.s32 %s22, 1
    %s24 = scalar_select %p21, %s22, %s23
    %p27 = pneg %p21
    %p28 = scmp.eq.s32.totalorder %s12, 1
    %p29 = por %p27, %p28
    %p30 = scmp.ne.s32.totalorder %s22, %s25
    %p31 = scmp.eq.s32.totalorder %s12, 0
    %p32 = por %p30, %p31
    %p33 = scmp.ne.s32.totalorder %s22, %s25
    %p34 = scmp.eq.s32.totalorder %s17, 1
    %p35 = por %p33, %p34
    %p36 = scmp.ne.s32.totalorder %s25, %s26
    %p37 = scmp.eq.s32.totalorder %s17, 0
    %p38 = por %p36, %p37
    %p39 = scmp.ne.s32.totalorder %s25, %s26
    %p40 = scmp.eq.s32.totalorder %s18, 1
    %p41 = por %p39, %p40
    %p43 = scmp.ne.s32.totalorder %s26, %s42
    %p44 = scmp.eq.s32.totalorder %s18, 0
    %p45 = por %p43, %p44
    %s47 = sadd.s32 %s46, 1
    %p50 = scmp.eq.s32.totalorder %s12, 1
    %p51 = scmp.ne.s32.totalorder %s46, %s48
    %p52 = scmp.eq.s32.totalorder %s12, 0
    %p53 = por %p51, %p52
    %p54 = scmp.ne.s32.totalorder %s46, %s48
    %p55 = scmp.eq.s32.totalorder %s17, 1
    %p56 = por %p54, %p55
    %p57 = scmp.ne.s32.totalorder %s48, %s49
    %p58 = scmp.eq.s32.totalorder %s17, 0
    %p59 = por %p57, %p58
    %p60 = scmp.ne.s32.totalorder %s48, %s49
    %p61 = scmp.eq.s32.totalorder %s18, 1
    %p62 = por %p60, %p61
    %p64 = scmp.ne.s32.totalorder %s49, %s63
    %p65 = scmp.eq.s32.totalorder %s18, 0
    %p66 = por %p64, %p65
    %s68 = sadd.s32 %s67, 1
    %p71 = scmp.eq.s32.totalorder %s12, 1
    %p72 = scmp.ne.s32.totalorder %s67, %s69
    %p73 = scmp.eq.s32.totalorder %s12, 0
    %p74 = por %p72, %p73
    %p75 = scmp.ne.s32.totalorder %s67, %s69
    %p76 = scmp.eq.s32.totalorder %s17, 1
    %p77 = por %p75, %p76
    %p78 = scmp.ne.s32.totalorder %s69, %s70
    %p79 = scmp.eq.s32.totalorder %s17, 0
    %p80 = por %p78, %p79
    %p81 = scmp.ne.s32.totalorder %s69, %s70
    %p82 = scmp.eq.s32.totalorder %s18, 1
    %p83 = por %p81, %p82
    %p85 = scmp.ne.s32.totalorder %s70, %s84
    %p86 = scmp.eq.s32.totalorder %s18, 0
    %p87 = por %p85, %p86
    %s89 = sadd.s32 %s88, 1
    %p92 = scmp.eq.s32.totalorder %s12, 1
    %p93 = scmp.ne.s32.totalorder %s88, %s90
    %p94 = scmp.eq.s32.totalorder %s12, 0
    %p95 = por %p93, %p94
    %p96 = scmp.ne.s32.totalorder %s88, %s90
    %p97 = scmp.eq.s32.totalorder %s17, 1
    %p98 = por %p96, %p97
    %p99 = scmp.ne.s32.totalorder %s90, %s91
    %p100 = scmp.eq.s32.totalorder %s17, 0
    %p101 = por %p99, %p100
    %p102 = scmp.ne.s32.totalorder %s90, %s91
    %p103 = scmp.eq.s32.totalorder %s18, 1
    %p104 = por %p102, %p103
    %p106 = scmp.ne.s32.totalorder %s91, %s105
    %p107 = scmp.eq.s32.totalorder %s18, 0
    %p108 = por %p106, %p107
    %s110 = sadd.s32 %s109, 1
    %p113 = scmp.eq.s32.totalorder %s12, 1
    %p114 = scmp.ne.s32.totalorder %s109, %s111
    %p115 = scmp.eq.s32.totalorder %s12, 0
    %p116 = por %p114, %p115
    %p117 = scmp.ne.s32.totalorder %s109, %s111
    %p118 = scmp.eq.s32.totalorder %s17, 1
    %p119 = por %p117, %p118
    %p120 = scmp.ne.s32.totalorder %s111, %s112
    %p121 = scmp.eq.s32.totalorder %s17, 0
    %p122 = por %p120, %p121
    %p123 = scmp.ne.s32.totalorder %s111, %s112
    %p124 = scmp.eq.s32.totalorder %s18, 1
    %p125 = por %p123, %p124
    %p127 = scmp.ne.s32.totalorder %s112, %s126
    %p128 = scmp.eq.s32.totalorder %s18, 0
    %p129 = por %p127, %p128
    %s131 = sadd.s32 %s130, 1
    %p134 = scmp.eq.s32.totalorder %s12, 1
    %p135 = scmp.ne.s32.totalorder %s130, %s132
    %p136 = scmp.eq.s32.totalorder %s12, 0
    %p137 = por %p135, %p136
    %p138 = scmp.ne.s32.totalorder %s130, %s132
    %p139 = scmp.eq.s32.totalorder %s17, 1
    %p140 = por %p138, %p139
    %p141 = scmp.ne.s32.totalorder %s132, %s133
    %p142 = scmp.eq.s32.totalorder %s17, 0
    %p143 = por %p141, %p142
    %p144 = scmp.ne.s32.totalorder %s132, %s133
    %p145 = scmp.eq.s32.totalorder %s18, 1
    %p146 = por %p144, %p145
    %p148 = scmp.ne.s32.totalorder %s133, %s147
    %p149 = scmp.eq.s32.totalorder %s18, 0
    %p150 = por %p148, %p149
    %s151 = ssub.s32 %s12, %s19
    %p152 = scmp.eq.s32.totalorder %s151, 0
    %s154 = sadd.s32 %s153, 1
    %s155 = scalar_select %p152, %s153, %s154
    %p158 = pneg %p152
    %p159 = scmp.eq.s32.totalorder %s12, 1
    %p160 = por %p158, %p159
    %p161 = scmp.ne.s32.totalorder %s153, %s156
    %p162 = scmp.eq.s32.totalorder %s12, 0
    %p163 = por %p161, %p162
    %p164 = scmp.ne.s32.totalorder %s153, %s156
    %p165 = scmp.eq.s32.totalorder %s17, 1
    %p166 = por %p164, %p165
    %p167 = scmp.ne.s32.totalorder %s156, %s157
    %p168 = scmp.eq.s32.totalorder %s17, 0
    %p169 = por %p167, %p168
    %p170 = scmp.ne.s32.totalorder %s156, %s157
    %p171 = scmp.eq.s32.totalorder %s18, 1
    %p172 = por %p170, %p171
    %p174 = scmp.ne.s32.totalorder %s157, %s173
    %p175 = scmp.eq.s32.totalorder %s18, 0
    %p176 = por %p174, %p175
    %p177 = scmp.le.s32.totalorder 1, %s12
    %p178 = scmp.lt.s32.totalorder %s12, 3
    %p179 = pnand %p177, %p178
    %p180 = pneg %p179
    // Predicated region
    $region9: #{net_batchnorm_forward.6} parent=5 // pred_check
      _
    $region10: #{net_batchnorm_forward.6} parent=5 // pred_check_branch
      %182 = sbr.rel (%p179) target = $region12
    $region11: #{net_batchnorm_forward.6} parent=5 // pred_region
      %s183 = ssub.s32 %s12, 1
      // Predicated region
      $region13: #{net_batchnorm_forward.6} parent=11 // pred_check
        %p184 = pneg %p59
      $region14: #{net_batchnorm_forward.6} parent=11 // pred_check_branch
        %186 = sbr.rel (%p184) target = $region16
      $region15: #{net_batchnorm_forward.6} parent=11 // pred_region
        _
      $region16: #{net_batchnorm_forward.6} parent=11 // pred_fallthru
        _
      // Predicated region
      $region17: #{net_batchnorm_forward.6} parent=11 // pred_check
        %p187 = pneg %p80
      $region18: #{net_batchnorm_forward.6} parent=11 // pred_check_branch
        %189 = sbr.rel (%p187) target = $region20
      $region19: #{net_batchnorm_forward.6} parent=11 // pred_region
        _
      $region20: #{net_batchnorm_forward.6} parent=11 // pred_fallthru
        _
      // Predicated region
      $region21: #{net_batchnorm_forward.6} parent=11 // pred_check
        %p190 = pneg %p101
      $region22: #{net_batchnorm_forward.6} parent=11 // pred_check_branch
        %192 = sbr.rel (%p190) target = $region24
      $region23: #{net_batchnorm_forward.6} parent=11 // pred_region
        _
      $region24: #{net_batchnorm_forward.6} parent=11 // pred_fallthru
        _
      // Predicated region
      $region25: #{net_batchnorm_forward.6} parent=11 // pred_check
        %p193 = pneg %p122
      $region26: #{net_batchnorm_forward.6} parent=11 // pred_check_branch
        %195 = sbr.rel (%p193) target = $region28
      $region27: #{net_batchnorm_forward.6} parent=11 // pred_region
        _
      $region28: #{net_batchnorm_forward.6} parent=11 // pred_fallthru
        _
      // Predicated region
      $region29: #{net_batchnorm_forward.6} parent=11 // pred_check
        %p196 = pneg %p143
      $region30: #{net_batchnorm_forward.6} parent=11 // pred_check_branch
        %198 = sbr.rel (%p196) target = $region32
      $region31: #{net_batchnorm_forward.6} parent=11 // pred_region
        _
      $region32: #{net_batchnorm_forward.6} parent=11 // pred_fallthru
        _
    $region12: #{net_batchnorm_forward.6} parent=5 // pred_fallthru
      _
    %p199 = scmp.lt.s32.totalorder %s12, 2
    // Predicated region
    $region33: #{net_batchnorm_forward.6} parent=5 // pred_check
      %p200 = pneg %p199
    $region34: #{net_batchnorm_forward.6} parent=5 // pred_check_branch
      %202 = sbr.rel (%p200) target = $region36
    $region35: #{net_batchnorm_forward.6} parent=5 // pred_region
      // Predicated region
      $region37: #{net_batchnorm_forward.6} parent=35 // pred_check
        %p203 = pneg %p32
      $region38: #{net_batchnorm_forward.6} parent=35 // pred_check_branch
        %205 = sbr.rel (%p203) target = $region40
      $region39: #{net_batchnorm_forward.6} parent=35 // pred_region
        %p206 = scmp.lt.s32.totalorder %s12, 1
        %s207 = scalar_select %p206, %s12, 1
        %s208 = smul.addr %s207, 5
        %s209 = smul.addr %s208, 4
        %s210 = scalar_lea.vmem %s0, %s209
      $region40: #{net_batchnorm_forward.6} parent=35 // pred_fallthru
        _
    $region36: #{net_batchnorm_forward.6} parent=5 // pred_fallthru
      _
    %p211 = scmp.le.s32.totalorder 1, %s12
    %p212 = scmp.lt.s32.totalorder %s12, 3
    %p213 = pnand %p211, %p212
    %p214 = pneg %p213
    // Predicated region
    $region41: #{net_batchnorm_forward.6} parent=5 // pred_check
      _
    $region42: #{net_batchnorm_forward.6} parent=5 // pred_check_branch
      %216 = sbr.rel (%p213) target = $region44
    $region43: #{net_batchnorm_forward.6} parent=5 // pred_region
      %s217 = ssub.s32 %s12, 1
      %p218 = scmp.lt.s32.totalorder %s17, 1
      %s219 = scalar_select %p218, %s17, 1
      %s220 = smul.addr %s219, 5
      %s221 = smul.addr %s220, 4
      %s222 = scalar_lea.vmem %s0, %s221
      %p223 = pneg %p38
      %p224 = pneg %p35
      %p225 = pneg %p59
      %p226 = pneg %p56
      %p227 = pneg %p80
      %p228 = pneg %p77
      %p229 = pneg %p101
      %p230 = pneg %p98
      %p231 = pneg %p122
      %p232 = pneg %p119
      %p233 = pneg %p143
      %p234 = pneg %p140
      %p235 = pneg %p169
      %p236 = pneg %p166
      %p237 = scmp.lt.s32.totalorder %s17, 1
      %s238 = scalar_select %p237, %s17, 1
      %s239 = smul.addr %s238, 6
      %s240 = smul.addr %s239, 4
      %s241 = scalar_lea.vmem %s6, %s240
      %p242 = scmp.lt.s32.totalorder %s17, 1
      %s243 = scalar_select %p242, %s17, 1
      %s244 = smul.addr %s243, 5
      %s245 = smul.addr %s244, 4
      %s246 = scalar_lea.vmem %s0, %s245
      %p247 = scmp.lt.s32.totalorder %s17, 1
      %s248 = scalar_select %p247, %s17, 1
      %s249 = smul.addr %s248, 6
      %s250 = smul.addr %s249, 4
      %s251 = scalar_lea.vmem %s6, %s250
      %v253 = vld [vmem:[%s246] sm:$0xf]
      %v254 = vld [vmem:[%s246 + $0x4] sm:$0xf]
      %v255 = vld [vmem:[%s246 + $0x8] sm:$0xf]
      %v256 = vld [vmem:[%s246 + $0xc] sm:$0xf]
      %v257 = vld [vmem:[%s1] sm:$0xff]
      %v258 = vld [vmem:[%s1 + $0x8] sm:$0xff]
      %v259 = vld [vmem:[%s1 + $0x10] sm:$0xff]
      %v260 = vld [vmem:[%s1 + $0x18] sm:$0xff]
      %v261 = vld [vmem:[%s1 + $0x20] sm:$0xff]
      %v262 = vld [vmem:[%s1 + $0x28] sm:$0xff]
      %v263 = vld [vmem:[%s1 + $0x30] sm:$0xff]
      %v264 = vld [vmem:[%s1 + $0x38] sm:$0xff]
      %v265 = vld [vmem:[%s1 + $0x40] sm:$0xff]
      %v266 = vld [vmem:[%s1 + $0x48] sm:$0xff]
      %v267 = vld [vmem:[%s1 + $0x50] sm:$0xff]
      %v268 = vld [vmem:[%s1 + $0x58] sm:$0xff]
      %v269 = vld [vmem:[%s1 + $0x60] sm:$0x77]
      %v270 = vld [vmem:[%s246 + $0x10] sm:$0x1]
      %s271 = scalar_lea.vmem %s1, 104
      %v272 = vld [vmem:[%s271] sm:$0xff]
      %v273 = vld [vmem:[%s271 + $0x8] sm:$0xff]
      %v274 = vld [vmem:[%s271 + $0x10] sm:$0xff]
      %v275 = vld [vmem:[%s271 + $0x18] sm:$0xff]
      %v276 = vld [vmem:[%s271 + $0x20] sm:$0xff]
      %v277 = vld [vmem:[%s271 + $0x28] sm:$0xff]
      %v278 = vld [vmem:[%s271 + $0x30] sm:$0xff]
      %v279 = vld [vmem:[%s271 + $0x38] sm:$0xff]
      %v280 = vld [vmem:[%s271 + $0x40] sm:$0xff]
      %v281 = vld [vmem:[%s271 + $0x48] sm:$0xff]
      %v282 = vld [vmem:[%s271 + $0x50] sm:$0xff]
      %v283 = vld [vmem:[%s271 + $0x58] sm:$0xff]
      %v284 = vld [vmem:[%s271 + $0x60] sm:$0x77]
      %v290 = vunpack.c.l.b16 %v253
      %v291 = vunpack.c.l.b16 %v254
      %v292 = vunpack.c.l.b16 %v255
      %v293 = vunpack.c.l.b16 %v256
      %v294 = vunpack.c.l.b16 %v270
      %v295 = vpack.c.b16 %v291, %v290
      %v296 = vpack.c.b16 %v293, %v292
      %v297 = vpack.c.b16 %v294, %v294
      %vm298 = vsmask.f32 7424
      %v300 = vshrl.u32 %v295, 16
      %v302 = vshll.u32 %v295, 16
      %v304 = vrot.slane %v302, 1
      %v305 = vor.u32 %v300, %v304
      %v307 = vshll.u32 %v296, 16
      %v309 = vrot.slane %v307, 1
      %v310 = vsel %vm298, %v305, %v309
      %v311 = vshrl.u32 %v296, 16
      %v313 = vor.u32 %v311, %v309
      %v315 = vshll.u32 %v297, 16
      %v317 = vrot.slane %v315, 1
      %v318 = vsel %vm298, %v313, %v317
      %v332 = vunpack.c.l.b16 %v272
      %v333 = vunpack.c.h.b16 %v272
      %v334 = vunpack.c.l.b16 %v273
      %v335 = vunpack.c.h.b16 %v273
      %v336 = vunpack.c.l.b16 %v274
      %v337 = vunpack.c.h.b16 %v274
      %v338 = vunpack.c.l.b16 %v275
      %v339 = vunpack.c.h.b16 %v275
      %v340 = vunpack.c.l.b16 %v276
      %v341 = vunpack.c.h.b16 %v276
      %v342 = vunpack.c.l.b16 %v277
      %v343 = vunpack.c.h.b16 %v277
      %v344 = vunpack.c.l.b16 %v278
      %v345 = vunpack.c.h.b16 %v278
      %v346 = vunpack.c.l.b16 %v279
      %v347 = vunpack.c.h.b16 %v279
      %v348 = vunpack.c.l.b16 %v280
      %v349 = vunpack.c.h.b16 %v280
      %v350 = vunpack.c.l.b16 %v281
      %v351 = vunpack.c.h.b16 %v281
      %v352 = vunpack.c.l.b16 %v282
      %v353 = vunpack.c.h.b16 %v282
      %v354 = vunpack.c.l.b16 %v283
      %v355 = vunpack.c.h.b16 %v283
      %v356 = vunpack.c.l.b16 %v284
      %v357 = vunpack.c.h.b16 %v284
      %v358 = vpack.c.b16 %v334, %v332
      %v359 = vpack.c.b16 %v335, %v333
      %v360 = vpack.c.b16 %v338, %v336
      %v361 = vpack.c.b16 %v339, %v337
      %v362 = vpack.c.b16 %v342, %v340
      %v363 = vpack.c.b16 %v343, %v341
      %v364 = vpack.c.b16 %v346, %v344
      %v365 = vpack.c.b16 %v347, %v345
      %v366 = vpack.c.b16 %v350, %v348
      %v367 = vpack.c.b16 %v351, %v349
      %v368 = vpack.c.b16 %v354, %v352
      %v369 = vpack.c.b16 %v355, %v353
      %v370 = vpack.c.b16 %v356, %v356
      %v371 = vpack.c.b16 %v357, %v357
      %vm384 = vcmask 834560
      %v386 = vsel %vm384, %v310, 0
      %v389 = vsel %vm384, %v318, 0
      %vm391 = vcmask 1042432
      %v393 = vsel %vm391, %v370, 0
      %v396 = vsel %vm391, %v371, 0
      %398 = vmatprep.subr.bf16.mxu0 0
      %399 = vmatpush1.bf16.msra.mxu0 0
      %400 = vmatprep.subr.bf16.mxu0 %v396
      %401 = vmatpush1.bf16.msra.mxu0 %v393
      %402 = vmatprep.subr.bf16.mxu0 %v369
      %403 = vmatpush1.bf16.msra.mxu0 %v368
      %404 = vmatprep.subr.bf16.mxu0 %v367
      %405 = vmatpush1.bf16.msra.mxu0 %v366
      %406 = vmatprep.subr.bf16.mxu0 %v365
      %407 = vmatpush1.bf16.msra.mxu0 %v364
      %408 = vmatprep.subr.bf16.mxu0 %v363
      %409 = vmatpush1.bf16.msra.mxu0 %v362
      %410 = vmatprep.subr.bf16.mxu0 %v361
      %411 = vmatpush1.bf16.msra.mxu0 %v360
      %412 = vmatprep.subr.bf16.mxu0 %v359
      %413 = vmatpush1.bf16.msra.mxu0 %v358
      %414 = vmatprep.subr.bf16.mxu0 0
      %415 = vmatpush2.bf16.msra.mxu0 0
      %416 = vmatprep.subr.bf16.mxu0 0
      %417 = vmatpush2.bf16.msra.mxu0 0
      %418 = vmatprep.subr.bf16.mxu0 0
      %419 = vmatpush2.bf16.msra.mxu0 0
      %420 = vmatprep.subr.bf16.mxu0 0
      %421 = vmatpush2.bf16.msra.mxu0 0
      %422 = vmatprep.subr.bf16.mxu0 0
      %423 = vmatpush2.bf16.msra.mxu0 0
      %424 = vmatprep.subr.bf16.mxu0 0
      %425 = vmatpush2.bf16.msra.mxu0 0
      %426 = vmatprep.subr.bf16.mxu0 0
      %427 = vmatpush2.bf16.msra.mxu0 0
      %428 = vmatprep.subr.bf16.mxu0 0
      %429 = vmatpush2.bf16.msra.mxu0 0
      %430 = vmatprep.mubr.bf16.mxu0 0
      %431 = vmatmul.mubr.bf16.gmra.mxu0 %v386
      %v432 = vpop.f32.mrf.mxu0
      %v433 = vadd.f32 0.0, %v432
      %v434 = vpop.f32.mrf.mxu0
      %v435 = vadd.f32 0.0, %v434
      %v436 = vpop.f32.mrf.mxu0
      %v437 = vadd.f32 0.0, %v436
      %v438 = vpop.f32.mrf.mxu0
      %v439 = vadd.f32 0.0, %v438
      %440 = vmatprep.mubr.bf16.mxu0 0
      %441 = vmatmul.mubr.bf16.gmra.mxu0 %v389
      %v442 = vpop.f32.mrf.mxu0
      %v443 = vadd.f32 0.0, %v442
      %v444 = vpop.f32.mrf.mxu0
      %v445 = vadd.f32 0.0, %v444
      %v446 = vpop.f32.mrf.mxu0
      %v447 = vadd.f32 0.0, %v446
      %v448 = vpop.f32.mrf.mxu0
      %v449 = vadd.f32 0.0, %v448
      %450 = vdwg.mxu0
      %v464 = vunpack.c.l.b16 %v257
      %v465 = vunpack.c.h.b16 %v257
      %v466 = vunpack.c.l.b16 %v258
      %v467 = vunpack.c.h.b16 %v258
      %v468 = vunpack.c.l.b16 %v259
      %v469 = vunpack.c.h.b16 %v259
      %v470 = vunpack.c.l.b16 %v260
      %v471 = vunpack.c.h.b16 %v260
      %v472 = vunpack.c.l.b16 %v261
      %v473 = vunpack.c.h.b16 %v261
      %v474 = vunpack.c.l.b16 %v262
      %v475 = vunpack.c.h.b16 %v262
      %v476 = vunpack.c.l.b16 %v263
      %v477 = vunpack.c.h.b16 %v263
      %v478 = vunpack.c.l.b16 %v264
      %v479 = vunpack.c.h.b16 %v264
      %v480 = vunpack.c.l.b16 %v265
      %v481 = vunpack.c.h.b16 %v265
      %v482 = vunpack.c.l.b16 %v266
      %v483 = vunpack.c.h.b16 %v266
      %v484 = vunpack.c.l.b16 %v267
      %v485 = vunpack.c.h.b16 %v267
      %v486 = vunpack.c.l.b16 %v268
      %v487 = vunpack.c.h.b16 %v268
      %v488 = vunpack.c.l.b16 %v269
      %v489 = vunpack.c.h.b16 %v269
      %v490 = vpack.c.b16 %v466, %v464
      %v491 = vpack.c.b16 %v467, %v465
      %v492 = vpack.c.b16 %v470, %v468
      %v493 = vpack.c.b16 %v471, %v469
      %v494 = vpack.c.b16 %v474, %v472
      %v495 = vpack.c.b16 %v475, %v473
      %v496 = vpack.c.b16 %v478, %v476
      %v497 = vpack.c.b16 %v479, %v477
      %v498 = vpack.c.b16 %v482, %v480
      %v499 = vpack.c.b16 %v483, %v481
      %v500 = vpack.c.b16 %v486, %v484
      %v501 = vpack.c.b16 %v487, %v485
      %v502 = vpack.c.b16 %v488, %v488
      %v503 = vpack.c.b16 %v489, %v489
      %v516 = vsel %vm384, %v295, 0
      %v518 = vsel %vm384, %v296, 0
      %v521 = vsel %vm391, %v502, 0
      %v524 = vsel %vm391, %v503, 0
      %526 = vmatprep.subr.bf16.mxu0 0
      %527 = vmatpush1.bf16.msra.mxu0 0
      %528 = vmatprep.subr.bf16.mxu0 %v524
      %529 = vmatpush1.bf16.msra.mxu0 %v521
      %530 = vmatprep.subr.bf16.mxu0 %v501
      %531 = vmatpush1.bf16.msra.mxu0 %v500
      %532 = vmatprep.subr.bf16.mxu0 %v499
      %533 = vmatpush1.bf16.msra.mxu0 %v498
      %534 = vmatprep.subr.bf16.mxu0 %v497
      %535 = vmatpush1.bf16.msra.mxu0 %v496
      %536 = vmatprep.subr.bf16.mxu0 %v495
      %537 = vmatpush1.bf16.msra.mxu0 %v494
      %538 = vmatprep.subr.bf16.mxu0 %v493
      %539 = vmatpush1.bf16.msra.mxu0 %v492
      %540 = vmatprep.subr.bf16.mxu0 %v491
      %541 = vmatpush1.bf16.msra.mxu0 %v490
      %542 = vmatprep.subr.bf16.mxu0 0
      %543 = vmatpush2.bf16.msra.mxu0 0
      %544 = vmatprep.subr.bf16.mxu0 0
      %545 = vmatpush2.bf16.msra.mxu0 0
      %546 = vmatprep.subr.bf16.mxu0 0
      %547 = vmatpush2.bf16.msra.mxu0 0
      %548 = vmatprep.subr.bf16.mxu0 0
      %549 = vmatpush2.bf16.msra.mxu0 0
      %550 = vmatprep.subr.bf16.mxu0 0
      %551 = vmatpush2.bf16.msra.mxu0 0
      %552 = vmatprep.subr.bf16.mxu0 0
      %553 = vmatpush2.bf16.msra.mxu0 0
      %554 = vmatprep.subr.bf16.mxu0 0
      %555 = vmatpush2.bf16.msra.mxu0 0
      %556 = vmatprep.subr.bf16.mxu0 0
      %557 = vmatpush2.bf16.msra.mxu0 0
      %558 = vmatprep.mubr.bf16.mxu0 0
      %559 = vmatmul.mubr.bf16.gmra.mxu0 %v516
      %v560 = vpop.f32.mrf.mxu0
      %v561 = vadd.f32 %v433, %v560
      %v562 = vpop.f32.mrf.mxu0
      %v563 = vadd.f32 %v435, %v562
      %v564 = vpop.f32.mrf.mxu0
      %v565 = vadd.f32 %v437, %v564
      %v566 = vpop.f32.mrf.mxu0
      %v567 = vadd.f32 %v439, %v566
      %568 = vmatprep.mubr.bf16.mxu0 0
      %569 = vmatmul.mubr.bf16.gmra.mxu0 %v518
      %v570 = vpop.f32.mrf.mxu0
      %v571 = vadd.f32 %v443, %v570
      %v572 = vpop.f32.mrf.mxu0
      %v573 = vadd.f32 %v445, %v572
      %v574 = vpop.f32.mrf.mxu0
      %v575 = vadd.f32 %v447, %v574
      %v576 = vpop.f32.mrf.mxu0
      %v577 = vadd.f32 %v449, %v576
      %578 = vdwg.mxu0
      %v579 = vld [vmem:[%s246] sm:$0xe]
      %s580 = scalar_lea.vmem %s1, 208
      %v581 = vld [vmem:[%s580] sm:$0xff]
      %v582 = vld [vmem:[%s580 + $0x8] sm:$0xff]
      %v583 = vld [vmem:[%s580 + $0x10] sm:$0xff]
      %v584 = vld [vmem:[%s580 + $0x18] sm:$0xff]
      %v585 = vld [vmem:[%s580 + $0x20] sm:$0xff]
      %v586 = vld [vmem:[%s580 + $0x28] sm:$0xff]
      %v587 = vld [vmem:[%s580 + $0x30] sm:$0xff]
      %v588 = vld [vmem:[%s580 + $0x38] sm:$0xff]
      %v589 = vld [vmem:[%s580 + $0x40] sm:$0xff]
      %v590 = vld [vmem:[%s580 + $0x48] sm:$0xff]
      %v591 = vld [vmem:[%s580 + $0x50] sm:$0xff]
      %v592 = vld [vmem:[%s580 + $0x58] sm:$0xff]
      %v593 = vld [vmem:[%s580 + $0x60] sm:$0x77]
      %v595 = vunpack.c.l.b16 %v579
      %v596 = vpack.c.b16 %v291, %v595
      %vm597 = vcmask 1046528
      %v598 = vrot.slane %v596, 1
      %v599 = vrot.slane %v296, 1
      %v600 = vsel %vm597, %v598, %v599
      %v601 = vrot.slane %v297, 1
      %v602 = vsel %vm597, %v599, %v601
      %v616 = vunpack.c.l.b16 %v581
      %v617 = vunpack.c.h.b16 %v581
      %v618 = vunpack.c.l.b16 %v582
      %v619 = vunpack.c.h.b16 %v582
      %v620 = vunpack.c.l.b16 %v583
      %v621 = vunpack.c.h.b16 %v583
      %v622 = vunpack.c.l.b16 %v584
      %v623 = vunpack.c.h.b16 %v584
      %v624 = vunpack.c.l.b16 %v585
      %v625 = vunpack.c.h.b16 %v585
      %v626 = vunpack.c.l.b16 %v586
      %v627 = vunpack.c.h.b16 %v586
      %v628 = vunpack.c.l.b16 %v587
      %v629 = vunpack.c.h.b16 %v587
      %v630 = vunpack.c.l.b16 %v588
      %v631 = vunpack.c.h.b16 %v588
      %v632 = vunpack.c.l.b16 %v589
      %v633 = vunpack.c.h.b16 %v589
      %v634 = vunpack.c.l.b16 %v590
      %v635 = vunpack.c.h.b16 %v590
      %v636 = vunpack.c.l.b16 %v591
      %v637 = vunpack.c.h.b16 %v591
      %v638 = vunpack.c.l.b16 %v592
      %v639 = vunpack.c.h.b16 %v592
      %v640 = vunpack.c.l.b16 %v593
      %v641 = vunpack.c.h.b16 %v593
      %v642 = vpack.c.b16 %v618, %v616
      %v643 = vpack.c.b16 %v619, %v617
      %v644 = vpack.c.b16 %v622, %v620
      %v645 = vpack.c.b16 %v623, %v621
      %v646 = vpack.c.b16 %v626, %v624
      %v647 = vpack.c.b16 %v627, %v625
      %v648 = vpack.c.b16 %v630, %v628
      %v649 = vpack.c.b16 %v631, %v629
      %v650 = vpack.c.b16 %v634, %v632
      %v651 = vpack.c.b16 %v635, %v633
      %v652 = vpack.c.b16 %v638, %v636
      %v653 = vpack.c.b16 %v639, %v637
      %v654 = vpack.c.b16 %v640, %v640
      %v655 = vpack.c.b16 %v641, %v641
      %v669 = vsel %vm384, %v600, 0
      %v672 = vsel %vm384, %v602, 0
      %v675 = vsel %vm391, %v654, 0
      %v678 = vsel %vm391, %v655, 0
      %680 = vmatprep.subr.bf16.mxu0 0
      %681 = vmatpush1.bf16.msra.mxu0 0
      %682 = vmatprep.subr.bf16.mxu0 %v678
      %683 = vmatpush1.bf16.msra.mxu0 %v675
      %684 = vmatprep.subr.bf16.mxu0 %v653
      %685 = vmatpush1.bf16.msra.mxu0 %v652
      %686 = vmatprep.subr.bf16.mxu0 %v651
      %687 = vmatpush1.bf16.msra.mxu0 %v650
      %688 = vmatprep.subr.bf16.mxu0 %v649
      %689 = vmatpush1.bf16.msra.mxu0 %v648
      %690 = vmatprep.subr.bf16.mxu0 %v647
      %691 = vmatpush1.bf16.msra.mxu0 %v646
      %692 = vmatprep.subr.bf16.mxu0 %v645
      %693 = vmatpush1.bf16.msra.mxu0 %v644
      %694 = vmatprep.subr.bf16.mxu0 %v643
      %695 = vmatpush1.bf16.msra.mxu0 %v642
      %696 = vmatprep.subr.bf16.mxu0 0
      %697 = vmatpush2.bf16.msra.mxu0 0
      %698 = vmatprep.subr.bf16.mxu0 0
      %699 = vmatpush2.bf16.msra.mxu0 0
      %700 = vmatprep.subr.bf16.mxu0 0
      %701 = vmatpush2.bf16.msra.mxu0 0
      %702 = vmatprep.subr.bf16.mxu0 0
      %703 = vmatpush2.bf16.msra.mxu0 0
      %704 = vmatprep.subr.bf16.mxu0 0
      %705 = vmatpush2.bf16.msra.mxu0 0
      %706 = vmatprep.subr.bf16.mxu0 0
      %707 = vmatpush2.bf16.msra.mxu0 0
      %708 = vmatprep.subr.bf16.mxu0 0
      %709 = vmatpush2.bf16.msra.mxu0 0
      %710 = vmatprep.subr.bf16.mxu0 0
      %711 = vmatpush2.bf16.msra.mxu0 0
      %712 = vmatprep.mubr.bf16.mxu0 0
      %713 = vmatmul.mubr.bf16.gmra.mxu0 %v669
      %v714 = vpop.f32.mrf.mxu0
      %v715 = vadd.f32 0.0, %v714
      %v716 = vpop.f32.mrf.mxu0
      %v717 = vadd.f32 0.0, %v716
      %v718 = vpop.f32.mrf.mxu0
      %v719 = vadd.f32 0.0, %v718
      %v720 = vpop.f32.mrf.mxu0
      %v721 = vadd.f32 0.0, %v720
      %722 = vmatprep.mubr.bf16.mxu0 0
      %723 = vmatmul.mubr.bf16.gmra.mxu0 %v672
      %v724 = vpop.f32.mrf.mxu0
      %v725 = vadd.f32 0.0, %v724
      %v726 = vpop.f32.mrf.mxu0
      %v727 = vadd.f32 0.0, %v726
      %v728 = vpop.f32.mrf.mxu0
      %v729 = vadd.f32 0.0, %v728
      %v730 = vpop.f32.mrf.mxu0
      %v731 = vadd.f32 0.0, %v730
      %732 = vdwg.mxu0
      %v733 = vadd.f32 %v561, %v715
      %v734 = vadd.f32 %v563, %v717
      %v735 = vadd.f32 %v565, %v719
      %v736 = vadd.f32 %v567, %v721
      %v737 = vadd.f32 %v571, %v725
      %v738 = vadd.f32 %v573, %v727
      %v739 = vadd.f32 %v575, %v729
      %v740 = vadd.f32 %v577, %v731
      %v741 = vld [vmem:[%s2] sm:$0x3]
      %v743 = vlaneseq
      %v744 = vshrl.u32 %v743, 7
      %v745 = vsub.s32 0, %v744
      %v746 = vrot.slane %v741, %v745
      %v747 = vlaneseq
      %v748 = vshrl.u32 %v747, 7
      %v749 = vsub.s32 1, %v748
      %v750 = vrot.slane %v741, %v749
      %v753 = vmul.f32 %v733, %v746
      %v754 = vmul.f32 %v734, %v750
      %v755 = vmul.f32 %v735, %v746
      %v756 = vmul.f32 %v736, %v750
      %v757 = vmul.f32 %v737, %v746
      %v758 = vmul.f32 %v738, %v750
      %v759 = vmul.f32 %v739, %v746
      %v760 = vmul.f32 %v740, %v750
      %v761 = vld [vmem:[%s3] sm:$0x3]
      %v763 = vlaneseq
      %v764 = vshrl.u32 %v763, 7
      %v765 = vsub.s32 0, %v764
      %v766 = vrot.slane %v761, %v765
      %v767 = vlaneseq
      %v768 = vshrl.u32 %v767, 7
      %v769 = vsub.s32 1, %v768
      %v770 = vrot.slane %v761, %v769
      %v773 = vadd.f32 %v753, %v766
      %v774 = vadd.f32 %v754, %v770
      %v775 = vadd.f32 %v755, %v766
      %v776 = vadd.f32 %v756, %v770
      %v777 = vadd.f32 %v757, %v766
      %v778 = vadd.f32 %v758, %v770
      %v779 = vadd.f32 %v759, %v766
      %v780 = vadd.f32 %v760, %v770
      %v781 = vtanh.pop %v773
      %v782 = vtanh.pop %v774
      %v783 = vtanh.pop %v775
      %v784 = vtanh.pop %v776
      %v785 = vtanh.pop %v777
      %v786 = vtanh.pop %v778
      %v787 = vtanh.pop %v779
      %v788 = vtanh.pop %v780
      %vm797 = vcmask 1046528
      %v798 = vrot.slane %v781, 1
      %v799 = vrot.slane %v783, 1
      %v800 = vsel %vm797, %v798, %v799
      %v801 = vrot.slane %v782, 1
      %v802 = vrot.slane %v784, 1
      %v803 = vsel %vm797, %v801, %v802
      %v804 = vrot.slane %v785, 1
      %v805 = vsel %vm797, %v799, %v804
      %v806 = vrot.slane %v786, 1
      %v807 = vsel %vm797, %v802, %v806
      %v808 = vrot.slane %v787, 1
      %v809 = vsel %vm797, %v804, %v808
      %v810 = vrot.slane %v788, 1
      %v811 = vsel %vm797, %v806, %v810
      %v820 = vmax.f32 %v781, %v800
      %v821 = vmax.f32 %v782, %v803
      %v822 = vmax.f32 %v783, %v805
      %v823 = vmax.f32 %v784, %v807
      %v824 = vmax.f32 %v785, %v809
      %v825 = vmax.f32 %v786, %v811
      %v826 = vmax.f32 %v787, %v808
      %v827 = vmax.f32 %v788, %v810
      %v828 = vpack.c.bf16 %v822, %v820
      %v829 = vpack.c.bf16 %v823, %v821
      %v830 = vpack.c.bf16 %v826, %v824
      %v831 = vpack.c.bf16 %v827, %v825
      %v832 = vld [vmem:[%s4] sm:$0xf]
      %v833 = vld [vmem:[%s4 + $0x4] sm:$0xf]
      %v836 = vunpack.c.l.b16 %v832
      %v837 = vunpack.c.l.b16 %v833
      %v838 = vpack.c.b16 %v837, %v836
      %vm839 = vcmask 252928
      %v841 = vsel %vm839, %v838, 0
      %vm843 = vcmask 1047552
      %v844 = vsel %vm797, 4294967295, 65535
      %v845 = vsel %vm843, %v844, 0
      %v847 = vand.u32 %v830, %v845
      %v850 = vand.u32 %v831, %v845
      %852 = vmatprep.subr.bf16.mxu0 0
      %853 = vmatpush1.bf16.msra.mxu0 0
      %854 = vmatprep.subr.bf16.mxu0 0
      %855 = vmatpush1.bf16.msra.mxu0 0
      %856 = vmatprep.subr.bf16.mxu0 0
      %857 = vmatpush1.bf16.msra.mxu0 0
      %858 = vmatprep.subr.bf16.mxu0 0
      %859 = vmatpush1.bf16.msra.mxu0 0
      %860 = vmatprep.subr.bf16.mxu0 0
      %861 = vmatpush1.bf16.msra.mxu0 0
      %862 = vmatprep.subr.bf16.mxu0 0
      %863 = vmatpush1.bf16.msra.mxu0 0
      %864 = vmatprep.subr.bf16.mxu0 %v850
      %865 = vmatpush1.bf16.msra.mxu0 %v847
      %866 = vmatprep.subr.bf16.mxu0 %v829
      %867 = vmatpush1.bf16.msra.mxu0 %v828
      %868 = vmatprep.subr.bf16.mxu0 0
      %869 = vmatpush2.bf16.msra.mxu0 0
      %870 = vmatprep.subr.bf16.mxu0 0
      %871 = vmatpush2.bf16.msra.mxu0 0
      %872 = vmatprep.subr.bf16.mxu0 0
      %873 = vmatpush2.bf16.msra.mxu0 0
      %874 = vmatprep.subr.bf16.mxu0 0
      %875 = vmatpush2.bf16.msra.mxu0 0
      %876 = vmatprep.subr.bf16.mxu0 0
      %877 = vmatpush2.bf16.msra.mxu0 0
      %878 = vmatprep.subr.bf16.mxu0 0
      %879 = vmatpush2.bf16.msra.mxu0 0
      %880 = vmatprep.subr.bf16.mxu0 0
      %881 = vmatpush2.bf16.msra.mxu0 0
      %882 = vmatprep.subr.bf16.mxu0 0
      %883 = vmatpush2.bf16.msra.mxu0 0
      %884 = vmatprep.mubr.bf16.mxu0 0
      %885 = vmatmul.mubr.bf16.gmra.mxu0 %v841
      %v886 = vpop.f32.mrf.mxu0
      %v887 = vadd.f32 0.0, %v886
      %v888 = vpop.f32.mrf.mxu0
      %v889 = vadd.f32 0.0, %v888
      %v890 = vpop.f32.mrf.mxu0
      %v891 = vadd.f32 0.0, %v890
      %v892 = vpop.f32.mrf.mxu0
      %v893 = vadd.f32 0.0, %v892
      %894 = vdwg.mxu0
      %v895 = vpack.c.bf16 %v891, %v887
      %v896 = vpack.c.bf16 %v893, %v889
      %899 = vrot.lane.b32.xlu0 %v895, 120
      %v900 = vpop.permute.xlu0 %899
      %901 = vrot.lane.b32.xlu0 %v896, 120
      %v902 = vpop.permute.xlu0 %901
      %vm903 = vcmask 982016
      %v904 = vsel %vm903, %v900, %v902
      %v907 = vmax.bf16 %v895, %v904
      %v908 = vmax.bf16 %v896, %v902
      %v909 = vld [vmem:[%s5] sm:$0xff]
      %v910 = vld [vmem:[%s5 + $0x8] sm:$0xff]
      %v911 = vld [vmem:[%s5 + $0x10] sm:$0xff]
      %v912 = vld [vmem:[%s5 + $0x18] sm:$0xff]
      %v913 = vld [vmem:[%s5 + $0x20] sm:$0xff]
      %v914 = vld [vmem:[%s5 + $0x28] sm:$0xff]
      %v915 = vld [vmem:[%s5 + $0x30] sm:$0xff]
      %v916 = vld [vmem:[%s5 + $0x38] sm:$0xff]
      %v917 = vld [vmem:[%s5 + $0x40] sm:$0xff]
      %v918 = vld [vmem:[%s5 + $0x48] sm:$0xff]
      %v919 = vld [vmem:[%s5 + $0x50] sm:$0xff]
      %v920 = vld [vmem:[%s5 + $0x58] sm:$0xff]
      %v921 = vld [vmem:[%s5 + $0x60] sm:$0xff]
      %v922 = vld [vmem:[%s5 + $0x68] sm:$0xff]
      %v923 = vld [vmem:[%s5 + $0x70] sm:$0xff]
      %v924 = vld [vmem:[%s5 + $0x78] sm:$0xff]
      %v925 = vld [vmem:[%s5 + $0x80] sm:$0xff]
      %v926 = vld [vmem:[%s5 + $0x88] sm:$0xff]
      %v927 = vld [vmem:[%s5 + $0x90] sm:$0xff]
      %v928 = vld [vmem:[%s5 + $0x98] sm:$0xff]
      %v929 = vld [vmem:[%s5 + $0xa0] sm:$0xff]
      %v930 = vld [vmem:[%s5 + $0xa8] sm:$0xff]
      %v931 = vld [vmem:[%s5 + $0xb0] sm:$0xff]
      %v932 = vld [vmem:[%s5 + $0xb8] sm:$0xff]
      %v933 = vld [vmem:[%s5 + $0xc0] sm:$0xff]
      %v934 = vld [vmem:[%s5 + $0xc8] sm:$0xff]
      %v935 = vld [vmem:[%s5 + $0xd0] sm:$0xff]
      %v936 = vld [vmem:[%s5 + $0xd8] sm:$0xff]
      %v937 = vld [vmem:[%s5 + $0xe0] sm:$0xff]
      %v938 = vld [vmem:[%s5 + $0xe8] sm:$0xff]
      %v939 = vld [vmem:[%s5 + $0xf0] sm:$0xff]
      %v971 = vunpack.c.l.b16 %v909
      %v972 = vunpack.c.h.b16 %v909
      %v973 = vunpack.c.l.b16 %v910
      %v974 = vunpack.c.h.b16 %v910
      %v975 = vunpack.c.l.b16 %v911
      %v976 = vunpack.c.h.b16 %v911
      %v977 = vunpack.c.l.b16 %v912
      %v978 = vunpack.c.h.b16 %v912
      %v979 = vunpack.c.l.b16 %v913
      %v980 = vunpack.c.h.b16 %v913
      %v981 = vunpack.c.l.b16 %v914
      %v982 = vunpack.c.h.b16 %v914
      %v983 = vunpack.c.l.b16 %v915
      %v984 = vunpack.c.h.b16 %v915
      %v985 = vunpack.c.l.b16 %v916
      %v986 = vunpack.c.h.b16 %v916
      %v987 = vunpack.c.l.b16 %v917
      %v988 = vunpack.c.h.b16 %v917
      %v989 = vunpack.c.l.b16 %v918
      %v990 = vunpack.c.h.b16 %v918
      %v991 = vunpack.c.l.b16 %v919
      %v992 = vunpack.c.h.b16 %v919
      %v993 = vunpack.c.l.b16 %v920
      %v994 = vunpack.c.h.b16 %v920
      %v995 = vunpack.c.l.b16 %v921
      %v996 = vunpack.c.h.b16 %v921
      %v997 = vunpack.c.l.b16 %v922
      %v998 = vunpack.c.h.b16 %v922
      %v999 = vunpack.c.l.b16 %v923
      %v1000 = vunpack.c.h.b16 %v923
      %v1001 = vunpack.c.l.b16 %v924
      %v1002 = vunpack.c.h.b16 %v924
      %v1003 = vunpack.c.l.b16 %v925
      %v1004 = vunpack.c.h.b16 %v925
      %v1005 = vunpack.c.l.b16 %v926
      %v1006 = vunpack.c.h.b16 %v926
      %v1007 = vunpack.c.l.b16 %v927
      %v1008 = vunpack.c.h.b16 %v927
      %v1009 = vunpack.c.l.b16 %v928
      %v1010 = vunpack.c.h.b16 %v928
      %v1011 = vunpack.c.l.b16 %v929
      %v1012 = vunpack.c.h.b16 %v929
      %v1013 = vunpack.c.l.b16 %v930
      %v1014 = vunpack.c.h.b16 %v930
      %v1015 = vunpack.c.l.b16 %v931
      %v1016 = vunpack.c.h.b16 %v931
      %v1017 = vunpack.c.l.b16 %v932
      %v1018 = vunpack.c.h.b16 %v932
      %v1019 = vunpack.c.l.b16 %v933
      %v1020 = vunpack.c.h.b16 %v933
      %v1021 = vunpack.c.l.b16 %v934
      %v1022 = vunpack.c.h.b16 %v934
      %v1023 = vunpack.c.l.b16 %v935
      %v1024 = vunpack.c.h.b16 %v935
      %v1025 = vunpack.c.l.b16 %v936
      %v1026 = vunpack.c.h.b16 %v936
      %v1027 = vunpack.c.l.b16 %v937
      %v1028 = vunpack.c.h.b16 %v937
      %v1029 = vunpack.c.l.b16 %v938
      %v1030 = vunpack.c.h.b16 %v938
      %v1031 = vunpack.c.l.b16 %v939
      %v1032 = vunpack.c.h.b16 %v939
      %v1033 = vpack.c.b16 %v973, %v971
      %v1034 = vpack.c.b16 %v974, %v972
      %v1035 = vpack.c.b16 %v977, %v975
      %v1036 = vpack.c.b16 %v978, %v976
      %v1037 = vpack.c.b16 %v981, %v979
      %v1038 = vpack.c.b16 %v982, %v980
      %v1039 = vpack.c.b16 %v985, %v983
      %v1040 = vpack.c.b16 %v986, %v984
      %v1041 = vpack.c.b16 %v989, %v987
      %v1042 = vpack.c.b16 %v990, %v988
      %v1043 = vpack.c.b16 %v993, %v991
      %v1044 = vpack.c.b16 %v994, %v992
      %v1045 = vpack.c.b16 %v997, %v995
      %v1046 = vpack.c.b16 %v998, %v996
      %v1047 = vpack.c.b16 %v1001, %v999
      %v1048 = vpack.c.b16 %v1002, %v1000
      %v1049 = vpack.c.b16 %v1005, %v1003
      %v1050 = vpack.c.b16 %v1006, %v1004
      %v1051 = vpack.c.b16 %v1009, %v1007
      %v1052 = vpack.c.b16 %v1010, %v1008
      %v1053 = vpack.c.b16 %v1013, %v1011
      %v1054 = vpack.c.b16 %v1014, %v1012
      %v1055 = vpack.c.b16 %v1017, %v1015
      %v1056 = vpack.c.b16 %v1018, %v1016
      %v1057 = vpack.c.b16 %v1021, %v1019
      %v1058 = vpack.c.b16 %v1022, %v1020
      %v1059 = vpack.c.b16 %v1025, %v1023
      %v1060 = vpack.c.b16 %v1026, %v1024
      %v1061 = vpack.c.b16 %v1029, %v1027
      %v1062 = vpack.c.b16 %v1030, %v1028
      %v1063 = vpack.c.b16 %v1031, %v1031
      %v1064 = vpack.c.b16 %v1032, %v1032
      %vm1095 = vcmask 982016
      %v1097 = vsel %vm1095, %v908, 0
      %vm1099 = vcmask 1043456
      %v1101 = vsel %vm1099, %v1063, 0
      %v1104 = vsel %vm1099, %v1064, 0
      %1106 = vmatprep.subr.bf16.mxu0 %v1048
      %1107 = vmatpush1.bf16.msra.mxu0 %v1047
      %1108 = vmatprep.subr.bf16.mxu0 %v1046
      %1109 = vmatpush1.bf16.msra.mxu0 %v1045
      %1110 = vmatprep.subr.bf16.mxu0 %v1044
      %1111 = vmatpush1.bf16.msra.mxu0 %v1043
      %1112 = vmatprep.subr.bf16.mxu0 %v1042
      %1113 = vmatpush1.bf16.msra.mxu0 %v1041
      %1114 = vmatprep.subr.bf16.mxu0 %v1040
      %1115 = vmatpush1.bf16.msra.mxu0 %v1039
      %1116 = vmatprep.subr.bf16.mxu0 %v1038
      %1117 = vmatpush1.bf16.msra.mxu0 %v1037
      %1118 = vmatprep.subr.bf16.mxu0 %v1036
      %1119 = vmatpush1.bf16.msra.mxu0 %v1035
      %1120 = vmatprep.subr.bf16.mxu0 %v1034
      %1121 = vmatpush1.bf16.msra.mxu0 %v1033
      %1122 = vmatprep.subr.bf16.mxu0 %v1104
      %1123 = vmatpush2.bf16.msra.mxu0 %v1101
      %1124 = vmatprep.subr.bf16.mxu0 %v1062
      %1125 = vmatpush2.bf16.msra.mxu0 %v1061
      %1126 = vmatprep.subr.bf16.mxu0 %v1060
      %1127 = vmatpush2.bf16.msra.mxu0 %v1059
      %1128 = vmatprep.subr.bf16.mxu0 %v1058
      %1129 = vmatpush2.bf16.msra.mxu0 %v1057
      %1130 = vmatprep.subr.bf16.mxu0 %v1056
      %1131 = vmatpush2.bf16.msra.mxu0 %v1055
      %1132 = vmatprep.subr.bf16.mxu0 %v1054
      %1133 = vmatpush2.bf16.msra.mxu0 %v1053
      %1134 = vmatprep.subr.bf16.mxu0 %v1052
      %1135 = vmatpush2.bf16.msra.mxu0 %v1051
      %1136 = vmatprep.subr.bf16.mxu0 %v1050
      %1137 = vmatpush2.bf16.msra.mxu0 %v1049
      %1138 = vmatprep.mubr.bf16.mxu0 %v1097
      %1139 = vmatmul.mubr.bf16.gmra.mxu0 %v907
      %v1140 = vpop.f32.mrf.mxu0
      %v1141 = vadd.f32 0.0, %v1140
      %v1142 = vpop.f32.mrf.mxu0
      %v1143 = vadd.f32 0.0, %v1142
      %v1144 = vpop.f32.mrf.mxu0
      %v1145 = vadd.f32 0.0, %v1144
      %v1146 = vpop.f32.mrf.mxu0
      %v1147 = vadd.f32 0.0, %v1146
      %1148 = vdwg.mxu0
      %v1149 = vpack.c.bf16 %v1145, %v1141
      %v1150 = vpack.c.bf16 %v1147, %v1143
      %v1153 = vunpack.c.l.b16 %v1149
      %v1154 = vunpack.c.l.b16 %v1150
      %v1155 = vunpack.c.h.b16 %v1149
      %v1156 = vunpack.c.h.b16 %v1150
      %v1157 = vpack.c.b16 %v1154, %v1153
      %v1158 = vpack.c.b16 %v1156, %v1155
      %vm1159 = vsmask.f32 256
      %vm1160 = vsmask.f32 4368
      %vm1161 = vmor %vm1159, %vm1160
      %v1163 = vshrl.u32 %v1157, 16
      %v1165 = vrot.slane %v1163, 7
      %v1166 = vshll.u32 %v1157, 16
      %v1168 = vor.u32 %v1165, %v1166
      %v1169 = vrot.slane %v1165, 4
      %v1171 = vshrl.u32 %v1158, 16
      %v1173 = vrot.slane %v1171, 7
      %v1174 = vshll.u32 %v1158, 16
      %v1176 = vor.u32 %v1173, %v1174
      %v1177 = vsel %vm1161, %v1169, %v1176
      %v1178 = vrot.slane %v1173, 4
      %vm1182 = vcmask 1043456
      %vm1183 = vsmask.f32 7938
      %vm1184 = vmand %vm1182, %vm1183
      %vm1185 = vcmask 130052
      %vm1186 = vsmask.f32 7954
      %vm1187 = vmand %vm1185, %vm1186
      %vm1188 = vmor %vm1187, %vm1184
      %v1189 = vld [vmem:[%s251] sm:$0xff]
      %v1190 = vsel %vm1188, %v1168, %v1189
      %1191 = vst [vmem:[%s251] sm:$0xff] %v1190
      %vm1192 = vcmask 130052
      %vm1193 = vmor %vm1192, %vm1099
      %1194 = vst.msk [vmem:[%s251 + $0x8] sm:$0xff] %vm1193, %v1177
      %vm1195 = vcmask 1040384
      %vm1196 = vmand %vm1195, %vm1159
      %vm1197 = vcmask 126980
      %vm1198 = vsmask.f32 4352
      %vm1199 = vmand %vm1197, %vm1198
      %vm1200 = vmor %vm1199, %vm1196
      %v1201 = vld [vmem:[%s251 + $0x10] sm:$0x11]
      %v1202 = vsel %vm1200, %v1178, %v1201
      %1203 = vst [vmem:[%s251 + $0x10] sm:$0x11] %v1202
      %v1204 = vld [vmem:[%s251] sm:$0x11]
      %v1205 = vsel %vm1200, 0, %v1204
      %1206 = vst [vmem:[%s251] sm:$0x11] %v1205
      %vm1207 = vmand %vm1195, %vm1183
      %vm1208 = vmand %vm1197, %vm1186
      %vm1209 = vmor %vm1208, %vm1207
      %v1210 = vld [vmem:[%s251 + $0x10] sm:$0x11]
      %v1211 = vsel %vm1209, 0, %v1210
      %1212 = vst [vmem:[%s251 + $0x10] sm:$0x11] %v1211
      %p1213 = scmp.lt.s32.totalorder %s17, 1
      %s1214 = scalar_select %p1213, %s17, 1
      %s1215 = smul.addr %s1214, 6
      %s1216 = smul.addr %s1215, 4
      %s1217 = scalar_lea.vmem %s6, %s1216
      // Predicated region
      $region45: #{net_batchnorm_forward.6} parent=43 // pred_check
        %p1218 = pneg %p166
      $region46: #{net_batchnorm_forward.6} parent=43 // pred_check_branch
        %1220 = sbr.rel (%p1218) target = $region48
      $region47: #{net_batchnorm_forward.6} parent=43 // pred_region
        _
      $region48: #{net_batchnorm_forward.6} parent=43 // pred_fallthru
        _
    $region44: #{net_batchnorm_forward.6} parent=5 // pred_fallthru
      _
    %p1221 = scmp.le.s32.totalorder 2, %s12
    // Predicated region
    $region49: #{net_batchnorm_forward.6} parent=5 // pred_check
      %p1222 = pneg %p1221
    $region50: #{net_batchnorm_forward.6} parent=5 // pred_check_branch
      %1224 = sbr.rel (%p1222) target = $region52
    $region51: #{net_batchnorm_forward.6} parent=5 // pred_region
      %s1225 = ssub.s32 %s12, 2
      // Predicated region
      $region53: #{net_batchnorm_forward.6} parent=51 // pred_check
        %p1226 = pneg %p172
      $region54: #{net_batchnorm_forward.6} parent=51 // pred_check_branch
        %1228 = sbr.rel (%p1226) target = $region56
      $region55: #{net_batchnorm_forward.6} parent=51 // pred_region
        %p1229 = scmp.lt.s32.totalorder %s18, 1
        %s1230 = scalar_select %p1229, %s18, 1
        %s1231 = smul.addr %s1230, 6
        %s1232 = smul.addr %s1231, 4
        %s1233 = scalar_lea.vmem %s6, %s1232
      $region56: #{net_batchnorm_forward.6} parent=51 // pred_fallthru
        _
    $region52: #{net_batchnorm_forward.6} parent=5 // pred_fallthru
      _
  $region6: #{net_batchnorm_forward.6} parent=0 // loop_footer
    %s16 = sadd.s32 1, %s12
  $region7: #{net_batchnorm_forward.6} parent=0 // loop_footer_branch
    %11 = sbr.rel target = $region3
  $region8: #{net_batchnorm_forward.6} parent=0 // loop_exit
    _

// kernel: net_batchnorm_forward.7
$region0: #{net_batchnorm_forward.7}
  #allocation0 [shape = 'u32[]', space=smem, size = 0x4, offset = 0x4, fixed_abs, tag = 'smem constant byte address 0x4 - core index']
  #allocation1 [shape = 'u32[144,128]{1,0:T(1,128)}', space=vmem, size = 0x12000, scoped, tag = 'internal scratch']
  %s0 = inlined_call_operand.vmem [shape: bf16[2,18,144], index: 0, kind: input, shape index: {}]
  %s1 = inlined_call_operand.vmem [shape: bf16[3,144,64], index: 1, kind: input, shape index: {}]
  %s2 = inlined_call_operand.vmem [shape: f32[2,2,64], index: 2, kind: output, shape index: {}]
  %s3 = sld [smem:[#allocation0]]
  $region41: #{net_batchnorm_forward.7} parent=0
    _
  %s5 = ssub.s32 1, %s3
  %s6 = scalar_select 0, %s5, %s3
  loop: start=0, step=1, limit=4
  $region2: #{net_batchnorm_forward.7} parent=0 // loop_pre_header
    _
  $region3: #{net_batchnorm_forward.7} parent=0 // loop_header
    %s8 = sphi 0, %s12
    %p9 = scmp.ge.s32.totalorder %s8, 4
    %s18 = sphi 0, %s20
    %s21 = sphi 0, %s18
    %s22 = sphi 0, %s21
    %s38 = sphi 0, %s22
    %s42 = sphi 0, %s42
    %s44 = sphi 0, %s42
    %s45 = sphi 0, %s44
    %s59 = sphi 0, %s45
    %s65 = sphi 0, %s67
    %s68 = sphi 0, %s65
    %s69 = sphi 0, %s68
    %s85 = sphi 0, %s69
  $region4: #{net_batchnorm_forward.7} parent=0 // loop_header_branch
    %11 = sbr.rel (%p9) target = $region8
  $region5: #{net_batchnorm_forward.7} parent=0 // loop_body
    %s13 = ssub.s32 %s8, 1
    %s14 = ssub.s32 %s8, 2
    %s15 = sadd.s32 %s8, 1
    %s16 = ssub.s32 %s8, %s15
    %p17 = scmp.eq.s32.totalorder %s16, 0
    %s19 = sadd.s32 %s18, 1
    %s20 = scalar_select %p17, %s18, %s19
    %p23 = pneg %p17
    %p24 = scmp.eq.s32.totalorder %s8, 1
    %p25 = por %p23, %p24
    %p26 = scmp.ne.s32.totalorder %s18, %s21
    %p27 = scmp.eq.s32.totalorder %s8, 0
    %p28 = por %p26, %p27
    %p29 = scmp.ne.s32.totalorder %s18, %s21
    %p30 = scmp.eq.s32.totalorder %s13, 1
    %p31 = por %p29, %p30
    %p32 = scmp.ne.s32.totalorder %s21, %s22
    %p33 = scmp.eq.s32.totalorder %s13, 0
    %p34 = por %p32, %p33
    %p35 = scmp.ne.s32.totalorder %s21, %s22
    %p36 = scmp.eq.s32.totalorder %s14, 1
    %p37 = por %p35, %p36
    %p39 = scmp.ne.s32.totalorder %s22, %s38
    %p40 = scmp.eq.s32.totalorder %s14, 0
    %p41 = por %p39, %p40
    %s43 = sadd.s32 %s42, 1
    %p46 = scmp.eq.s32.totalorder %s8, 1
    %p47 = scmp.ne.s32.totalorder %s42, %s44
    %p48 = scmp.eq.s32.totalorder %s8, 0
    %p49 = por %p47, %p48
    %p50 = scmp.ne.s32.totalorder %s42, %s44
    %p51 = scmp.eq.s32.totalorder %s13, 1
    %p52 = por %p50, %p51
    %p53 = scmp.ne.s32.totalorder %s44, %s45
    %p54 = scmp.eq.s32.totalorder %s13, 0
    %p55 = por %p53, %p54
    %p56 = scmp.ne.s32.totalorder %s44, %s45
    %p57 = scmp.eq.s32.totalorder %s14, 1
    %p58 = por %p56, %p57
    %p60 = scmp.ne.s32.totalorder %s45, %s59
    %p61 = scmp.eq.s32.totalorder %s14, 0
    %p62 = por %p60, %p61
    %s63 = ssub.s32 %s8, %s15
    %p64 = scmp.eq.s32.totalorder %s63, 0
    %s66 = sadd.s32 %s65, 1
    %s67 = scalar_select %p64, %s65, %s66
    %p70 = pneg %p64
    %p71 = scmp.eq.s32.totalorder %s8, 1
    %p72 = por %p70, %p71
    %p73 = scmp.ne.s32.totalorder %s65, %s68
    %p74 = scmp.eq.s32.totalorder %s8, 0
    %p75 = por %p73, %p74
    %p76 = scmp.ne.s32.totalorder %s65, %s68
    %p77 = scmp.eq.s32.totalorder %s13, 1
    %p78 = por %p76, %p77
    %p79 = scmp.ne.s32.totalorder %s68, %s69
    %p80 = scmp.eq.s32.totalorder %s13, 0
    %p81 = por %p79, %p80
    %p82 = scmp.ne.s32.totalorder %s68, %s69
    %p83 = scmp.eq.s32.totalorder %s14, 1
    %p84 = por %p82, %p83
    %p86 = scmp.ne.s32.totalorder %s69, %s85
    %p87 = scmp.eq.s32.totalorder %s14, 0
    %p88 = por %p86, %p87
    %p89 = scmp.le.s32.totalorder 1, %s8
    %p90 = scmp.lt.s32.totalorder %s8, 3
    %p91 = pnand %p89, %p90
    %p92 = pneg %p91
    // Predicated region
    $region9: #{net_batchnorm_forward.7} parent=5 // pred_check
      _
    $region10: #{net_batchnorm_forward.7} parent=5 // pred_check_branch
      %94 = sbr.rel (%p91) target = $region12
    $region11: #{net_batchnorm_forward.7} parent=5 // pred_region
      %s95 = ssub.s32 %s8, 1
      // Predicated region
      $region13: #{net_batchnorm_forward.7} parent=11 // pred_check
        %p96 = pneg %p55
      $region14: #{net_batchnorm_forward.7} parent=11 // pred_check_branch
        %98 = sbr.rel (%p96) target = $region16
      $region15: #{net_batchnorm_forward.7} parent=11 // pred_region
        _
      $region16: #{net_batchnorm_forward.7} parent=11 // pred_fallthru
        _
    $region12: #{net_batchnorm_forward.7} parent=5 // pred_fallthru
      _
    %p99 = scmp.lt.s32.totalorder %s8, 2
    // Predicated region
    $region17: #{net_batchnorm_forward.7} parent=5 // pred_check
      %p100 = pneg %p99
    $region18: #{net_batchnorm_forward.7} parent=5 // pred_check_branch
      %102 = sbr.rel (%p100) target = $region20
    $region19: #{net_batchnorm_forward.7} parent=5 // pred_region
      // Predicated region
      $region21: #{net_batchnorm_forward.7} parent=19 // pred_check
        %p103 = pneg %p28
      $region22: #{net_batchnorm_forward.7} parent=19 // pred_check_branch
        %105 = sbr.rel (%p103) target = $region24
      $region23: #{net_batchnorm_forward.7} parent=19 // pred_region
        %p106 = scmp.lt.s32.totalorder %s8, 1
        %s107 = scalar_select %p106, %s8, 1
        %s108 = smul.addr %s107, 6
        %s109 = smul.addr %s108, 4
        %s110 = scalar_lea.vmem %s0, %s109
      $region24: #{net_batchnorm_forward.7} parent=19 // pred_fallthru
        _
    $region20: #{net_batchnorm_forward.7} parent=5 // pred_fallthru
      _
    %p111 = scmp.le.s32.totalorder 1, %s8
    %p112 = scmp.lt.s32.totalorder %s8, 3
    %p113 = pnand %p111, %p112
    %p114 = pneg %p113
    // Predicated region
    $region25: #{net_batchnorm_forward.7} parent=5 // pred_check
      _
    $region26: #{net_batchnorm_forward.7} parent=5 // pred_check_branch
      %116 = sbr.rel (%p113) target = $region28
    $region27: #{net_batchnorm_forward.7} parent=5 // pred_region
      %s117 = ssub.s32 %s8, 1
      %p118 = scmp.lt.s32.totalorder %s13, 1
      %s119 = scalar_select %p118, %s13, 1
      %s120 = smul.addr %s119, 6
      %s121 = smul.addr %s120, 4
      %s122 = scalar_lea.vmem %s0, %s121
      %p123 = pneg %p34
      %p124 = pneg %p31
      %p125 = pneg %p55
      %p126 = pneg %p52
      %p127 = pneg %p81
      %p128 = pneg %p78
      %p129 = scmp.lt.s32.totalorder %s13, 1
      %s130 = scalar_select %p129, %s13, 1
      %s131 = smul.addr %s130, 2
      %s132 = scalar_lea.vmem %s2, %s131
      %p133 = scmp.lt.s32.totalorder %s13, 1
      %s134 = scalar_select %p133, %s13, 1
      %s135 = smul.addr %s134, 6
      %s136 = smul.addr %s135, 4
      %s137 = scalar_lea.vmem %s0, %s136
      %p138 = scmp.lt.s32.totalorder %s13, 1
      %s139 = scalar_select %p138, %s13, 1
      %s140 = smul.addr %s139, 2
      %s141 = scalar_lea.vmem %s2, %s140
      %v143 = vld [vmem:[%s137] sm:$0xff]
      %v144 = vld [vmem:[%s137 + $0x8] sm:$0xff]
      %v145 = vld [vmem:[%s1] sm:$0xf]
      %v146 = vld [vmem:[%s1 + $0x4] sm:$0xf]
      %v147 = vld [vmem:[%s1 + $0x8] sm:$0xf]
      %v148 = vld [vmem:[%s1 + $0xc] sm:$0xf]
      %v149 = vld [vmem:[%s1 + $0x10] sm:$0xf]
      %v150 = vld [vmem:[%s1 + $0x14] sm:$0xf]
      %v151 = vld [vmem:[%s1 + $0x18] sm:$0xf]
      %v152 = vld [vmem:[%s1 + $0x1c] sm:$0xf]
      %v153 = vld [vmem:[%s1 + $0x20] sm:$0xf]
      %v154 = vld [vmem:[%s1 + $0x24] sm:$0xf]
      %v155 = vld [vmem:[%s1 + $0x28] sm:$0xf]
      %v156 = vld [vmem:[%s1 + $0x2c] sm:$0xf]
      %v157 = vld [vmem:[%s1 + $0x30] sm:$0xf]
      %v158 = vld [vmem:[%s1 + $0x34] sm:$0xf]
      %v159 = vld [vmem:[%s1 + $0x38] sm:$0xf]
      %v160 = vld [vmem:[%s1 + $0x3c] sm:$0xf]
      %v161 = vld [vmem:[%s1 + $0x40] sm:$0xf]
      %v162 = vld [vmem:[%s1 + $0x44] sm:$0xf]
      %v163 = vld [vmem:[%s137 + $0x10] sm:$0x11]
      %s164 = scalar_lea.vmem %s1, 72
      %v165 = vld [vmem:[%s164] sm:$0xf]
      %v166 = vld [vmem:[%s164 + $0x4] sm:$0xf]
      %v167 = vld [vmem:[%s164 + $0x8] sm:$0xf]
      %v168 = vld [vmem:[%s164 + $0xc] sm:$0xf]
      %v169 = vld [vmem:[%s164 + $0x10] sm:$0xf]
      %v170 = vld [vmem:[%s164 + $0x14] sm:$0xf]
      %v171 = vld [vmem:[%s164 + $0x18] sm:$0xf]
      %v172 = vld [vmem:[%s164 + $0x1c] sm:$0xf]
      %v173 = vld [vmem:[%s164 + $0x20] sm:$0xf]
      %v174 = vld [vmem:[%s164 + $0x24] sm:$0xf]
      %v175 = vld [vmem:[%s164 + $0x28] sm:$0xf]
      %v176 = vld [vmem:[%s164 + $0x2c] sm:$0xf]
      %v177 = vld [vmem:[%s164 + $0x30] sm:$0xf]
      %v178 = vld [vmem:[%s164 + $0x34] sm:$0xf]
      %v179 = vld [vmem:[%s164 + $0x38] sm:$0xf]
      %v180 = vld [vmem:[%s164 + $0x3c] sm:$0xf]
      %v181 = vld [vmem:[%s164 + $0x40] sm:$0xf]
      %v182 = vld [vmem:[%s164 + $0x44] sm:$0xf]
      %v186 = vunpack.c.l.b16 %v143
      %v187 = vunpack.c.h.b16 %v143
      %v188 = vunpack.c.l.b16 %v144
      %v189 = vunpack.c.h.b16 %v144
      %v190 = vunpack.c.l.b16 %v163
      %v191 = vunpack.c.h.b16 %v163
      %v192 = vpack.c.b16 %v188, %v186
      %v193 = vpack.c.b16 %v189, %v187
      %v194 = vpack.c.b16 %v190, %v190
      %v195 = vpack.c.b16 %v191, %v191
      %vm196 = vsmask.f32 7424
      %v198 = vshrl.u32 %v192, 16
      %v200 = vshll.u32 %v192, 16
      %v202 = vrot.slane %v200, 1
      %v203 = vor.u32 %v198, %v202
      %v205 = vshll.u32 %v194, 16
      %v207 = vrot.slane %v205, 1
      %v208 = vsel %vm196, %v203, %v207
      %v210 = vshrl.u32 %v193, 16
      %v212 = vshll.u32 %v193, 16
      %v214 = vrot.slane %v212, 1
      %v215 = vor.u32 %v210, %v214
      %v217 = vshll.u32 %v195, 16
      %v219 = vrot.slane %v217, 1
      %v220 = vsel %vm196, %v215, %v219
      %v240 = vunpack.c.l.b16 %v165
      %v241 = vunpack.c.l.b16 %v166
      %v242 = vunpack.c.l.b16 %v167
      %v243 = vunpack.c.l.b16 %v168
      %v244 = vunpack.c.l.b16 %v169
      %v245 = vunpack.c.l.b16 %v170
      %v246 = vunpack.c.l.b16 %v171
      %v247 = vunpack.c.l.b16 %v172
      %v248 = vunpack.c.l.b16 %v173
      %v249 = vunpack.c.l.b16 %v174
      %v250 = vunpack.c.l.b16 %v175
      %v251 = vunpack.c.l.b16 %v176
      %v252 = vunpack.c.l.b16 %v177
      %v253 = vunpack.c.l.b16 %v178
      %v254 = vunpack.c.l.b16 %v179
      %v255 = vunpack.c.l.b16 %v180
      %v256 = vunpack.c.l.b16 %v181
      %v257 = vunpack.c.l.b16 %v182
      %v258 = vpack.c.b16 %v241, %v240
      %v259 = vpack.c.b16 %v243, %v242
      %v260 = vpack.c.b16 %v245, %v244
      %v261 = vpack.c.b16 %v247, %v246
      %v262 = vpack.c.b16 %v249, %v248
      %v263 = vpack.c.b16 %v251, %v250
      %v264 = vpack.c.b16 %v253, %v252
      %v265 = vpack.c.b16 %v255, %v254
      %v266 = vpack.c.b16 %v257, %v256
      %vm276 = vcmask 130048
      %v278 = vsel %vm276, %v220, 0
      %280 = vmatprep.subr.bf16.mxu0 0
      %281 = vmatpush1.bf16.msra.mxu0 %v265
      %282 = vmatprep.subr.bf16.mxu0 0
      %283 = vmatpush1.bf16.msra.mxu0 %v264
      %284 = vmatprep.subr.bf16.mxu0 0
      %285 = vmatpush1.bf16.msra.mxu0 %v263
      %286 = vmatprep.subr.bf16.mxu0 0
      %287 = vmatpush1.bf16.msra.mxu0 %v262
      %288 = vmatprep.subr.bf16.mxu0 0
      %289 = vmatpush1.bf16.msra.mxu0 %v261
      %290 = vmatprep.subr.bf16.mxu0 0
      %291 = vmatpush1.bf16.msra.mxu0 %v260
      %292 = vmatprep.subr.bf16.mxu0 0
      %293 = vmatpush1.bf16.msra.mxu0 %v259
      %294 = vmatprep.subr.bf16.mxu0 0
      %295 = vmatpush1.bf16.msra.mxu0 %v258
      %296 = vmatprep.subr.bf16.mxu0 0
      %297 = vmatpush2.bf16.msra.mxu0 0
      %298 = vmatprep.subr.bf16.mxu0 0
      %299 = vmatpush2.bf16.msra.mxu0 0
      %300 = vmatprep.subr.bf16.mxu0 0
      %301 = vmatpush2.bf16.msra.mxu0 0
      %302 = vmatprep.subr.bf16.mxu0 0
      %303 = vmatpush2.bf16.msra.mxu0 0
      %304 = vmatprep.subr.bf16.mxu0 0
      %305 = vmatpush2.bf16.msra.mxu0 0
      %306 = vmatprep.subr.bf16.mxu0 0
      %307 = vmatpush2.bf16.msra.mxu0 0
      %308 = vmatprep.subr.bf16.mxu0 0
      %309 = vmatpush2.bf16.msra.mxu0 0
      %310 = vmatprep.subr.bf16.mxu0 0
      %311 = vmatpush2.bf16.msra.mxu0 %v266
      %312 = vmatprep.mubr.bf16.mxu0 %v278
      %313 = vmatmul.mubr.bf16.gmra.mxu0 %v208
      %v314 = vpop.f32.mrf.mxu0
      %v315 = vadd.f32 0.0, %v314
      %v316 = vpop.f32.mrf.mxu0
      %v317 = vpop.f32.mrf.mxu0
      %v318 = vadd.f32 0.0, %v317
      %v319 = vpop.f32.mrf.mxu0
      %320 = vdwg.mxu0
      %v340 = vunpack.c.l.b16 %v145
      %v341 = vunpack.c.l.b16 %v146
      %v342 = vunpack.c.l.b16 %v147
      %v343 = vunpack.c.l.b16 %v148
      %v344 = vunpack.c.l.b16 %v149
      %v345 = vunpack.c.l.b16 %v150
      %v346 = vunpack.c.l.b16 %v151
      %v347 = vunpack.c.l.b16 %v152
      %v348 = vunpack.c.l.b16 %v153
      %v349 = vunpack.c.l.b16 %v154
      %v350 = vunpack.c.l.b16 %v155
      %v351 = vunpack.c.l.b16 %v156
      %v352 = vunpack.c.l.b16 %v157
      %v353 = vunpack.c.l.b16 %v158
      %v354 = vunpack.c.l.b16 %v159
      %v355 = vunpack.c.l.b16 %v160
      %v356 = vunpack.c.l.b16 %v161
      %v357 = vunpack.c.l.b16 %v162
      %v358 = vpack.c.b16 %v341, %v340
      %v359 = vpack.c.b16 %v343, %v342
      %v360 = vpack.c.b16 %v345, %v344
      %v361 = vpack.c.b16 %v347, %v346
      %v362 = vpack.c.b16 %v349, %v348
      %v363 = vpack.c.b16 %v351, %v350
      %v364 = vpack.c.b16 %v353, %v352
      %v365 = vpack.c.b16 %v355, %v354
      %v366 = vpack.c.b16 %v357, %v356
      %v376 = vsel %vm276, %v193, 0
      %378 = vmatprep.subr.bf16.mxu0 0
      %379 = vmatpush1.bf16.msra.mxu0 %v365
      %380 = vmatprep.subr.bf16.mxu0 0
      %381 = vmatpush1.bf16.msra.mxu0 %v364
      %382 = vmatprep.subr.bf16.mxu0 0
      %383 = vmatpush1.bf16.msra.mxu0 %v363
      %384 = vmatprep.subr.bf16.mxu0 0
      %385 = vmatpush1.bf16.msra.mxu0 %v362
      %386 = vmatprep.subr.bf16.mxu0 0
      %387 = vmatpush1.bf16.msra.mxu0 %v361
      %388 = vmatprep.subr.bf16.mxu0 0
      %389 = vmatpush1.bf16.msra.mxu0 %v360
      %390 = vmatprep.subr.bf16.mxu0 0
      %391 = vmatpush1.bf16.msra.mxu0 %v359
      %392 = vmatprep.subr.bf16.mxu0 0
      %393 = vmatpush1.bf16.msra.mxu0 %v358
      %394 = vmatprep.subr.bf16.mxu0 0
      %395 = vmatpush2.bf16.msra.mxu0 0
      %396 = vmatprep.subr.bf16.mxu0 0
      %397 = vmatpush2.bf16.msra.mxu0 0
      %398 = vmatprep.subr.bf16.mxu0 0
      %399 = vmatpush2.bf16.msra.mxu0 0
      %400 = vmatprep.subr.bf16.mxu0 0
      %401 = vmatpush2.bf16.msra.mxu0 0
      %402 = vmatprep.subr.bf16.mxu0 0
      %403 = vmatpush2.bf16.msra.mxu0 0
      %404 = vmatprep.subr.bf16.mxu0 0
      %405 = vmatpush2.bf16.msra.mxu0 0
      %406 = vmatprep.subr.bf16.mxu0 0
      %407 = vmatpush2.bf16.msra.mxu0 0
      %408 = vmatprep.subr.bf16.mxu0 0
      %409 = vmatpush2.bf16.msra.mxu0 %v366
      %410 = vmatprep.mubr.bf16.mxu0 %v376
      %411 = vmatmul.mubr.bf16.gmra.mxu0 %v192
      %v412 = vpop.f32.mrf.mxu0
      %v413 = vadd.f32 %v315, %v412
      %v414 = vpop.f32.mrf.mxu0
      %v415 = vpop.f32.mrf.mxu0
      %v416 = vadd.f32 %v318, %v415
      %v417 = vpop.f32.mrf.mxu0
      %418 = vdwg.mxu0
      %v419 = vld [vmem:[%s137] sm:$0xee]
      %s420 = scalar_lea.vmem %s1, 144
      %v421 = vld [vmem:[%s420] sm:$0xf]
      %v422 = vld [vmem:[%s420 + $0x4] sm:$0xf]
      %v423 = vld [vmem:[%s420 + $0x8] sm:$0xf]
      %v424 = vld [vmem:[%s420 + $0xc] sm:$0xf]
      %v425 = vld [vmem:[%s420 + $0x10] sm:$0xf]
      %v426 = vld [vmem:[%s420 + $0x14] sm:$0xf]
      %v427 = vld [vmem:[%s420 + $0x18] sm:$0xf]
      %v428 = vld [vmem:[%s420 + $0x1c] sm:$0xf]
      %v429 = vld [vmem:[%s420 + $0x20] sm:$0xf]
      %v430 = vld [vmem:[%s420 + $0x24] sm:$0xf]
      %v431 = vld [vmem:[%s420 + $0x28] sm:$0xf]
      %v432 = vld [vmem:[%s420 + $0x2c] sm:$0xf]
      %v433 = vld [vmem:[%s420 + $0x30] sm:$0xf]
      %v434 = vld [vmem:[%s420 + $0x34] sm:$0xf]
      %v435 = vld [vmem:[%s420 + $0x38] sm:$0xf]
      %v436 = vld [vmem:[%s420 + $0x3c] sm:$0xf]
      %v437 = vld [vmem:[%s420 + $0x40] sm:$0xf]
      %v438 = vld [vmem:[%s420 + $0x44] sm:$0xf]
      %v440 = vunpack.c.l.b16 %v419
      %v441 = vunpack.c.h.b16 %v419
      %v442 = vpack.c.b16 %v188, %v440
      %v443 = vpack.c.b16 %v189, %v441
      %vm444 = vcmask 1046528
      %v445 = vrot.slane %v442, 1
      %v446 = vrot.slane %v194, 1
      %v447 = vsel %vm444, %v445, %v446
      %v448 = vrot.slane %v443, 1
      %v449 = vrot.slane %v195, 1
      %v450 = vsel %vm444, %v448, %v449
      %v470 = vunpack.c.l.b16 %v421
      %v471 = vunpack.c.l.b16 %v422
      %v472 = vunpack.c.l.b16 %v423
      %v473 = vunpack.c.l.b16 %v424
      %v474 = vunpack.c.l.b16 %v425
      %v475 = vunpack.c.l.b16 %v426
      %v476 = vunpack.c.l.b16 %v427
      %v477 = vunpack.c.l.b16 %v428
      %v478 = vunpack.c.l.b16 %v429
      %v479 = vunpack.c.l.b16 %v430
      %v480 = vunpack.c.l.b16 %v431
      %v481 = vunpack.c.l.b16 %v432
      %v482 = vunpack.c.l.b16 %v433
      %v483 = vunpack.c.l.b16 %v434
      %v484 = vunpack.c.l.b16 %v435
      %v485 = vunpack.c.l.b16 %v436
      %v486 = vunpack.c.l.b16 %v437
      %v487 = vunpack.c.l.b16 %v438
      %v488 = vpack.c.b16 %v471, %v470
      %v489 = vpack.c.b16 %v473, %v472
      %v490 = vpack.c.b16 %v475, %v474
      %v491 = vpack.c.b16 %v477, %v476
      %v492 = vpack.c.b16 %v479, %v478
      %v493 = vpack.c.b16 %v481, %v480
      %v494 = vpack.c.b16 %v483, %v482
      %v495 = vpack.c.b16 %v485, %v484
      %v496 = vpack.c.b16 %v487, %v486
      %v507 = vsel %vm276, %v450, 0
      %509 = vmatprep.subr.bf16.mxu0 0
      %510 = vmatpush1.bf16.msra.mxu0 %v495
      %511 = vmatprep.subr.bf16.mxu0 0
      %512 = vmatpush1.bf16.msra.mxu0 %v494
      %513 = vmatprep.subr.bf16.mxu0 0
      %514 = vmatpush1.bf16.msra.mxu0 %v493
      %515 = vmatprep.subr.bf16.mxu0 0
      %516 = vmatpush1.bf16.msra.mxu0 %v492
      %517 = vmatprep.subr.bf16.mxu0 0
      %518 = vmatpush1.bf16.msra.mxu0 %v491
      %519 = vmatprep.subr.bf16.mxu0 0
      %520 = vmatpush1.bf16.msra.mxu0 %v490
      %521 = vmatprep.subr.bf16.mxu0 0
      %522 = vmatpush1.bf16.msra.mxu0 %v489
      %523 = vmatprep.subr.bf16.mxu0 0
      %524 = vmatpush1.bf16.msra.mxu0 %v488
      %525 = vmatprep.subr.bf16.mxu0 0
      %526 = vmatpush2.bf16.msra.mxu0 0
      %527 = vmatprep.subr.bf16.mxu0 0
      %528 = vmatpush2.bf16.msra.mxu0 0
      %529 = vmatprep.subr.bf16.mxu0 0
      %530 = vmatpush2.bf16.msra.mxu0 0
      %531 = vmatprep.subr.bf16.mxu0 0
      %532 = vmatpush2.bf16.msra.mxu0 0
      %533 = vmatprep.subr.bf16.mxu0 0
      %534 = vmatpush2.bf16.msra.mxu0 0
      %535 = vmatprep.subr.bf16.mxu0 0
      %536 = vmatpush2.bf16.msra.mxu0 0
      %537 = vmatprep.subr.bf16.mxu0 0
      %538 = vmatpush2.bf16.msra.mxu0 0
      %539 = vmatprep.subr.bf16.mxu0 0
      %540 = vmatpush2.bf16.msra.mxu0 %v496
      %541 = vmatprep.mubr.bf16.mxu0 %v507
      %542 = vmatmul.mubr.bf16.gmra.mxu0 %v447
      %v543 = vpop.f32.mrf.mxu0
      %v544 = vadd.f32 0.0, %v543
      %v545 = vpop.f32.mrf.mxu0
      %v546 = vpop.f32.mrf.mxu0
      %v547 = vadd.f32 0.0, %v546
      %v548 = vpop.f32.mrf.mxu0
      %549 = vdwg.mxu0
      %v550 = vadd.f32 %v413, %v544
      %v551 = vadd.f32 %v416, %v547
      %vm552 = vcmask 523264
      %v553 = vsel %vm552, %v550, 0.0
      %v554 = vsel %vm552, %v551, 0.0
      %v555 = vadd.f32 %v553, %v554
      %v556 = vrot.slane %v555, 4
      %v557 = vadd.f32 %v555, %v556
      %v558 = vrot.slane %v557, 2
      %v559 = vadd.f32 %v557, %v558
      %v560 = vrot.slane %v559, 1
      %v561 = vadd.f32 %v559, %v560
      %v562 = vmul.f32 %v550, %v550
      %v563 = vmul.f32 %v551, %v551
      %v564 = vsel %vm552, %v562, 0.0
      %v565 = vsel %vm552, %v563, 0.0
      %v566 = vadd.f32 %v564, %v565
      %v567 = vrot.slane %v566, 4
      %v568 = vadd.f32 %v566, %v567
      %v569 = vrot.slane %v568, 2
      %v570 = vadd.f32 %v568, %v569
      %v571 = vrot.slane %v570, 1
      %v572 = vadd.f32 %v570, %v571
      %vm573 = vcmask 1040384
      %v574 = vsel %vm573, %v561, %v572
      %vm575 = vcmask 517120
      %576 = vst.msk [vmem:[%s141] sm:$0x3] %vm575, %v574
      %p577 = scmp.lt.s32.totalorder %s13, 1
      %s578 = scalar_select %p577, %s13, 1
      %s579 = smul.addr %s578, 2
      %s580 = scalar_lea.vmem %s2, %s579
      // Predicated region
      $region29: #{net_batchnorm_forward.7} parent=27 // pred_check
        %p581 = pneg %p78
      $region30: #{net_batchnorm_forward.7} parent=27 // pred_check_branch
        %583 = sbr.rel (%p581) target = $region32
      $region31: #{net_batchnorm_forward.7} parent=27 // pred_region
        _
      $region32: #{net_batchnorm_forward.7} parent=27 // pred_fallthru
        _
    $region28: #{net_batchnorm_forward.7} parent=5 // pred_fallthru
      _
    %p584 = scmp.le.s32.totalorder 2, %s8
    // Predicated region
    $region33: #{net_batchnorm_forward.7} parent=5 // pred_check
      %p585 = pneg %p584
    $region34: #{net_batchnorm_forward.7} parent=5 // pred_check_branch
      %587 = sbr.rel (%p585) target = $region36
    $region35: #{net_batchnorm_forward.7} parent=5 // pred_region
      %s588 = ssub.s32 %s8, 2
      // Predicated region
      $region37: #{net_batchnorm_forward.7} parent=35 // pred_check
        %p589 = pneg %p84
      $region38: #{net_batchnorm_forward.7} parent=35 // pred_check_branch
        %591 = sbr.rel (%p589) target = $region40
      $region39: #{net_batchnorm_forward.7} parent=35 // pred_region
        %p592 = scmp.lt.s32.totalorder %s14, 1
        %s593 = scalar_select %p592, %s14, 1
        %s594 = smul.addr %s593, 2
        %s595 = scalar_lea.vmem %s2, %s594
      $region40: #{net_batchnorm_forward.7} parent=35 // pred_fallthru
        _
    $region36: #{net_batchnorm_forward.7} parent=5 // pred_fallthru
      _
  $region6: #{net_batchnorm_forward.7} parent=0 // loop_footer
    %s12 = sadd.s32 1, %s8
  $region7: #{net_batchnorm_forward.7} parent=0 // loop_footer_branch
    %7 = sbr.rel target = $region3
  $region8: #{net_batchnorm_forward.7} parent=0 // loop_exit
    _

// kernel: tile.33
$region0: #{tile.33}
  #allocation0 [shape = 's32[1]{0}', space=sflag, size = 0x4, scoped, tag = 'scoped memory for tile.33']
  %s0 = inlined_call_operand.vmem [shape: f32[4], index: 0, kind: input, shape index: {}]
  %s1 = inlined_call_operand.vmem [shape: f32[16,4], index: 1, kind: output, shape index: {}]
  // Predicated region
  $region2: #{tile.33} parent=0 // pred_check
    _
  $region3: #{tile.33} parent=0 // pred_check_branch
    %3 = sbr.rel (0) target = $region5
  $region4: #{tile.33} parent=0 // pred_region
    _
  $region5: #{tile.33} parent=0 // pred_fallthru
    _
  %v4 = vld [vmem:[%s0] ss:$0 sm:$0xff]
  %5 = vst [vmem:[%s1] sm:$0xff] %v4
  %s6 = scalar_lea.vmem %s1, 8
  %7 = vst [vmem:[%s6] sm:$0xff] %v4

// kernel: tile.34
$region0: #{tile.34}
  %s0 = inlined_call_operand.vmem [shape: f32[16,4], index: 0, kind: input, shape index: {}]
  %s1 = inlined_call_operand.vmem [shape: f32[1,64], index: 1, kind: output, shape index: {}]
  $region1: #{tile.34} parent=0
    #allocation0 [shape = 'u8[4096]{0}', space=vmem, size = 0x1000, scoped, tag = 'scoped mem for output reshape']
    %v2 = vld [vmem:[%s0] sm:$0x1]
    %vm3 = vcmask 31744
    %4 = vst.msk [vmem:[#allocation0] sm:$0x1] %vm3, %v2
    %s5 = scalar_lea.vmem %s0, 15
    %v6 = vld [vmem:[%s5] sm:$0x1]
    %7 = vrot.lane.b32.xlu0 %v6, 60
    %v8 = vpop.permute.xlu0 %7
    %vm9 = vcmask 523744
    %10 = vst.msk [vmem:[#allocation0] sm:$0x1] %vm9, %v8
    %s11 = scalar_lea.vmem %s0, 14
    %v12 = vld [vmem:[%s11] sm:$0x1]
    %13 = vrot.lane.b32.xlu0 %v12, 56
    %v14 = vpop.permute.xlu0 %13
    %vm15 = vcmask 490944
    %16 = vst.msk [vmem:[#allocation0] sm:$0x1] %vm15, %v14
    %s17 = scalar_lea.vmem %s0, 13
    %v18 = vld [vmem:[%s17] sm:$0x1]
    %19 = vrot.lane.b32.xlu0 %v18, 52
    %v20 = vpop.permute.xlu0 %19
    %vm21 = vcmask 458144
    %22 = vst.msk [vmem:[#allocation0] sm:$0x1] %vm21, %v20
    %s23 = scalar_lea.vmem %s0, 12
    %v24 = vld [vmem:[%s23] sm:$0x1]
    %25 = vrot.lane.b32.xlu0 %v24, 48
    %v26 = vpop.permute.xlu0 %25
    %vm27 = vcmask 425344
    %28 = vst.msk [vmem:[#allocation0] sm:$0x1] %vm27, %v26
    %s29 = scalar_lea.vmem %s0, 11
    %v30 = vld [vmem:[%s29] sm:$0x1]
    %31 = vrot.lane.b32.xlu0 %v30, 44
    %v32 = vpop.permute.xlu0 %31
    %vm33 = vcmask 392544
    %34 = vst.msk [vmem:[#allocation0] sm:$0x1] %vm33, %v32
    %s35 = scalar_lea.vmem %s0, 10
    %v36 = vld [vmem:[%s35] sm:$0x1]
    %37 = vrot.lane.b32.xlu0 %v36, 40
    %v38 = vpop.permute.xlu0 %37
    %vm39 = vcmask 359744
    %40 = vst.msk [vmem:[#allocation0] sm:$0x1] %vm39, %v38
    %s41 = scalar_lea.vmem %s0, 9
    %v42 = vld [vmem:[%s41] sm:$0x1]
    %43 = vrot.lane.b32.xlu0 %v42, 36
    %v44 = vpop.permute.xlu0 %43
    %vm45 = vcmask 326944
    %46 = vst.msk [vmem:[#allocation0] sm:$0x1] %vm45, %v44
    %s47 = scalar_lea.vmem %s0, 8
    %v48 = vld [vmem:[%s47] sm:$0x1]
    %49 = vrot.lane.b32.xlu0 %v48, 32
    %v50 = vpop.permute.xlu0 %49
    %vm51 = vcmask 294144
    %52 = vst.msk [vmem:[#allocation0] sm:$0x1] %vm51, %v50
    %s53 = scalar_lea.vmem %s0, 7
    %v54 = vld [vmem:[%s53] sm:$0x1]
    %55 = vrot.lane.b32.xlu0 %v54, 28
    %v56 = vpop.permute.xlu0 %55
    %vm57 = vcmask 261344
    %58 = vst.msk [vmem:[#allocation0] sm:$0x1] %vm57, %v56
    %s59 = scalar_lea.vmem %s0, 6
    %v60 = vld [vmem:[%s59] sm:$0x1]
    %61 = vrot.lane.b32.xlu0 %v60, 24
    %v62 = vpop.permute.xlu0 %61
    %vm63 = vcmask 228544
    %64 = vst.msk [vmem:[#allocation0] sm:$0x1] %vm63, %v62
    %s65 = scalar_lea.vmem %s0, 5
    %v66 = vld [vmem:[%s65] sm:$0x1]
    %67 = vrot.lane.b32.xlu0 %v66, 20
    %v68 = vpop.permute.xlu0 %67
    %vm69 = vcmask 195744
    %70 = vst.msk [vmem:[#allocation0] sm:$0x1] %vm69, %v68
    %s71 = scalar_lea.vmem %s0, 4
    %v72 = vld [vmem:[%s71] sm:$0x1]
    %73 = vrot.lane.b32.xlu0 %v72, 16
    %v74 = vpop.permute.xlu0 %73
    %vm75 = vcmask 162944
    %76 = vst.msk [vmem:[#allocation0] sm:$0x1] %vm75, %v74
    %s77 = scalar_lea.vmem %s0, 3
    %v78 = vld [vmem:[%s77] sm:$0x1]
    %79 = vrot.lane.b32.xlu0 %v78, 12
    %v80 = vpop.permute.xlu0 %79
    %vm81 = vcmask 130144
    %82 = vst.msk [vmem:[#allocation0] sm:$0x1] %vm81, %v80
    %s83 = scalar_lea.vmem %s0, 2
    %v84 = vld [vmem:[%s83] sm:$0x1]
    %85 = vrot.lane.b32.xlu0 %v84, 8
    %v86 = vpop.permute.xlu0 %85
    %vm87 = vcmask 97344
    %88 = vst.msk [vmem:[#allocation0] sm:$0x1] %vm87, %v86
    %s89 = scalar_lea.vmem %s0, 1
    %v90 = vld [vmem:[%s89] sm:$0x1]
    %91 = vrot.lane.b32.xlu0 %v90, 4
    %v92 = vpop.permute.xlu0 %91
    %vm93 = vcmask 64544
    %94 = vst.msk [vmem:[#allocation0] sm:$0x1] %vm93, %v92
    %s96 = sshll.u32 1, 1
    %s97 = ssub.s32 %s96, 1
    %v99 = vld [vmem:[#allocation0] sm:%s97]
    %s100 = sshll.u32 1, 1
    %s101 = ssub.s32 %s100, 1
    %102 = vst [vmem:[%s1] sm:%s101] %v99

// kernel: net_batchnorm_forward.8
$region0: #{net_batchnorm_forward.8}
  #allocation0 [shape = 'u32[]', space=smem, size = 0x4, offset = 0x4, fixed_abs, tag = 'smem constant byte address 0x4 - core index']
  #allocation1 [shape = 'u32[144,128]{1,0:T(1,128)}', space=vmem, size = 0x12000, scoped, tag = 'internal scratch']
  %s0 = inlined_call_operand.vmem [shape: bf16[2,18,144], index: 0, kind: input, shape index: {}]
  %s1 = inlined_call_operand.vmem [shape: bf16[3,144,64], index: 1, kind: input, shape index: {}]
  %s2 = inlined_call_operand.vmem [shape: f32[1,64], index: 2, kind: input, shape index: {}]
  %s3 = inlined_call_operand.vmem [shape: f32[1,64], index: 3, kind: input, shape index: {}]
  %s4 = inlined_call_operand.vmem [shape: bf16[8,15], index: 4, kind: input, shape index: {}]
  %s5 = inlined_call_operand.vmem [shape: bf16[60,32], index: 5, kind: input, shape index: {}]
  %s6 = inlined_call_operand.vmem [shape: bf16[2,8,32], index: 6, kind: output, shape index: {}]
  %s7 = sld [smem:[#allocation0]]
  $region57: #{net_batchnorm_forward.8} parent=0
    _
  %s9 = ssub.s32 1, %s7
  %s10 = scalar_select 0, %s9, %s7
  loop: start=0, step=1, limit=4
  $region2: #{net_batchnorm_forward.8} parent=0 // loop_pre_header
    _
  $region3: #{net_batchnorm_forward.8} parent=0 // loop_header
    %s12 = sphi 0, %s16
    %p13 = scmp.ge.s32.totalorder %s12, 4
    %s22 = sphi 0, %s24
    %s25 = sphi 0, %s22
    %s26 = sphi 0, %s25
    %s42 = sphi 0, %s26
    %s46 = sphi 0, %s46
    %s48 = sphi 0, %s46
    %s49 = sphi 0, %s48
    %s63 = sphi 0, %s49
    %s67 = sphi 0, %s67
    %s69 = sphi 0, %s67
    %s70 = sphi 0, %s69
    %s84 = sphi 0, %s70
    %s88 = sphi 0, %s88
    %s90 = sphi 0, %s88
    %s91 = sphi 0, %s90
    %s105 = sphi 0, %s91
    %s109 = sphi 0, %s109
    %s111 = sphi 0, %s109
    %s112 = sphi 0, %s111
    %s126 = sphi 0, %s112
    %s130 = sphi 0, %s130
    %s132 = sphi 0, %s130
    %s133 = sphi 0, %s132
    %s147 = sphi 0, %s133
    %s153 = sphi 0, %s155
    %s156 = sphi 0, %s153
    %s157 = sphi 0, %s156
    %s173 = sphi 0, %s157
  $region4: #{net_batchnorm_forward.8} parent=0 // loop_header_branch
    %15 = sbr.rel (%p13) target = $region8
  $region5: #{net_batchnorm_forward.8} parent=0 // loop_body
    %s17 = ssub.s32 %s12, 1
    %s18 = ssub.s32 %s12, 2
    %s19 = sadd.s32 %s12, 1
    %s20 = ssub.s32 %s12, %s19
    %p21 = scmp.eq.s32.totalorder %s20, 0
    %s23 = sadd.s32 %s22, 1
    %s24 = scalar_select %p21, %s22, %s23
    %p27 = pneg %p21
    %p28 = scmp.eq.s32.totalorder %s12, 1
    %p29 = por %p27, %p28
    %p30 = scmp.ne.s32.totalorder %s22, %s25
    %p31 = scmp.eq.s32.totalorder %s12, 0
    %p32 = por %p30, %p31
    %p33 = scmp.ne.s32.totalorder %s22, %s25
    %p34 = scmp.eq.s32.totalorder %s17, 1
    %p35 = por %p33, %p34
    %p36 = scmp.ne.s32.totalorder %s25, %s26
    %p37 = scmp.eq.s32.totalorder %s17, 0
    %p38 = por %p36, %p37
    %p39 = scmp.ne.s32.totalorder %s25, %s26
    %p40 = scmp.eq.s32.totalorder %s18, 1
    %p41 = por %p39, %p40
    %p43 = scmp.ne.s32.totalorder %s26, %s42
    %p44 = scmp.eq.s32.totalorder %s18, 0
    %p45 = por %p43, %p44
    %s47 = sadd.s32 %s46, 1
    %p50 = scmp.eq.s32.totalorder %s12, 1
    %p51 = scmp.ne.s32.totalorder %s46, %s48
    %p52 = scmp.eq.s32.totalorder %s12, 0
    %p53 = por %p51, %p52
    %p54 = scmp.ne.s32.totalorder %s46, %s48
    %p55 = scmp.eq.s32.totalorder %s17, 1
    %p56 = por %p54, %p55
    %p57 = scmp.ne.s32.totalorder %s48, %s49
    %p58 = scmp.eq.s32.totalorder %s17, 0
    %p59 = por %p57, %p58
    %p60 = scmp.ne.s32.totalorder %s48, %s49
    %p61 = scmp.eq.s32.totalorder %s18, 1
    %p62 = por %p60, %p61
    %p64 = scmp.ne.s32.totalorder %s49, %s63
    %p65 = scmp.eq.s32.totalorder %s18, 0
    %p66 = por %p64, %p65
    %s68 = sadd.s32 %s67, 1
    %p71 = scmp.eq.s32.totalorder %s12, 1
    %p72 = scmp.ne.s32.totalorder %s67, %s69
    %p73 = scmp.eq.s32.totalorder %s12, 0
    %p74 = por %p72, %p73
    %p75 = scmp.ne.s32.totalorder %s67, %s69
    %p76 = scmp.eq.s32.totalorder %s17, 1
    %p77 = por %p75, %p76
    %p78 = scmp.ne.s32.totalorder %s69, %s70
    %p79 = scmp.eq.s32.totalorder %s17, 0
    %p80 = por %p78, %p79
    %p81 = scmp.ne.s32.totalorder %s69, %s70
    %p82 = scmp.eq.s32.totalorder %s18, 1
    %p83 = por %p81, %p82
    %p85 = scmp.ne.s32.totalorder %s70, %s84
    %p86 = scmp.eq.s32.totalorder %s18, 0
    %p87 = por %p85, %p86
    %s89 = sadd.s32 %s88, 1
    %p92 = scmp.eq.s32.totalorder %s12, 1
    %p93 = scmp.ne.s32.totalorder %s88, %s90
    %p94 = scmp.eq.s32.totalorder %s12, 0
    %p95 = por %p93, %p94
    %p96 = scmp.ne.s32.totalorder %s88, %s90
    %p97 = scmp.eq.s32.totalorder %s17, 1
    %p98 = por %p96, %p97
    %p99 = scmp.ne.s32.totalorder %s90, %s91
    %p100 = scmp.eq.s32.totalorder %s17, 0
    %p101 = por %p99, %p100
    %p102 = scmp.ne.s32.totalorder %s90, %s91
    %p103 = scmp.eq.s32.totalorder %s18, 1
    %p104 = por %p102, %p103
    %p106 = scmp.ne.s32.totalorder %s91, %s105
    %p107 = scmp.eq.s32.totalorder %s18, 0
    %p108 = por %p106, %p107
    %s110 = sadd.s32 %s109, 1
    %p113 = scmp.eq.s32.totalorder %s12, 1
    %p114 = scmp.ne.s32.totalorder %s109, %s111
    %p115 = scmp.eq.s32.totalorder %s12, 0
    %p116 = por %p114, %p115
    %p117 = scmp.ne.s32.totalorder %s109, %s111
    %p118 = scmp.eq.s32.totalorder %s17, 1
    %p119 = por %p117, %p118
    %p120 = scmp.ne.s32.totalorder %s111, %s112
    %p121 = scmp.eq.s32.totalorder %s17, 0
    %p122 = por %p120, %p121
    %p123 = scmp.ne.s32.totalorder %s111, %s112
    %p124 = scmp.eq.s32.totalorder %s18, 1
    %p125 = por %p123, %p124
    %p127 = scmp.ne.s32.totalorder %s112, %s126
    %p128 = scmp.eq.s32.totalorder %s18, 0
    %p129 = por %p127, %p128
    %s131 = sadd.s32 %s130, 1
    %p134 = scmp.eq.s32.totalorder %s12, 1
    %p135 = scmp.ne.s32.totalorder %s130, %s132
    %p136 = scmp.eq.s32.totalorder %s12, 0
    %p137 = por %p135, %p136
    %p138 = scmp.ne.s32.totalorder %s130, %s132
    %p139 = scmp.eq.s32.totalorder %s17, 1
    %p140 = por %p138, %p139
    %p141 = scmp.ne.s32.totalorder %s132, %s133
    %p142 = scmp.eq.s32.totalorder %s17, 0
    %p143 = por %p141, %p142
    %p144 = scmp.ne.s32.totalorder %s132, %s133
    %p145 = scmp.eq.s32.totalorder %s18, 1
    %p146 = por %p144, %p145
    %p148 = scmp.ne.s32.totalorder %s133, %s147
    %p149 = scmp.eq.s32.totalorder %s18, 0
    %p150 = por %p148, %p149
    %s151 = ssub.s32 %s12, %s19
    %p152 = scmp.eq.s32.totalorder %s151, 0
    %s154 = sadd.s32 %s153, 1
    %s155 = scalar_select %p152, %s153, %s154
    %p158 = pneg %p152
    %p159 = scmp.eq.s32.totalorder %s12, 1
    %p160 = por %p158, %p159
    %p161 = scmp.ne.s32.totalorder %s153, %s156
    %p162 = scmp.eq.s32.totalorder %s12, 0
    %p163 = por %p161, %p162
    %p164 = scmp.ne.s32.totalorder %s153, %s156
    %p165 = scmp.eq.s32.totalorder %s17, 1
    %p166 = por %p164, %p165
    %p167 = scmp.ne.s32.totalorder %s156, %s157
    %p168 = scmp.eq.s32.totalorder %s17, 0
    %p169 = por %p167, %p168
    %p170 = scmp.ne.s32.totalorder %s156, %s157
    %p171 = scmp.eq.s32.totalorder %s18, 1
    %p172 = por %p170, %p171
    %p174 = scmp.ne.s32.totalorder %s157, %s173
    %p175 = scmp.eq.s32.totalorder %s18, 0
    %p176 = por %p174, %p175
    %p177 = scmp.le.s32.totalorder 1, %s12
    %p178 = scmp.lt.s32.totalorder %s12, 3
    %p179 = pnand %p177, %p178
    %p180 = pneg %p179
    // Predicated region
    $region9: #{net_batchnorm_forward.8} parent=5 // pred_check
      _
    $region10: #{net_batchnorm_forward.8} parent=5 // pred_check_branch
      %182 = sbr.rel (%p179) target = $region12
    $region11: #{net_batchnorm_forward.8} parent=5 // pred_region
      %s183 = ssub.s32 %s12, 1
      // Predicated region
      $region13: #{net_batchnorm_forward.8} parent=11 // pred_check
        %p184 = pneg %p59
      $region14: #{net_batchnorm_forward.8} parent=11 // pred_check_branch
        %186 = sbr.rel (%p184) target = $region16
      $region15: #{net_batchnorm_forward.8} parent=11 // pred_region
        _
      $region16: #{net_batchnorm_forward.8} parent=11 // pred_fallthru
        _
      // Predicated region
      $region17: #{net_batchnorm_forward.8} parent=11 // pred_check
        %p187 = pneg %p80
      $region18: #{net_batchnorm_forward.8} parent=11 // pred_check_branch
        %189 = sbr.rel (%p187) target = $region20
      $region19: #{net_batchnorm_forward.8} parent=11 // pred_region
        _
      $region20: #{net_batchnorm_forward.8} parent=11 // pred_fallthru
        _
      // Predicated region
      $region21: #{net_batchnorm_forward.8} parent=11 // pred_check
        %p190 = pneg %p101
      $region22: #{net_batchnorm_forward.8} parent=11 // pred_check_branch
        %192 = sbr.rel (%p190) target = $region24
      $region23: #{net_batchnorm_forward.8} parent=11 // pred_region
        _
      $region24: #{net_batchnorm_forward.8} parent=11 // pred_fallthru
        _
      // Predicated region
      $region25: #{net_batchnorm_forward.8} parent=11 // pred_check
        %p193 = pneg %p122
      $region26: #{net_batchnorm_forward.8} parent=11 // pred_check_branch
        %195 = sbr.rel (%p193) target = $region28
      $region27: #{net_batchnorm_forward.8} parent=11 // pred_region
        _
      $region28: #{net_batchnorm_forward.8} parent=11 // pred_fallthru
        _
      // Predicated region
      $region29: #{net_batchnorm_forward.8} parent=11 // pred_check
        %p196 = pneg %p143
      $region30: #{net_batchnorm_forward.8} parent=11 // pred_check_branch
        %198 = sbr.rel (%p196) target = $region32
      $region31: #{net_batchnorm_forward.8} parent=11 // pred_region
        _
      $region32: #{net_batchnorm_forward.8} parent=11 // pred_fallthru
        _
    $region12: #{net_batchnorm_forward.8} parent=5 // pred_fallthru
      _
    %p199 = scmp.lt.s32.totalorder %s12, 2
    // Predicated region
    $region33: #{net_batchnorm_forward.8} parent=5 // pred_check
      %p200 = pneg %p199
    $region34: #{net_batchnorm_forward.8} parent=5 // pred_check_branch
      %202 = sbr.rel (%p200) target = $region36
    $region35: #{net_batchnorm_forward.8} parent=5 // pred_region
      // Predicated region
      $region37: #{net_batchnorm_forward.8} parent=35 // pred_check
        %p203 = pneg %p32
      $region38: #{net_batchnorm_forward.8} parent=35 // pred_check_branch
        %205 = sbr.rel (%p203) target = $region40
      $region39: #{net_batchnorm_forward.8} parent=35 // pred_region
        %p206 = scmp.lt.s32.totalorder %s12, 1
        %s207 = scalar_select %p206, %s12, 1
        %s208 = smul.addr %s207, 6
        %s209 = smul.addr %s208, 4
        %s210 = scalar_lea.vmem %s0, %s209
      $region40: #{net_batchnorm_forward.8} parent=35 // pred_fallthru
        _
    $region36: #{net_batchnorm_forward.8} parent=5 // pred_fallthru
      _
    %p211 = scmp.le.s32.totalorder 1, %s12
    %p212 = scmp.lt.s32.totalorder %s12, 3
    %p213 = pnand %p211, %p212
    %p214 = pneg %p213
    // Predicated region
    $region41: #{net_batchnorm_forward.8} parent=5 // pred_check
      _
    $region42: #{net_batchnorm_forward.8} parent=5 // pred_check_branch
      %216 = sbr.rel (%p213) target = $region44
    $region43: #{net_batchnorm_forward.8} parent=5 // pred_region
      %s217 = ssub.s32 %s12, 1
      %p218 = scmp.lt.s32.totalorder %s17, 1
      %s219 = scalar_select %p218, %s17, 1
      %s220 = smul.addr %s219, 6
      %s221 = smul.addr %s220, 4
      %s222 = scalar_lea.vmem %s0, %s221
      %p223 = pneg %p38
      %p224 = pneg %p35
      %p225 = pneg %p59
      %p226 = pneg %p56
      %p227 = pneg %p80
      %p228 = pneg %p77
      %p229 = pneg %p101
      %p230 = pneg %p98
      %p231 = pneg %p122
      %p232 = pneg %p119
      %p233 = pneg %p143
      %p234 = pneg %p140
      %p235 = pneg %p169
      %p236 = pneg %p166
      %p237 = scmp.lt.s32.totalorder %s17, 1
      %s238 = scalar_select %p237, %s17, 1
      %s239 = smul.addr %s238, 4
      %s240 = scalar_lea.vmem %s6, %s239
      %p241 = scmp.lt.s32.totalorder %s17, 1
      %s242 = scalar_select %p241, %s17, 1
      %s243 = smul.addr %s242, 6
      %s244 = smul.addr %s243, 4
      %s245 = scalar_lea.vmem %s0, %s244
      %p246 = scmp.lt.s32.totalorder %s17, 1
      %s247 = scalar_select %p246, %s17, 1
      %s248 = smul.addr %s247, 4
      %s249 = scalar_lea.vmem %s6, %s248
      %v251 = vld [vmem:[%s245] sm:$0xff]
      %v252 = vld [vmem:[%s245 + $0x8] sm:$0xff]
      %v253 = vld [vmem:[%s1] sm:$0xf]
      %v254 = vld [vmem:[%s1 + $0x4] sm:$0xf]
      %v255 = vld [vmem:[%s1 + $0x8] sm:$0xf]
      %v256 = vld [vmem:[%s1 + $0xc] sm:$0xf]
      %v257 = vld [vmem:[%s1 + $0x10] sm:$0xf]
      %v258 = vld [vmem:[%s1 + $0x14] sm:$0xf]
      %v259 = vld [vmem:[%s1 + $0x18] sm:$0xf]
      %v260 = vld [vmem:[%s1 + $0x1c] sm:$0xf]
      %v261 = vld [vmem:[%s1 + $0x20] sm:$0xf]
      %v262 = vld [vmem:[%s1 + $0x24] sm:$0xf]
      %v263 = vld [vmem:[%s1 + $0x28] sm:$0xf]
      %v264 = vld [vmem:[%s1 + $0x2c] sm:$0xf]
      %v265 = vld [vmem:[%s1 + $0x30] sm:$0xf]
      %v266 = vld [vmem:[%s1 + $0x34] sm:$0xf]
      %v267 = vld [vmem:[%s1 + $0x38] sm:$0xf]
      %v268 = vld [vmem:[%s1 + $0x3c] sm:$0xf]
      %v269 = vld [vmem:[%s1 + $0x40] sm:$0xf]
      %v270 = vld [vmem:[%s1 + $0x44] sm:$0xf]
      %v271 = vld [vmem:[%s245 + $0x10] sm:$0x11]
      %s272 = scalar_lea.vmem %s1, 72
      %v273 = vld [vmem:[%s272] sm:$0xf]
      %v274 = vld [vmem:[%s272 + $0x4] sm:$0xf]
      %v275 = vld [vmem:[%s272 + $0x8] sm:$0xf]
      %v276 = vld [vmem:[%s272 + $0xc] sm:$0xf]
      %v277 = vld [vmem:[%s272 + $0x10] sm:$0xf]
      %v278 = vld [vmem:[%s272 + $0x14] sm:$0xf]
      %v279 = vld [vmem:[%s272 + $0x18] sm:$0xf]
      %v280 = vld [vmem:[%s272 + $0x1c] sm:$0xf]
      %v281 = vld [vmem:[%s272 + $0x20] sm:$0xf]
      %v282 = vld [vmem:[%s272 + $0x24] sm:$0xf]
      %v283 = vld [vmem:[%s272 + $0x28] sm:$0xf]
      %v284 = vld [vmem:[%s272 + $0x2c] sm:$0xf]
      %v285 = vld [vmem:[%s272 + $0x30] sm:$0xf]
      %v286 = vld [vmem:[%s272 + $0x34] sm:$0xf]
      %v287 = vld [vmem:[%s272 + $0x38] sm:$0xf]
      %v288 = vld [vmem:[%s272 + $0x3c] sm:$0xf]
      %v289 = vld [vmem:[%s272 + $0x40] sm:$0xf]
      %v290 = vld [vmem:[%s272 + $0x44] sm:$0xf]
      %v294 = vunpack.c.l.b16 %v251
      %v295 = vunpack.c.h.b16 %v251
      %v296 = vunpack.c.l.b16 %v252
      %v297 = vunpack.c.h.b16 %v252
      %v298 = vunpack.c.l.b16 %v271
      %v299 = vunpack.c.h.b16 %v271
      %v300 = vpack.c.b16 %v296, %v294
      %v301 = vpack.c.b16 %v297, %v295
      %v302 = vpack.c.b16 %v298, %v298
      %v303 = vpack.c.b16 %v299, %v299
      %vm304 = vsmask.f32 7424
      %v306 = vshrl.u32 %v300, 16
      %v308 = vshll.u32 %v300, 16
      %v310 = vrot.slane %v308, 1
      %v311 = vor.u32 %v306, %v310
      %v313 = vshll.u32 %v302, 16
      %v315 = vrot.slane %v313, 1
      %v316 = vsel %vm304, %v311, %v315
      %v318 = vshrl.u32 %v301, 16
      %v320 = vshll.u32 %v301, 16
      %v322 = vrot.slane %v320, 1
      %v323 = vor.u32 %v318, %v322
      %v325 = vshll.u32 %v303, 16
      %v327 = vrot.slane %v325, 1
      %v328 = vsel %vm304, %v323, %v327
      %v348 = vunpack.c.l.b16 %v273
      %v349 = vunpack.c.l.b16 %v274
      %v350 = vunpack.c.l.b16 %v275
      %v351 = vunpack.c.l.b16 %v276
      %v352 = vunpack.c.l.b16 %v277
      %v353 = vunpack.c.l.b16 %v278
      %v354 = vunpack.c.l.b16 %v279
      %v355 = vunpack.c.l.b16 %v280
      %v356 = vunpack.c.l.b16 %v281
      %v357 = vunpack.c.l.b16 %v282
      %v358 = vunpack.c.l.b16 %v283
      %v359 = vunpack.c.l.b16 %v284
      %v360 = vunpack.c.l.b16 %v285
      %v361 = vunpack.c.l.b16 %v286
      %v362 = vunpack.c.l.b16 %v287
      %v363 = vunpack.c.l.b16 %v288
      %v364 = vunpack.c.l.b16 %v289
      %v365 = vunpack.c.l.b16 %v290
      %v366 = vpack.c.b16 %v349, %v348
      %v367 = vpack.c.b16 %v351, %v350
      %v368 = vpack.c.b16 %v353, %v352
      %v369 = vpack.c.b16 %v355, %v354
      %v370 = vpack.c.b16 %v357, %v356
      %v371 = vpack.c.b16 %v359, %v358
      %v372 = vpack.c.b16 %v361, %v360
      %v373 = vpack.c.b16 %v363, %v362
      %v374 = vpack.c.b16 %v365, %v364
      %vm384 = vcmask 130048
      %v386 = vsel %vm384, %v328, 0
      %388 = vmatprep.subr.bf16.mxu0 0
      %389 = vmatpush1.bf16.msra.mxu0 %v373
      %390 = vmatprep.subr.bf16.mxu0 0
      %391 = vmatpush1.bf16.msra.mxu0 %v372
      %392 = vmatprep.subr.bf16.mxu0 0
      %393 = vmatpush1.bf16.msra.mxu0 %v371
      %394 = vmatprep.subr.bf16.mxu0 0
      %395 = vmatpush1.bf16.msra.mxu0 %v370
      %396 = vmatprep.subr.bf16.mxu0 0
      %397 = vmatpush1.bf16.msra.mxu0 %v369
      %398 = vmatprep.subr.bf16.mxu0 0
      %399 = vmatpush1.bf16.msra.mxu0 %v368
      %400 = vmatprep.subr.bf16.mxu0 0
      %401 = vmatpush1.bf16.msra.mxu0 %v367
      %402 = vmatprep.subr.bf16.mxu0 0
      %403 = vmatpush1.bf16.msra.mxu0 %v366
      %404 = vmatprep.subr.bf16.mxu0 0
      %405 = vmatpush2.bf16.msra.mxu0 0
      %406 = vmatprep.subr.bf16.mxu0 0
      %407 = vmatpush2.bf16.msra.mxu0 0
      %408 = vmatprep.subr.bf16.mxu0 0
      %409 = vmatpush2.bf16.msra.mxu0 0
      %410 = vmatprep.subr.bf16.mxu0 0
      %411 = vmatpush2.bf16.msra.mxu0 0
      %412 = vmatprep.subr.bf16.mxu0 0
      %413 = vmatpush2.bf16.msra.mxu0 0
      %414 = vmatprep.subr.bf16.mxu0 0
      %415 = vmatpush2.bf16.msra.mxu0 0
      %416 = vmatprep.subr.bf16.mxu0 0
      %417 = vmatpush2.bf16.msra.mxu0 0
      %418 = vmatprep.subr.bf16.mxu0 0
      %419 = vmatpush2.bf16.msra.mxu0 %v374
      %420 = vmatprep.mubr.bf16.mxu0 %v386
      %421 = vmatmul.mubr.bf16.gmra.mxu0 %v316
      %v422 = vpop.f32.mrf.mxu0
      %v423 = vadd.f32 0.0, %v422
      %v424 = vpop.f32.mrf.mxu0
      %v425 = vpop.f32.mrf.mxu0
      %v426 = vadd.f32 0.0, %v425
      %v427 = vpop.f32.mrf.mxu0
      %428 = vdwg.mxu0
      %v448 = vunpack.c.l.b16 %v253
      %v449 = vunpack.c.l.b16 %v254
      %v450 = vunpack.c.l.b16 %v255
      %v451 = vunpack.c.l.b16 %v256
      %v452 = vunpack.c.l.b16 %v257
      %v453 = vunpack.c.l.b16 %v258
      %v454 = vunpack.c.l.b16 %v259
      %v455 = vunpack.c.l.b16 %v260
      %v456 = vunpack.c.l.b16 %v261
      %v457 = vunpack.c.l.b16 %v262
      %v458 = vunpack.c.l.b16 %v263
      %v459 = vunpack.c.l.b16 %v264
      %v460 = vunpack.c.l.b16 %v265
      %v461 = vunpack.c.l.b16 %v266
      %v462 = vunpack.c.l.b16 %v267
      %v463 = vunpack.c.l.b16 %v268
      %v464 = vunpack.c.l.b16 %v269
      %v465 = vunpack.c.l.b16 %v270
      %v466 = vpack.c.b16 %v449, %v448
      %v467 = vpack.c.b16 %v451, %v450
      %v468 = vpack.c.b16 %v453, %v452
      %v469 = vpack.c.b16 %v455, %v454
      %v470 = vpack.c.b16 %v457, %v456
      %v471 = vpack.c.b16 %v459, %v458
      %v472 = vpack.c.b16 %v461, %v460
      %v473 = vpack.c.b16 %v463, %v462
      %v474 = vpack.c.b16 %v465, %v464
      %v484 = vsel %vm384, %v301, 0
      %486 = vmatprep.subr.bf16.mxu0 0
      %487 = vmatpush1.bf16.msra.mxu0 %v473
      %488 = vmatprep.subr.bf16.mxu0 0
      %489 = vmatpush1.bf16.msra.mxu0 %v472
      %490 = vmatprep.subr.bf16.mxu0 0
      %491 = vmatpush1.bf16.msra.mxu0 %v471
      %492 = vmatprep.subr.bf16.mxu0 0
      %493 = vmatpush1.bf16.msra.mxu0 %v470
      %494 = vmatprep.subr.bf16.mxu0 0
      %495 = vmatpush1.bf16.msra.mxu0 %v469
      %496 = vmatprep.subr.bf16.mxu0 0
      %497 = vmatpush1.bf16.msra.mxu0 %v468
      %498 = vmatprep.subr.bf16.mxu0 0
      %499 = vmatpush1.bf16.msra.mxu0 %v467
      %500 = vmatprep.subr.bf16.mxu0 0
      %501 = vmatpush1.bf16.msra.mxu0 %v466
      %502 = vmatprep.subr.bf16.mxu0 0
      %503 = vmatpush2.bf16.msra.mxu0 0
      %504 = vmatprep.subr.bf16.mxu0 0
      %505 = vmatpush2.bf16.msra.mxu0 0
      %506 = vmatprep.subr.bf16.mxu0 0
      %507 = vmatpush2.bf16.msra.mxu0 0
      %508 = vmatprep.subr.bf16.mxu0 0
      %509 = vmatpush2.bf16.msra.mxu0 0
      %510 = vmatprep.subr.bf16.mxu0 0
      %511 = vmatpush2.bf16.msra.mxu0 0
      %512 = vmatprep.subr.bf16.mxu0 0
      %513 = vmatpush2.bf16.msra.mxu0 0
      %514 = vmatprep.subr.bf16.mxu0 0
      %515 = vmatpush2.bf16.msra.mxu0 0
      %516 = vmatprep.subr.bf16.mxu0 0
      %517 = vmatpush2.bf16.msra.mxu0 %v474
      %518 = vmatprep.mubr.bf16.mxu0 %v484
      %519 = vmatmul.mubr.bf16.gmra.mxu0 %v300
      %v520 = vpop.f32.mrf.mxu0
      %v521 = vadd.f32 %v423, %v520
      %v522 = vpop.f32.mrf.mxu0
      %v523 = vpop.f32.mrf.mxu0
      %v524 = vadd.f32 %v426, %v523
      %v525 = vpop.f32.mrf.mxu0
      %526 = vdwg.mxu0
      %v527 = vld [vmem:[%s245] sm:$0xee]
      %s528 = scalar_lea.vmem %s1, 144
      %v529 = vld [vmem:[%s528] sm:$0xf]
      %v530 = vld [vmem:[%s528 + $0x4] sm:$0xf]
      %v531 = vld [vmem:[%s528 + $0x8] sm:$0xf]
      %v532 = vld [vmem:[%s528 + $0xc] sm:$0xf]
      %v533 = vld [vmem:[%s528 + $0x10] sm:$0xf]
      %v534 = vld [vmem:[%s528 + $0x14] sm:$0xf]
      %v535 = vld [vmem:[%s528 + $0x18] sm:$0xf]
      %v536 = vld [vmem:[%s528 + $0x1c] sm:$0xf]
      %v537 = vld [vmem:[%s528 + $0x20] sm:$0xf]
      %v538 = vld [vmem:[%s528 + $0x24] sm:$0xf]
      %v539 = vld [vmem:[%s528 + $0x28] sm:$0xf]
      %v540 = vld [vmem:[%s528 + $0x2c] sm:$0xf]
      %v541 = vld [vmem:[%s528 + $0x30] sm:$0xf]
      %v542 = vld [vmem:[%s528 + $0x34] sm:$0xf]
      %v543 = vld [vmem:[%s528 + $0x38] sm:$0xf]
      %v544 = vld [vmem:[%s528 + $0x3c] sm:$0xf]
      %v545 = vld [vmem:[%s528 + $0x40] sm:$0xf]
      %v546 = vld [vmem:[%s528 + $0x44] sm:$0xf]
      %v548 = vunpack.c.l.b16 %v527
      %v549 = vunpack.c.h.b16 %v527
      %v550 = vpack.c.b16 %v296, %v548
      %v551 = vpack.c.b16 %v297, %v549
      %vm552 = vcmask 1046528
      %v553 = vrot.slane %v550, 1
      %v554 = vrot.slane %v302, 1
      %v555 = vsel %vm552, %v553, %v554
      %v556 = vrot.slane %v551, 1
      %v557 = vrot.slane %v303, 1
      %v558 = vsel %vm552, %v556, %v557
      %v578 = vunpack.c.l.b16 %v529
      %v579 = vunpack.c.l.b16 %v530
      %v580 = vunpack.c.l.b16 %v531
      %v581 = vunpack.c.l.b16 %v532
      %v582 = vunpack.c.l.b16 %v533
      %v583 = vunpack.c.l.b16 %v534
      %v584 = vunpack.c.l.b16 %v535
      %v585 = vunpack.c.l.b16 %v536
      %v586 = vunpack.c.l.b16 %v537
      %v587 = vunpack.c.l.b16 %v538
      %v588 = vunpack.c.l.b16 %v539
      %v589 = vunpack.c.l.b16 %v540
      %v590 = vunpack.c.l.b16 %v541
      %v591 = vunpack.c.l.b16 %v542
      %v592 = vunpack.c.l.b16 %v543
      %v593 = vunpack.c.l.b16 %v544
      %v594 = vunpack.c.l.b16 %v545
      %v595 = vunpack.c.l.b16 %v546
      %v596 = vpack.c.b16 %v579, %v578
      %v597 = vpack.c.b16 %v581, %v580
      %v598 = vpack.c.b16 %v583, %v582
      %v599 = vpack.c.b16 %v585, %v584
      %v600 = vpack.c.b16 %v587, %v586
      %v601 = vpack.c.b16 %v589, %v588
      %v602 = vpack.c.b16 %v591, %v590
      %v603 = vpack.c.b16 %v593, %v592
      %v604 = vpack.c.b16 %v595, %v594
      %v615 = vsel %vm384, %v558, 0
      %617 = vmatprep.subr.bf16.mxu0 0
      %618 = vmatpush1.bf16.msra.mxu0 %v603
      %619 = vmatprep.subr.bf16.mxu0 0
      %620 = vmatpush1.bf16.msra.mxu0 %v602
      %621 = vmatprep.subr.bf16.mxu0 0
      %622 = vmatpush1.bf16.msra.mxu0 %v601
      %623 = vmatprep.subr.bf16.mxu0 0
      %624 = vmatpush1.bf16.msra.mxu0 %v600
      %625 = vmatprep.subr.bf16.mxu0 0
      %626 = vmatpush1.bf16.msra.mxu0 %v599
      %627 = vmatprep.subr.bf16.mxu0 0
      %628 = vmatpush1.bf16.msra.mxu0 %v598
      %629 = vmatprep.subr.bf16.mxu0 0
      %630 = vmatpush1.bf16.msra.mxu0 %v597
      %631 = vmatprep.subr.bf16.mxu0 0
      %632 = vmatpush1.bf16.msra.mxu0 %v596
      %633 = vmatprep.subr.bf16.mxu0 0
      %634 = vmatpush2.bf16.msra.mxu0 0
      %635 = vmatprep.subr.bf16.mxu0 0
      %636 = vmatpush2.bf16.msra.mxu0 0
      %637 = vmatprep.subr.bf16.mxu0 0
      %638 = vmatpush2.bf16.msra.mxu0 0
      %639 = vmatprep.subr.bf16.mxu0 0
      %640 = vmatpush2.bf16.msra.mxu0 0
      %641 = vmatprep.subr.bf16.mxu0 0
      %642 = vmatpush2.bf16.msra.mxu0 0
      %643 = vmatprep.subr.bf16.mxu0 0
      %644 = vmatpush2.bf16.msra.mxu0 0
      %645 = vmatprep.subr.bf16.mxu0 0
      %646 = vmatpush2.bf16.msra.mxu0 0
      %647 = vmatprep.subr.bf16.mxu0 0
      %648 = vmatpush2.bf16.msra.mxu0 %v604
      %649 = vmatprep.mubr.bf16.mxu0 %v615
      %650 = vmatmul.mubr.bf16.gmra.mxu0 %v555
      %v651 = vpop.f32.mrf.mxu0
      %v652 = vadd.f32 0.0, %v651
      %v653 = vpop.f32.mrf.mxu0
      %v654 = vpop.f32.mrf.mxu0
      %v655 = vadd.f32 0.0, %v654
      %v656 = vpop.f32.mrf.mxu0
      %657 = vdwg.mxu0
      %v658 = vadd.f32 %v521, %v652
      %v659 = vadd.f32 %v524, %v655
      %v660 = vld [vmem:[%s2] sm:$0x1]
      %v662 = vlaneseq
      %v663 = vshrl.u32 %v662, 7
      %v664 = vsub.s32 0, %v663
      %v665 = vrot.slane %v660, %v664
      %v667 = vmul.f32 %v658, %v665
      %v668 = vmul.f32 %v659, %v665
      %v669 = vld [vmem:[%s3] sm:$0x1]
      %v671 = vlaneseq
      %v672 = vshrl.u32 %v671, 7
      %v673 = vsub.s32 0, %v672
      %v674 = vrot.slane %v669, %v673
      %v676 = vadd.f32 %v667, %v674
      %v677 = vadd.f32 %v668, %v674
      %v678 = vtanh.pop %v676
      %v679 = vtanh.pop %v677
      %vm682 = vcmask 1046528
      %v683 = vrot.slane %v678, 1
      %v684 = vrot.slane %v679, 1
      %v685 = vsel %vm682, %v683, %v684
      %v688 = vmax.f32 %v678, %v685
      %v689 = vmax.f32 %v679, %v684
      %v690 = vpack.c.bf16 %v689, %v688
      %v691 = vld [vmem:[%s4] sm:$0xf]
      %vm692 = vcmask 121856
      %v694 = vsel %vm692, %v691, 0
      %vm696 = vcmask 1047552
      %v697 = vsel %vm682, 4294967295, 65535
      %v698 = vsel %vm696, %v697, 0
      %v700 = vand.u32 %v690, %v698
      %702 = vmatprep.subr.bf16.mxu0 0
      %703 = vmatpush1.bf16.msra.mxu0 0
      %704 = vmatprep.subr.bf16.mxu0 0
      %705 = vmatpush1.bf16.msra.mxu0 0
      %706 = vmatprep.subr.bf16.mxu0 0
      %707 = vmatpush1.bf16.msra.mxu0 0
      %708 = vmatprep.subr.bf16.mxu0 0
      %709 = vmatpush1.bf16.msra.mxu0 0
      %710 = vmatprep.subr.bf16.mxu0 0
      %711 = vmatpush1.bf16.msra.mxu0 0
      %712 = vmatprep.subr.bf16.mxu0 0
      %713 = vmatpush1.bf16.msra.mxu0 0
      %714 = vmatprep.subr.bf16.mxu0 0
      %715 = vmatpush1.bf16.msra.mxu0 0
      %716 = vmatprep.subr.bf16.mxu0 0
      %717 = vmatpush1.bf16.msra.mxu0 %v700
      %718 = vmatprep.subr.bf16.mxu0 0
      %719 = vmatpush2.bf16.msra.mxu0 0
      %720 = vmatprep.subr.bf16.mxu0 0
      %721 = vmatpush2.bf16.msra.mxu0 0
      %722 = vmatprep.subr.bf16.mxu0 0
      %723 = vmatpush2.bf16.msra.mxu0 0
      %724 = vmatprep.subr.bf16.mxu0 0
      %725 = vmatpush2.bf16.msra.mxu0 0
      %726 = vmatprep.subr.bf16.mxu0 0
      %727 = vmatpush2.bf16.msra.mxu0 0
      %728 = vmatprep.subr.bf16.mxu0 0
      %729 = vmatpush2.bf16.msra.mxu0 0
      %730 = vmatprep.subr.bf16.mxu0 0
      %731 = vmatpush2.bf16.msra.mxu0 0
      %732 = vmatprep.subr.bf16.mxu0 0
      %733 = vmatpush2.bf16.msra.mxu0 0
      %734 = vmatprep.mubr.bf16.mxu0 0
      %735 = vmatmul.mubr.bf16.gmra.mxu0 %v694
      %v736 = vpop.f32.mrf.mxu0
      %v737 = vadd.f32 0.0, %v736
      %v738 = vpop.f32.mrf.mxu0
      %v739 = vpop.f32.mrf.mxu0
      %v740 = vpop.f32.mrf.mxu0
      %741 = vdwg.mxu0
      %v742 = vpack.c.bf16 %v737, %v737
      %744 = vrot.lane.b32.xlu0 %v742, 124
      %v745 = vpop.permute.xlu0 %744
      %v747 = vmax.bf16 %v742, %v745
      %v748 = vld [vmem:[%s5] sm:$0xf]
      %v749 = vld [vmem:[%s5 + $0x4] sm:$0xf]
      %v750 = vld [vmem:[%s5 + $0x8] sm:$0xf]
      %v751 = vld [vmem:[%s5 + $0xc] sm:$0xf]
      %v752 = vld [vmem:[%s5 + $0x10] sm:$0xf]
      %v753 = vld [vmem:[%s5 + $0x14] sm:$0xf]
      %v754 = vld [vmem:[%s5 + $0x18] sm:$0xf]
      %v755 = vld [vmem:[%s5 + $0x1c] sm:$0x3]
      %v764 = vunpack.c.l.b16 %v748
      %v765 = vunpack.c.l.b16 %v749
      %v766 = vunpack.c.l.b16 %v750
      %v767 = vunpack.c.l.b16 %v751
      %v768 = vunpack.c.l.b16 %v752
      %v769 = vunpack.c.l.b16 %v753
      %v770 = vunpack.c.l.b16 %v754
      %v771 = vunpack.c.l.b16 %v755
      %v772 = vpack.c.b16 %v765, %v764
      %v773 = vpack.c.b16 %v767, %v766
      %v774 = vpack.c.b16 %v769, %v768
      %v775 = vpack.c.b16 %v771, %v770
      %vm779 = vcmask 490496
      %v781 = vsel %vm779, %v747, 0
      %vm783 = vcmask 1045504
      %v785 = vsel %vm783, %v775, 0
      %787 = vmatprep.subr.bf16.mxu0 0
      %788 = vmatpush1.bf16.msra.mxu0 0
      %789 = vmatprep.subr.bf16.mxu0 0
      %790 = vmatpush1.bf16.msra.mxu0 0
      %791 = vmatprep.subr.bf16.mxu0 0
      %792 = vmatpush1.bf16.msra.mxu0 0
      %793 = vmatprep.subr.bf16.mxu0 0
      %794 = vmatpush1.bf16.msra.mxu0 0
      %795 = vmatprep.subr.bf16.mxu0 0
      %796 = vmatpush1.bf16.msra.mxu0 %v785
      %797 = vmatprep.subr.bf16.mxu0 0
      %798 = vmatpush1.bf16.msra.mxu0 %v774
      %799 = vmatprep.subr.bf16.mxu0 0
      %800 = vmatpush1.bf16.msra.mxu0 %v773
      %801 = vmatprep.subr.bf16.mxu0 0
      %802 = vmatpush1.bf16.msra.mxu0 %v772
      %803 = vmatprep.subr.bf16.mxu0 0
      %804 = vmatpush2.bf16.msra.mxu0 0
      %805 = vmatprep.subr.bf16.mxu0 0
      %806 = vmatpush2.bf16.msra.mxu0 0
      %807 = vmatprep.subr.bf16.mxu0 0
      %808 = vmatpush2.bf16.msra.mxu0 0
      %809 = vmatprep.subr.bf16.mxu0 0
      %810 = vmatpush2.bf16.msra.mxu0 0
      %811 = vmatprep.subr.bf16.mxu0 0
      %812 = vmatpush2.bf16.msra.mxu0 0
      %813 = vmatprep.subr.bf16.mxu0 0
      %814 = vmatpush2.bf16.msra.mxu0 0
      %815 = vmatprep.subr.bf16.mxu0 0
      %816 = vmatpush2.bf16.msra.mxu0 0
      %817 = vmatprep.subr.bf16.mxu0 0
      %818 = vmatpush2.bf16.msra.mxu0 0
      %819 = vmatprep.mubr.bf16.mxu0 0
      %820 = vmatmul.mubr.bf16.gmra.mxu0 %v781
      %v821 = vpop.f32.mrf.mxu0
      %v822 = vadd.f32 0.0, %v821
      %v823 = vpop.f32.mrf.mxu0
      %v824 = vpop.f32.mrf.mxu0
      %v825 = vpop.f32.mrf.mxu0
      %826 = vdwg.mxu0
      %v827 = vpack.c.bf16 %v822, %v822
      %vm828 = vcmask 257024
      %829 = vst.msk [vmem:[%s249] sm:$0xf] %vm828, %v827
      %p830 = scmp.lt.s32.totalorder %s17, 1
      %s831 = scalar_select %p830, %s17, 1
      %s832 = smul.addr %s831, 4
      %s833 = scalar_lea.vmem %s6, %s832
      // Predicated region
      $region45: #{net_batchnorm_forward.8} parent=43 // pred_check
        %p834 = pneg %p166
      $region46: #{net_batchnorm_forward.8} parent=43 // pred_check_branch
        %836 = sbr.rel (%p834) target = $region48
      $region47: #{net_batchnorm_forward.8} parent=43 // pred_region
        _
      $region48: #{net_batchnorm_forward.8} parent=43 // pred_fallthru
        _
    $region44: #{net_batchnorm_forward.8} parent=5 // pred_fallthru
      _
    %p837 = scmp.le.s32.totalorder 2, %s12
    // Predicated region
    $region49: #{net_batchnorm_forward.8} parent=5 // pred_check
      %p838 = pneg %p837
    $region50: #{net_batchnorm_forward.8} parent=5 // pred_check_branch
      %840 = sbr.rel (%p838) target = $region52
    $region51: #{net_batchnorm_forward.8} parent=5 // pred_region
      %s841 = ssub.s32 %s12, 2
      // Predicated region
      $region53: #{net_batchnorm_forward.8} parent=51 // pred_check
        %p842 = pneg %p172
      $region54: #{net_batchnorm_forward.8} parent=51 // pred_check_branch
        %844 = sbr.rel (%p842) target = $region56
      $region55: #{net_batchnorm_forward.8} parent=51 // pred_region
        %p845 = scmp.lt.s32.totalorder %s18, 1
        %s846 = scalar_select %p845, %s18, 1
        %s847 = smul.addr %s846, 4
        %s848 = scalar_lea.vmem %s6, %s847
      $region56: #{net_batchnorm_forward.8} parent=51 // pred_fallthru
        _
    $region52: #{net_batchnorm_forward.8} parent=5 // pred_fallthru
      _
  $region6: #{net_batchnorm_forward.8} parent=0 // loop_footer
    %s16 = sadd.s32 1, %s12
  $region7: #{net_batchnorm_forward.8} parent=0 // loop_footer_branch
    %11 = sbr.rel target = $region3
  $region8: #{net_batchnorm_forward.8} parent=0 // loop_exit
    _

// kernel: net_batchnorm_forward.9
$region0: #{net_batchnorm_forward.9}
  #allocation0 [shape = 'u32[]', space=smem, size = 0x4, offset = 0x4, fixed_abs, tag = 'smem constant byte address 0x4 - core index']
  #allocation1 [shape = 'u32[144,128]{1,0:T(1,128)}', space=vmem, size = 0x12000, scoped, tag = 'internal scratch']
  %s0 = inlined_call_operand.vmem [shape: bf16[2,256], index: 0, kind: input, shape index: {}]
  %s1 = inlined_call_operand.vmem [shape: bf16[256,32], index: 1, kind: input, shape index: {}]
  %s2 = inlined_call_operand.vmem [shape: f32[1,32], index: 2, kind: input, shape index: {}]
  %s3 = inlined_call_operand.vmem [shape: bf16[32,2], index: 3, kind: input, shape index: {}]
  %s4 = inlined_call_operand.vmem [shape: f32[1,2], index: 4, kind: input, shape index: {}]
  %s5 = inlined_call_operand.hbm [shape: f32[2,2], index: 5, kind: output, shape index: {}]
  %s6 = sld [smem:[#allocation0]]
  $region30: #{net_batchnorm_forward.9} parent=0
    _
  %s8 = ssub.s32 1, %s6
  %s9 = scalar_select 0, %s8, %s6
  $region1: #{net_batchnorm_forward.9} parent=0
    #allocation2 [shape = 'u8[1024]{0}', space=vmem, size = 0x400, scoped, tag = 'output window, operand 0, single buffered']
    #allocation3 [shape = 's32[1]{0}', space=sflag, size = 0x4, scoped, tag = 'scoped memory for net_batchnorm_forward.9']
    %10 = vsyncpa [#allocation3], 0
    // Predicated region
    $region2: #{net_batchnorm_forward.9} parent=1 // pred_check
      _
    $region3: #{net_batchnorm_forward.9} parent=1 // pred_check_branch
      %12 = sbr.rel (0) target = $region5
    $region4: #{net_batchnorm_forward.9} parent=1 // pred_region
      _
    $region5: #{net_batchnorm_forward.9} parent=1 // pred_fallthru
      _
    // Predicated region
    $region6: #{net_batchnorm_forward.9} parent=1 // pred_check
      _
    $region7: #{net_batchnorm_forward.9} parent=1 // pred_check_branch
      %14 = sbr.rel (0) target = $region9
    $region8: #{net_batchnorm_forward.9} parent=1 // pred_region
      _
    $region9: #{net_batchnorm_forward.9} parent=1 // pred_fallthru
      _
    // Predicated region
    $region10: #{net_batchnorm_forward.9} parent=1 // pred_check
      _
    $region11: #{net_batchnorm_forward.9} parent=1 // pred_check_branch
      %16 = sbr.rel (0) target = $region13
    $region12: #{net_batchnorm_forward.9} parent=1 // pred_region
      _
    $region13: #{net_batchnorm_forward.9} parent=1 // pred_fallthru
      _
    // Predicated region
    $region14: #{net_batchnorm_forward.9} parent=1 // pred_check
      _
    $region15: #{net_batchnorm_forward.9} parent=1 // pred_check_branch
      %18 = sbr.rel (0) target = $region17
    $region16: #{net_batchnorm_forward.9} parent=1 // pred_region
      _
    $region17: #{net_batchnorm_forward.9} parent=1 // pred_fallthru
      _
    // Predicated region
    $region18: #{net_batchnorm_forward.9} parent=1 // pred_check
      _
    $region19: #{net_batchnorm_forward.9} parent=1 // pred_check_branch
      %20 = sbr.rel (0) target = $region21
    $region20: #{net_batchnorm_forward.9} parent=1 // pred_region
      _
    $region21: #{net_batchnorm_forward.9} parent=1 // pred_fallthru
      _
    %v22 = vld [vmem:[%s0] sm:$0x3]
    %v23 = vld [vmem:[%s1] sm:$0xf]
    %v24 = vld [vmem:[%s1 + $0x4] sm:$0xf]
    %v25 = vld [vmem:[%s1 + $0x8] sm:$0xf]
    %v26 = vld [vmem:[%s1 + $0xc] sm:$0xf]
    %v27 = vld [vmem:[%s1 + $0x10] sm:$0xf]
    %v28 = vld [vmem:[%s1 + $0x14] sm:$0xf]
    %v29 = vld [vmem:[%s1 + $0x18] sm:$0xf]
    %v30 = vld [vmem:[%s1 + $0x1c] sm:$0xf]
    %v31 = vld [vmem:[%s1 + $0x20] sm:$0xf]
    %v32 = vld [vmem:[%s1 + $0x24] sm:$0xf]
    %v33 = vld [vmem:[%s1 + $0x28] sm:$0xf]
    %v34 = vld [vmem:[%s1 + $0x2c] sm:$0xf]
    %v35 = vld [vmem:[%s1 + $0x30] sm:$0xf]
    %v36 = vld [vmem:[%s1 + $0x34] sm:$0xf]
    %v37 = vld [vmem:[%s1 + $0x38] sm:$0xf]
    %v38 = vld [vmem:[%s1 + $0x3c] sm:$0xf]
    %v39 = vld [vmem:[%s1 + $0x40] sm:$0xf]
    %v40 = vld [vmem:[%s1 + $0x44] sm:$0xf]
    %v41 = vld [vmem:[%s1 + $0x48] sm:$0xf]
    %v42 = vld [vmem:[%s1 + $0x4c] sm:$0xf]
    %v43 = vld [vmem:[%s1 + $0x50] sm:$0xf]
    %v44 = vld [vmem:[%s1 + $0x54] sm:$0xf]
    %v45 = vld [vmem:[%s1 + $0x58] sm:$0xf]
    %v46 = vld [vmem:[%s1 + $0x5c] sm:$0xf]
    %v47 = vld [vmem:[%s1 + $0x60] sm:$0xf]
    %v48 = vld [vmem:[%s1 + $0x64] sm:$0xf]
    %v49 = vld [vmem:[%s1 + $0x68] sm:$0xf]
    %v50 = vld [vmem:[%s1 + $0x6c] sm:$0xf]
    %v51 = vld [vmem:[%s1 + $0x70] sm:$0xf]
    %v52 = vld [vmem:[%s1 + $0x74] sm:$0xf]
    %v53 = vld [vmem:[%s1 + $0x78] sm:$0xf]
    %v54 = vld [vmem:[%s1 + $0x7c] sm:$0xf]
    %v55 = vld [vmem:[%s2] sm:$0x1]
    %v57 = vlaneseq
    %v58 = vshrl.u32 %v57, 7
    %v59 = vsub.s32 0, %v58
    %v60 = vrot.slane %v55, %v59
    %v64 = vunpack.c.l.s4 1966171168
    %v65 = vunpack.c.0.s8 %v64
    %v66 = vlaneseq
    %v67 = vshrl.u32 %v66, 7
    %v68 = vsub.s32 %v65, %v67
    %v69 = vrot.slane %v22, %v68
    %v70 = vcombine.high %v69, %v69
    %v72 = vunpack.c.l.s4 1966171168
    %v73 = vunpack.c.0.s8 %v72
    %v74 = vlaneseq
    %v75 = vshrl.u32 %v74, 7
    %v76 = vsub.s32 %v73, %v75
    %v77 = vrot.slane %v69, %v76
    %v79 = vunpack.c.l.s4 1966171168
    %v80 = vunpack.c.0.s8 %v79
    %v81 = vlaneseq
    %v82 = vshrl.u32 %v81, 7
    %v83 = vsub.s32 %v80, %v82
    %v84 = vrot.slane %v70, %v83
    %v119 = vunpack.c.l.b16 %v23
    %v120 = vunpack.c.l.b16 %v24
    %v121 = vunpack.c.l.b16 %v25
    %v122 = vunpack.c.l.b16 %v26
    %v123 = vunpack.c.l.b16 %v27
    %v124 = vunpack.c.l.b16 %v28
    %v125 = vunpack.c.l.b16 %v29
    %v126 = vunpack.c.l.b16 %v30
    %v127 = vunpack.c.l.b16 %v31
    %v128 = vunpack.c.l.b16 %v32
    %v129 = vunpack.c.l.b16 %v33
    %v130 = vunpack.c.l.b16 %v34
    %v131 = vunpack.c.l.b16 %v35
    %v132 = vunpack.c.l.b16 %v36
    %v133 = vunpack.c.l.b16 %v37
    %v134 = vunpack.c.l.b16 %v38
    %v135 = vunpack.c.l.b16 %v39
    %v136 = vunpack.c.l.b16 %v40
    %v137 = vunpack.c.l.b16 %v41
    %v138 = vunpack.c.l.b16 %v42
    %v139 = vunpack.c.l.b16 %v43
    %v140 = vunpack.c.l.b16 %v44
    %v141 = vunpack.c.l.b16 %v45
    %v142 = vunpack.c.l.b16 %v46
    %v143 = vunpack.c.l.b16 %v47
    %v144 = vunpack.c.l.b16 %v48
    %v145 = vunpack.c.l.b16 %v49
    %v146 = vunpack.c.l.b16 %v50
    %v147 = vunpack.c.l.b16 %v51
    %v148 = vunpack.c.l.b16 %v52
    %v149 = vunpack.c.l.b16 %v53
    %v150 = vunpack.c.l.b16 %v54
    %v151 = vpack.c.b16 %v120, %v119
    %v152 = vpack.c.b16 %v122, %v121
    %v153 = vpack.c.b16 %v124, %v123
    %v154 = vpack.c.b16 %v126, %v125
    %v155 = vpack.c.b16 %v128, %v127
    %v156 = vpack.c.b16 %v130, %v129
    %v157 = vpack.c.b16 %v132, %v131
    %v158 = vpack.c.b16 %v134, %v133
    %v159 = vpack.c.b16 %v136, %v135
    %v160 = vpack.c.b16 %v138, %v137
    %v161 = vpack.c.b16 %v140, %v139
    %v162 = vpack.c.b16 %v142, %v141
    %v163 = vpack.c.b16 %v144, %v143
    %v164 = vpack.c.b16 %v146, %v145
    %v165 = vpack.c.b16 %v148, %v147
    %v166 = vpack.c.b16 %v150, %v149
    %183 = vmatprep.subr.bf16.mxu0 0
    %184 = vmatpush1.bf16.msra.mxu0 %v158
    %185 = vmatprep.subr.bf16.mxu0 0
    %186 = vmatpush1.bf16.msra.mxu0 %v157
    %187 = vmatprep.subr.bf16.mxu0 0
    %188 = vmatpush1.bf16.msra.mxu0 %v156
    %189 = vmatprep.subr.bf16.mxu0 0
    %190 = vmatpush1.bf16.msra.mxu0 %v155
    %191 = vmatprep.subr.bf16.mxu0 0
    %192 = vmatpush1.bf16.msra.mxu0 %v154
    %193 = vmatprep.subr.bf16.mxu0 0
    %194 = vmatpush1.bf16.msra.mxu0 %v153
    %195 = vmatprep.subr.bf16.mxu0 0
    %196 = vmatpush1.bf16.msra.mxu0 %v152
    %197 = vmatprep.subr.bf16.mxu0 0
    %198 = vmatpush1.bf16.msra.mxu0 %v151
    %199 = vmatprep.subr.bf16.mxu0 0
    %200 = vmatpush2.bf16.msra.mxu0 %v166
    %201 = vmatprep.subr.bf16.mxu0 0
    %202 = vmatpush2.bf16.msra.mxu0 %v165
    %203 = vmatprep.subr.bf16.mxu0 0
    %204 = vmatpush2.bf16.msra.mxu0 %v164
    %205 = vmatprep.subr.bf16.mxu0 0
    %206 = vmatpush2.bf16.msra.mxu0 %v163
    %207 = vmatprep.subr.bf16.mxu0 0
    %208 = vmatpush2.bf16.msra.mxu0 %v162
    %209 = vmatprep.subr.bf16.mxu0 0
    %210 = vmatpush2.bf16.msra.mxu0 %v161
    %211 = vmatprep.subr.bf16.mxu0 0
    %212 = vmatpush2.bf16.msra.mxu0 %v160
    %213 = vmatprep.subr.bf16.mxu0 0
    %214 = vmatpush2.bf16.msra.mxu0 %v159
    %215 = vmatprep.mubr.bf16.mxu0 %v84
    %216 = vmatmul.mubr.bf16.gmra.mxu0 %v77
    %v217 = vpop.f32.mrf.mxu0
    %v218 = vadd.f32 %v60, %v217
    %v219 = vpop.f32.mrf.mxu0
    %v220 = vpop.f32.mrf.mxu0
    %v221 = vpop.f32.mrf.mxu0
    %222 = vdwg.mxu0
    %v223 = vtanh.pop %v218
    %v224 = vpack.c.bf16 %v223, %v223
    %v225 = vld [vmem:[%s3] sm:$0xf]
    %v226 = vld [vmem:[%s3 + $0x4] sm:$0xf]
    %v227 = vld [vmem:[%s3 + $0x8] sm:$0xf]
    %v228 = vld [vmem:[%s3 + $0xc] sm:$0xf]
    %v229 = vld [vmem:[%s4] sm:$0x1]
    %v231 = vlaneseq
    %v232 = vshrl.u32 %v231, 7
    %v233 = vsub.s32 0, %v232
    %v234 = vrot.slane %v229, %v233
    %v240 = vunpack.c.l.b16 %v225
    %v241 = vunpack.c.l.b16 %v226
    %v242 = vunpack.c.l.b16 %v227
    %v243 = vunpack.c.l.b16 %v228
    %v244 = vpack.c.b16 %v241, %v240
    %v245 = vpack.c.b16 %v243, %v242
    %vm248 = vcmask 261120
    %v250 = vsel %vm248, %v224, 0
    %252 = vmatprep.subr.bf16.mxu0 0
    %253 = vmatpush1.bf16.msra.mxu0 0
    %254 = vmatprep.subr.bf16.mxu0 0
    %255 = vmatpush1.bf16.msra.mxu0 0
    %256 = vmatprep.subr.bf16.mxu0 0
    %257 = vmatpush1.bf16.msra.mxu0 0
    %258 = vmatprep.subr.bf16.mxu0 0
    %259 = vmatpush1.bf16.msra.mxu0 0
    %260 = vmatprep.subr.bf16.mxu0 0
    %261 = vmatpush1.bf16.msra.mxu0 0
    %262 = vmatprep.subr.bf16.mxu0 0
    %263 = vmatpush1.bf16.msra.mxu0 0
    %264 = vmatprep.subr.bf16.mxu0 0
    %265 = vmatpush1.bf16.msra.mxu0 %v245
    %266 = vmatprep.subr.bf16.mxu0 0
    %267 = vmatpush1.bf16.msra.mxu0 %v244
    %268 = vmatprep.subr.bf16.mxu0 0
    %269 = vmatpush2.bf16.msra.mxu0 0
    %270 = vmatprep.subr.bf16.mxu0 0
    %271 = vmatpush2.bf16.msra.mxu0 0
    %272 = vmatprep.subr.bf16.mxu0 0
    %273 = vmatpush2.bf16.msra.mxu0 0
    %274 = vmatprep.subr.bf16.mxu0 0
    %275 = vmatpush2.bf16.msra.mxu0 0
    %276 = vmatprep.subr.bf16.mxu0 0
    %277 = vmatpush2.bf16.msra.mxu0 0
    %278 = vmatprep.subr.bf16.mxu0 0
    %279 = vmatpush2.bf16.msra.mxu0 0
    %280 = vmatprep.subr.bf16.mxu0 0
    %281 = vmatpush2.bf16.msra.mxu0 0
    %282 = vmatprep.subr.bf16.mxu0 0
    %283 = vmatpush2.bf16.msra.mxu0 0
    %284 = vmatprep.mubr.bf16.mxu0 0
    %285 = vmatmul.mubr.bf16.gmra.mxu0 %v250
    %v286 = vpop.f32.mrf.mxu0
    %v287 = vadd.f32 %v234, %v286
    %v288 = vpop.f32.mrf.mxu0
    %v289 = vpop.f32.mrf.mxu0
    %v290 = vpop.f32.mrf.mxu0
    %291 = vdwg.mxu0
    %vm292 = vcmask 9216
    %293 = vst.msk [vmem:[#allocation2] sm:$0x3] %vm292, %v287
    // Predicated region
    $region22: #{net_batchnorm_forward.9} parent=1 // pred_check
      _
    $region23: #{net_batchnorm_forward.9} parent=1 // pred_check_branch
      %295 = sbr.rel (0) target = $region25
    $region24: #{net_batchnorm_forward.9} parent=1 // pred_region
      %s297 = ssub.s32 32, 32
      %298 = vsyncadd [#allocation3], %s297
      %s300 = sshll.u32 [#allocation2], 4
      %s301 = int_to_ptr.vmem [resolvable:$true] %s300
      %303 = dma.vmem_to_hbm [thread:$0]  %s301, 32, %s5, [#allocation3]
    $region25: #{net_batchnorm_forward.9} parent=1 // pred_fallthru
      _
    // Predicated region
    $region26: #{net_batchnorm_forward.9} parent=1 // pred_check
      _
    $region27: #{net_batchnorm_forward.9} parent=1 // pred_check_branch
      %305 = sbr.rel (0) target = $region29
    $region28: #{net_batchnorm_forward.9} parent=1 // pred_region
      %306 = dma.done [#allocation3], 32
    $region29: #{net_batchnorm_forward.9} parent=1 // pred_fallthru
      _
    %307 = vsyncpa [#allocation3], 1

</llo_original>
